<compile_context>
chip_gen: v7x
topology: tpu7x:2x2x1
jax: 0.10.0
libtpu: 0.0.40
codegen_flags: <defaults>
</compile_context>

<pallas_src>
import jax
import jax.numpy as jnp
from jax.experimental import pallas as pl
from jax.experimental.pallas import tpu as pltpu


# ---------------------------------------------------------------------------
# Config: small shapes consistent with the module (D controls in/out dim only;
# hidden widths 1000/100/50 are fixed by the module).
# ---------------------------------------------------------------------------
D = 8
IN_DIM = D * D * 3                                        # 192
LAYER_DIMS = [IN_DIM, 1000, 100, 50, 100, 1000, IN_DIM]
NUM_LAYERS = len(LAYER_DIMS) - 1                          # 6


def _round_up(n, m):
    return ((n + m - 1) // m) * m


# First/last widths stay at the true 192 (block == full array dim satisfies the
# (8,128) rule); hidden widths are lane-padded for unmasked vmatmul/vst.
# -> [192, 1024, 128, 128, 128, 1024, 192]
PADDED_DIMS = [IN_DIM] + [_round_up(d, 128) for d in LAYER_DIMS[1:-1]] + [IN_DIM]

MAX_TILE_B = 512   # big tiles amortize ~0.35us/step; live activations stay ~2 MiB
MIN_TILE_B = 16    # bf16 sublane packing


# ---------------------------------------------------------------------------
# Kernel: 6 fused (matmul -> +bias -> sigmoid) layers on one batch tile.
# ---------------------------------------------------------------------------
def panitznet_kernel(x_ref,
                     w0_ref, b0_ref,
                     w1_ref, b1_ref,
                     w2_ref, b2_ref,
                     w3_ref, b3_ref,
                     w4_ref, b4_ref,
                     w5_ref, b5_ref,
                     o_ref):
    def layer(h, w_ref, b_ref):
        # bf16 MXU matmul, f32 accumulate; bias + sigmoid in f32 (v5e has no bf16
        # VPU/EUP), result stored bf16 for the next layer's matmul input.
        y = jnp.dot(h, w_ref[...], preferred_element_type=jnp.float32) + b_ref[...]
        # sigmoid(y) = 0.5 * tanh(0.5 * y) + 0.5 : one EUP transcendental.
        return (0.5 * jnp.tanh(0.5 * y) + 0.5).astype(jnp.bfloat16)

    h = x_ref[...]                     # bf16 (tile_b, 192)
    h = layer(h, w0_ref, b0_ref)       # l_in : 192  -> 1000  (padded 1024)
    h = layer(h, w1_ref, b1_ref)       # l_1  : 1000 -> 100   (128)
    h = layer(h, w2_ref, b2_ref)       # l_2  : 100  -> 50    (128)
    h = layer(h, w3_ref, b3_ref)       # l_3  : 50   -> 100   (128)
    h = layer(h, w4_ref, b4_ref)       # l_4  : 100  -> 1000  (1024)
    h = layer(h, w5_ref, b5_ref)       # l_out: 1000 -> 192
    o_ref[...] = h.astype(o_ref.dtype)


# ---------------------------------------------------------------------------
# Parameter init (PyTorch nn.Linear-style), padding, reference.
# ---------------------------------------------------------------------------
def init_linear(key, fan_in, fan_out):
    kw, kb = jax.random.split(key)
    bound = 1.0 / float(fan_in) ** 0.5
    w = jax.random.uniform(kw, (fan_in, fan_out), jnp.float32, -bound, bound)
    b = jax.random.uniform(kb, (fan_out,), jnp.float32, -bound, bound)
    return w, b


def init_params(key):
    params = []
    for i in range(NUM_LAYERS):
        key, sub = jax.random.split(key)
        params.append(init_linear(sub, LAYER_DIMS[i], LAYER_DIMS[i + 1]))
    return params


def pad_params(params):
    """Zero-pad hidden widths to lane multiples; weights -> bf16, biases f32."""
    padded = []
    for k, (w, b) in enumerate(params):
        kp, np_ = PADDED_DIMS[k], PADDED_DIMS[k + 1]
        w_pad = (jnp.zeros((kp, np_), jnp.bfloat16)
                 .at[: w.shape[0], : w.shape[1]].set(w.astype(jnp.bfloat16)))
        b_pad = jnp.zeros((1, np_), jnp.float32).at[0, : b.shape[0]].set(b)
        padded.append((w_pad, b_pad))
    return padded


def panitznet_reference(x, params):
    """Pure-JAX f32 reference for correctness checking."""
    h = x.astype(jnp.float32)
    for w, b in params:
        h = jax.nn.sigmoid(h @ w + b)
    return h


# ---------------------------------------------------------------------------
# Forward wrapper: bf16 cast, minimal batch padding, batch-tiled pallas_call.
# ---------------------------------------------------------------------------
def _tiling(batch):
    num_tiles = pl.cdiv(batch, MAX_TILE_B)
    # Prefer >= 2 grid steps so the "parallel" batch axis can use both
    # TensorCores on v7x (harmless on single-TC v5e/v6e).
    if num_tiles == 1 and batch >= 2 * MIN_TILE_B:
        num_tiles = 2
    tile_b = _round_up(pl.cdiv(batch, num_tiles), MIN_TILE_B)
    return tile_b, tile_b * num_tiles


@jax.jit
def panitznet_forward(x, padded_params):
    batch = x.shape[0]
    tile_b, b_pad = _tiling(batch)

    x_bf = x.astype(jnp.bfloat16)            # halve the per-row HBM DMA
    if b_pad != batch:
        x_bf = jnp.pad(x_bf, ((0, b_pad - batch), (0, 0)))

    flat_args = [x_bf]
    for w, b in padded_params:
        flat_args.append(w)
        flat_args.append(b)

    # x / out are batch-tiled; weights & biases use constant index_maps so they
    # stay resident in VMEM across grid iterations (no re-DMA).
    in_specs = [pl.BlockSpec((tile_b, PADDED_DIMS[0]), lambda i: (i, 0))]
    for k in range(NUM_LAYERS):
        in_specs.append(
            pl.BlockSpec((PADDED_DIMS[k], PADDED_DIMS[k + 1]), lambda i: (0, 0)))
        in_specs.append(
            pl.BlockSpec((1, PADDED_DIMS[k + 1]), lambda i: (0, 0)))
    out_specs = pl.BlockSpec((tile_b, PADDED_DIMS[-1]), lambda i: (i, 0))

    flops = 2 * b_pad * sum(PADDED_DIMS[k] * PADDED_DIMS[k + 1]
                            for k in range(NUM_LAYERS))
    transcendentals = b_pad * sum(PADDED_DIMS[1:])
    bytes_accessed = (
        b_pad * (PADDED_DIMS[0] + PADDED_DIMS[-1]) * 2
        + sum(PADDED_DIMS[k] * PADDED_DIMS[k + 1] * 2 + PADDED_DIMS[k + 1] * 4
              for k in range(NUM_LAYERS)))

    out_pad = pl.pallas_call(
        panitznet_kernel,
        out_shape=jax.ShapeDtypeStruct((b_pad, PADDED_DIMS[-1]), jnp.bfloat16),
        grid_spec=pltpu.PrefetchScalarGridSpec(
            num_scalar_prefetch=0,
            grid=(b_pad // tile_b,),
            in_specs=in_specs,
            out_specs=out_specs,
        ),
        compiler_params=pltpu.CompilerParams(
            dimension_semantics=("parallel",)),
        cost_estimate=pl.CostEstimate(
            flops=flops,
            transcendentals=transcendentals,
            bytes_accessed=bytes_accessed),
    )(*flat_args)

    return out_pad[:batch].astype(x.dtype)


# ---------------------------------------------------------------------------
# Self-test
# ---------------------------------------------------------------------------
if __name__ == "__main__":
    key = jax.random.PRNGKey(0)
    key_x, key_x2, key_p = jax.random.split(key, 3)

    params = init_params(key_p)              # f32 reference params
    padded_params = pad_params(params)       # bf16/padded kernel params

    # Small-batch path (batch=2 padded to a 16-row bf16 tile in the wrapper).
    batch = 2
    x = jax.random.normal(key_x, (batch, IN_DIM), jnp.float32)
    out = jax.block_until_ready(panitznet_forward(x, padded_params))
    ref = panitznet_reference(x, params)
    assert out.shape == (batch, IN_DIM), out.shape
    # bf16 matmul inputs / bf16 output => looser tolerance than pure f32.
    assert jnp.allclose(out, ref, atol=2e-2), "mismatch vs. reference (small batch)"

    # Larger batch exercises the tiled grid (batch=300 -> 2 tiles of 160 rows).
    batch2 = 300
    x2 = jax.random.normal(key_x2, (batch2, IN_DIM), jnp.float32)
    out2 = jax.block_until_ready(panitznet_forward(x2, padded_params))
    ref2 = panitznet_reference(x2, params)
    assert out2.shape == (batch2, IN_DIM), out2.shape
    assert jnp.allclose(out2, ref2, atol=2e-2), "mismatch vs. reference (tiled batch)"

    print("KERNEL_OK")
</pallas_src>

<mosaic_0001>
module attributes {stable_mosaic.version = 11 : i64} {
  func.func @panitznet_kernel(%arg0: i32, %arg1: memref<16x192xbf16, #tpu.memory_space<vmem>>, %arg2: memref<192x1024xbf16, #tpu.memory_space<vmem>>, %arg3: memref<1x1024xf32, #tpu.memory_space<vmem>>, %arg4: memref<1024x128xbf16, #tpu.memory_space<vmem>>, %arg5: memref<1x128xf32, #tpu.memory_space<vmem>>, %arg6: memref<128x128xbf16, #tpu.memory_space<vmem>>, %arg7: memref<1x128xf32, #tpu.memory_space<vmem>>, %arg8: memref<128x128xbf16, #tpu.memory_space<vmem>>, %arg9: memref<1x128xf32, #tpu.memory_space<vmem>>, %arg10: memref<128x1024xbf16, #tpu.memory_space<vmem>>, %arg11: memref<1x1024xf32, #tpu.memory_space<vmem>>, %arg12: memref<1024x192xbf16, #tpu.memory_space<vmem>>, %arg13: memref<1x192xf32, #tpu.memory_space<vmem>>, %arg14: memref<16x192xbf16, #tpu.memory_space<vmem>>) attributes {dimension_semantics = [#tpu.dimension_semantics<parallel>], iteration_bounds = array<i64: 1>, scalar_prefetch = 0 : i64, scratch_operands = 0 : i64, tpu.core_type = #tpu.core_type<tc>, window_params = [{transform_indices = @transform_0, window_bounds = array<i64: 16, 192>}, {pipeline_mode = #tpu.pipeline_mode<synchronous>, transform_indices = @transform_1, window_bounds = array<i64: 192, 1024>}, {pipeline_mode = #tpu.pipeline_mode<synchronous>, transform_indices = @transform_2, window_bounds = array<i64: 1, 1024>}, {pipeline_mode = #tpu.pipeline_mode<synchronous>, transform_indices = @transform_3, window_bounds = array<i64: 1024, 128>}, {pipeline_mode = #tpu.pipeline_mode<synchronous>, transform_indices = @transform_4, window_bounds = array<i64: 1, 128>}, {pipeline_mode = #tpu.pipeline_mode<synchronous>, transform_indices = @transform_5, window_bounds = array<i64: 128, 128>}, {pipeline_mode = #tpu.pipeline_mode<synchronous>, transform_indices = @transform_6, window_bounds = array<i64: 1, 128>}, {pipeline_mode = #tpu.pipeline_mode<synchronous>, transform_indices = @transform_7, window_bounds = array<i64: 128, 128>}, {pipeline_mode = #tpu.pipeline_mode<synchronous>, transform_indices = @transform_8, window_bounds = array<i64: 1, 128>}, {pipeline_mode = #tpu.pipeline_mode<synchronous>, transform_indices = @transform_9, window_bounds = array<i64: 128, 1024>}, {pipeline_mode = #tpu.pipeline_mode<synchronous>, transform_indices = @transform_10, window_bounds = array<i64: 1, 1024>}, {pipeline_mode = #tpu.pipeline_mode<synchronous>, transform_indices = @transform_11, window_bounds = array<i64: 1024, 192>}, {pipeline_mode = #tpu.pipeline_mode<synchronous>, transform_indices = @transform_12, window_bounds = array<i64: 1, 192>}, {transform_indices = @transform_13, window_bounds = array<i64: 16, 192>}]} {
    %c0 = arith.constant 0 : index
    %c0_0 = arith.constant 0 : index
    %0 = vector.load %arg1[%c0, %c0_0] : memref<16x192xbf16, #tpu.memory_space<vmem>>, vector<16x192xbf16>
    %c0_1 = arith.constant 0 : index
    %c0_2 = arith.constant 0 : index
    %1 = vector.load %arg2[%c0_1, %c0_2] : memref<192x1024xbf16, #tpu.memory_space<vmem>>, vector<192x1024xbf16>
    %cst = arith.constant dense<0.000000e+00> : vector<16x1024xf32>
    %2 = tpu.matmul %0, %1, %cst {dimension_numbers = #tpu.dot_dimension_numbers<[1], [0], [0], [1], [0, 0, 1, 1], [], []>} : vector<16x192xbf16>, vector<192x1024xbf16>, vector<16x1024xf32> -> vector<16x1024xf32>
    %c0_3 = arith.constant 0 : index
    %c0_4 = arith.constant 0 : index
    %3 = vector.load %arg3[%c0_3, %c0_4] : memref<1x1024xf32, #tpu.memory_space<vmem>>, vector<1x1024xf32>
    %4 = vector.broadcast %3 : vector<1x1024xf32> to vector<16x1024xf32>
    %5 = arith.addf %2, %4 : vector<16x1024xf32>
    %cst_5 = arith.constant 5.000000e-01 : f32
    %6 = vector.broadcast %cst_5 : f32 to vector<16x1024xf32>
    %7 = arith.mulf %6, %5 : vector<16x1024xf32>
    %8 = math.tanh %7 : vector<16x1024xf32>
    %cst_6 = arith.constant 5.000000e-01 : f32
    %9 = vector.broadcast %cst_6 : f32 to vector<16x1024xf32>
    %10 = arith.mulf %9, %8 : vector<16x1024xf32>
    %cst_7 = arith.constant 5.000000e-01 : f32
    %11 = vector.broadcast %cst_7 : f32 to vector<16x1024xf32>
    %12 = arith.addf %10, %11 : vector<16x1024xf32>
    %13 = arith.truncf %12 : vector<16x1024xf32> to vector<16x1024xbf16>
    %c0_8 = arith.constant 0 : index
    %c0_9 = arith.constant 0 : index
    %14 = vector.load %arg4[%c0_8, %c0_9] : memref<1024x128xbf16, #tpu.memory_space<vmem>>, vector<1024x128xbf16>
    %cst_10 = arith.constant dense<0.000000e+00> : vector<16x128xf32>
    %15 = tpu.matmul %13, %14, %cst_10 {dimension_numbers = #tpu.dot_dimension_numbers<[1], [0], [0], [1], [0, 0, 1, 1], [], []>} : vector<16x1024xbf16>, vector<1024x128xbf16>, vector<16x128xf32> -> vector<16x128xf32>
    %c0_11 = arith.constant 0 : index
    %c0_12 = arith.constant 0 : index
    %16 = vector.load %arg5[%c0_11, %c0_12] : memref<1x128xf32, #tpu.memory_space<vmem>>, vector<1x128xf32>
    %17 = vector.broadcast %16 : vector<1x128xf32> to vector<16x128xf32>
    %18 = arith.addf %15, %17 : vector<16x128xf32>
    %cst_13 = arith.constant 5.000000e-01 : f32
    %19 = vector.broadcast %cst_13 : f32 to vector<16x128xf32>
    %20 = arith.mulf %19, %18 : vector<16x128xf32>
    %21 = math.tanh %20 : vector<16x128xf32>
    %cst_14 = arith.constant 5.000000e-01 : f32
    %22 = vector.broadcast %cst_14 : f32 to vector<16x128xf32>
    %23 = arith.mulf %22, %21 : vector<16x128xf32>
    %cst_15 = arith.constant 5.000000e-01 : f32
    %24 = vector.broadcast %cst_15 : f32 to vector<16x128xf32>
    %25 = arith.addf %23, %24 : vector<16x128xf32>
    %26 = arith.truncf %25 : vector<16x128xf32> to vector<16x128xbf16>
    %c0_16 = arith.constant 0 : index
    %c0_17 = arith.constant 0 : index
    %27 = vector.load %arg6[%c0_16, %c0_17] : memref<128x128xbf16, #tpu.memory_space<vmem>>, vector<128x128xbf16>
    %cst_18 = arith.constant dense<0.000000e+00> : vector<16x128xf32>
    %28 = tpu.matmul %26, %27, %cst_18 {dimension_numbers = #tpu.dot_dimension_numbers<[1], [0], [0], [1], [0, 0, 1, 1], [], []>} : vector<16x128xbf16>, vector<128x128xbf16>, vector<16x128xf32> -> vector<16x128xf32>
    %c0_19 = arith.constant 0 : index
    %c0_20 = arith.constant 0 : index
    %29 = vector.load %arg7[%c0_19, %c0_20] : memref<1x128xf32, #tpu.memory_space<vmem>>, vector<1x128xf32>
    %30 = vector.broadcast %29 : vector<1x128xf32> to vector<16x128xf32>
    %31 = arith.addf %28, %30 : vector<16x128xf32>
    %cst_21 = arith.constant 5.000000e-01 : f32
    %32 = vector.broadcast %cst_21 : f32 to vector<16x128xf32>
    %33 = arith.mulf %32, %31 : vector<16x128xf32>
    %34 = math.tanh %33 : vector<16x128xf32>
    %cst_22 = arith.constant 5.000000e-01 : f32
    %35 = vector.broadcast %cst_22 : f32 to vector<16x128xf32>
    %36 = arith.mulf %35, %34 : vector<16x128xf32>
    %cst_23 = arith.constant 5.000000e-01 : f32
    %37 = vector.broadcast %cst_23 : f32 to vector<16x128xf32>
    %38 = arith.addf %36, %37 : vector<16x128xf32>
    %39 = arith.truncf %38 : vector<16x128xf32> to vector<16x128xbf16>
    %c0_24 = arith.constant 0 : index
    %c0_25 = arith.constant 0 : index
    %40 = vector.load %arg8[%c0_24, %c0_25] : memref<128x128xbf16, #tpu.memory_space<vmem>>, vector<128x128xbf16>
    %cst_26 = arith.constant dense<0.000000e+00> : vector<16x128xf32>
    %41 = tpu.matmul %39, %40, %cst_26 {dimension_numbers = #tpu.dot_dimension_numbers<[1], [0], [0], [1], [0, 0, 1, 1], [], []>} : vector<16x128xbf16>, vector<128x128xbf16>, vector<16x128xf32> -> vector<16x128xf32>
    %c0_27 = arith.constant 0 : index
    %c0_28 = arith.constant 0 : index
    %42 = vector.load %arg9[%c0_27, %c0_28] : memref<1x128xf32, #tpu.memory_space<vmem>>, vector<1x128xf32>
    %43 = vector.broadcast %42 : vector<1x128xf32> to vector<16x128xf32>
    %44 = arith.addf %41, %43 : vector<16x128xf32>
    %cst_29 = arith.constant 5.000000e-01 : f32
    %45 = vector.broadcast %cst_29 : f32 to vector<16x128xf32>
    %46 = arith.mulf %45, %44 : vector<16x128xf32>
    %47 = math.tanh %46 : vector<16x128xf32>
    %cst_30 = arith.constant 5.000000e-01 : f32
    %48 = vector.broadcast %cst_30 : f32 to vector<16x128xf32>
    %49 = arith.mulf %48, %47 : vector<16x128xf32>
    %cst_31 = arith.constant 5.000000e-01 : f32
    %50 = vector.broadcast %cst_31 : f32 to vector<16x128xf32>
    %51 = arith.addf %49, %50 : vector<16x128xf32>
    %52 = arith.truncf %51 : vector<16x128xf32> to vector<16x128xbf16>
    %c0_32 = arith.constant 0 : index
    %c0_33 = arith.constant 0 : index
    %53 = vector.load %arg10[%c0_32, %c0_33] : memref<128x1024xbf16, #tpu.memory_space<vmem>>, vector<128x1024xbf16>
    %cst_34 = arith.constant dense<0.000000e+00> : vector<16x1024xf32>
    %54 = tpu.matmul %52, %53, %cst_34 {dimension_numbers = #tpu.dot_dimension_numbers<[1], [0], [0], [1], [0, 0, 1, 1], [], []>} : vector<16x128xbf16>, vector<128x1024xbf16>, vector<16x1024xf32> -> vector<16x1024xf32>
    %c0_35 = arith.constant 0 : index
    %c0_36 = arith.constant 0 : index
    %55 = vector.load %arg11[%c0_35, %c0_36] : memref<1x1024xf32, #tpu.memory_space<vmem>>, vector<1x1024xf32>
    %56 = vector.broadcast %55 : vector<1x1024xf32> to vector<16x1024xf32>
    %57 = arith.addf %54, %56 : vector<16x1024xf32>
    %cst_37 = arith.constant 5.000000e-01 : f32
    %58 = vector.broadcast %cst_37 : f32 to vector<16x1024xf32>
    %59 = arith.mulf %58, %57 : vector<16x1024xf32>
    %60 = math.tanh %59 : vector<16x1024xf32>
    %cst_38 = arith.constant 5.000000e-01 : f32
    %61 = vector.broadcast %cst_38 : f32 to vector<16x1024xf32>
    %62 = arith.mulf %61, %60 : vector<16x1024xf32>
    %cst_39 = arith.constant 5.000000e-01 : f32
    %63 = vector.broadcast %cst_39 : f32 to vector<16x1024xf32>
    %64 = arith.addf %62, %63 : vector<16x1024xf32>
    %65 = arith.truncf %64 : vector<16x1024xf32> to vector<16x1024xbf16>
    %c0_40 = arith.constant 0 : index
    %c0_41 = arith.constant 0 : index
    %66 = vector.load %arg12[%c0_40, %c0_41] : memref<1024x192xbf16, #tpu.memory_space<vmem>>, vector<1024x192xbf16>
    %cst_42 = arith.constant dense<0.000000e+00> : vector<16x192xf32>
    %67 = tpu.matmul %65, %66, %cst_42 {dimension_numbers = #tpu.dot_dimension_numbers<[1], [0], [0], [1], [0, 0, 1, 1], [], []>} : vector<16x1024xbf16>, vector<1024x192xbf16>, vector<16x192xf32> -> vector<16x192xf32>
    %c0_43 = arith.constant 0 : index
    %c0_44 = arith.constant 0 : index
    %68 = vector.load %arg13[%c0_43, %c0_44] : memref<1x192xf32, #tpu.memory_space<vmem>>, vector<1x192xf32>
    %69 = vector.broadcast %68 : vector<1x192xf32> to vector<16x192xf32>
    %70 = arith.addf %67, %69 : vector<16x192xf32>
    %cst_45 = arith.constant 5.000000e-01 : f32
    %71 = vector.broadcast %cst_45 : f32 to vector<16x192xf32>
    %72 = arith.mulf %71, %70 : vector<16x192xf32>
    %73 = math.tanh %72 : vector<16x192xf32>
    %cst_46 = arith.constant 5.000000e-01 : f32
    %74 = vector.broadcast %cst_46 : f32 to vector<16x192xf32>
    %75 = arith.mulf %74, %73 : vector<16x192xf32>
    %cst_47 = arith.constant 5.000000e-01 : f32
    %76 = vector.broadcast %cst_47 : f32 to vector<16x192xf32>
    %77 = arith.addf %75, %76 : vector<16x192xf32>
    %78 = arith.truncf %77 : vector<16x192xf32> to vector<16x192xbf16>
    %c0_48 = arith.constant 0 : index
    %c0_49 = arith.constant 0 : index
    %79 = vector.load %arg14[%c0_48, %c0_49] : memref<16x192xbf16, #tpu.memory_space<vmem>>, vector<16x192xbf16>
    tpu.vector_store %arg14[%c0_48, %c0_49], %78 {strides = array<i32>} : memref<16x192xbf16, #tpu.memory_space<vmem>>, vector<16x192xbf16>,
    return
  }
  func.func @transform_0(%arg0: i32) -> (i32, i32) {
    %c0_i32 = arith.constant 0 : i32
    %c0_i32_0 = arith.constant 0 : i32
    return %arg0, %c0_i32 : i32, i32
  }
  func.func @transform_1(%arg0: i32) -> (i32, i32) {
    %c0_i32 = arith.constant 0 : i32
    %c0_i32_0 = arith.constant 0 : i32
    %c0_i32_1 = arith.constant 0 : i32
    return %c0_i32, %c0_i32_0 : i32, i32
  }
  func.func @transform_2(%arg0: i32) -> (i32, i32) {
    %c0_i32 = arith.constant 0 : i32
    %c0_i32_0 = arith.constant 0 : i32
    %c0_i32_1 = arith.constant 0 : i32
    return %c0_i32, %c0_i32_0 : i32, i32
  }
  func.func @transform_3(%arg0: i32) -> (i32, i32) {
    %c0_i32 = arith.constant 0 : i32
    %c0_i32_0 = arith.constant 0 : i32
    %c0_i32_1 = arith.constant 0 : i32
    return %c0_i32, %c0_i32_0 : i32, i32
  }
  func.func @transform_4(%arg0: i32) -> (i32, i32) {
    %c0_i32 = arith.constant 0 : i32
    %c0_i32_0 = arith.constant 0 : i32
    %c0_i32_1 = arith.constant 0 : i32
    return %c0_i32, %c0_i32_0 : i32, i32
  }
  func.func @transform_5(%arg0: i32) -> (i32, i32) {
    %c0_i32 = arith.constant 0 : i32
    %c0_i32_0 = arith.constant 0 : i32
    %c0_i32_1 = arith.constant 0 : i32
    return %c0_i32, %c0_i32_0 : i32, i32
  }
  func.func @transform_6(%arg0: i32) -> (i32, i32) {
    %c0_i32 = arith.constant 0 : i32
    %c0_i32_0 = arith.constant 0 : i32
    %c0_i32_1 = arith.constant 0 : i32
    return %c0_i32, %c0_i32_0 : i32, i32
  }
  func.func @transform_7(%arg0: i32) -> (i32, i32) {
    %c0_i32 = arith.constant 0 : i32
    %c0_i32_0 = arith.constant 0 : i32
    %c0_i32_1 = arith.constant 0 : i32
    return %c0_i32, %c0_i32_0 : i32, i32
  }
  func.func @transform_8(%arg0: i32) -> (i32, i32) {
    %c0_i32 = arith.constant 0 : i32
    %c0_i32_0 = arith.constant 0 : i32
    %c0_i32_1 = arith.constant 0 : i32
    return %c0_i32, %c0_i32_0 : i32, i32
  }
  func.func @transform_9(%arg0: i32) -> (i32, i32) {
    %c0_i32 = arith.constant 0 : i32
    %c0_i32_0 = arith.constant 0 : i32
    %c0_i32_1 = arith.constant 0 : i32
    return %c0_i32, %c0_i32_0 : i32, i32
  }
  func.func @transform_10(%arg0: i32) -> (i32, i32) {
    %c0_i32 = arith.constant 0 : i32
    %c0_i32_0 = arith.constant 0 : i32
    %c0_i32_1 = arith.constant 0 : i32
    return %c0_i32, %c0_i32_0 : i32, i32
  }
  func.func @transform_11(%arg0: i32) -> (i32, i32) {
    %c0_i32 = arith.constant 0 : i32
    %c0_i32_0 = arith.constant 0 : i32
    %c0_i32_1 = arith.constant 0 : i32
    return %c0_i32, %c0_i32_0 : i32, i32
  }
  func.func @transform_12(%arg0: i32) -> (i32, i32) {
    %c0_i32 = arith.constant 0 : i32
    %c0_i32_0 = arith.constant 0 : i32
    %c0_i32_1 = arith.constant 0 : i32
    return %c0_i32, %c0_i32_0 : i32, i32
  }
  func.func @transform_13(%arg0: i32) -> (i32, i32) {
    %c0_i32 = arith.constant 0 : i32
    %c0_i32_0 = arith.constant 0 : i32
    return %arg0, %c0_i32 : i32, i32
  }
}

</mosaic_0001>

<llo_original>
// kernel: panitznet_forward.1
$region0: #{panitznet_forward.1}
  #allocation0 [shape = 'u32[]', space=smem, size = 0x4, offset = 0x4, fixed_abs, tag = 'smem constant byte address 0x4 - core index']
  #allocation1 [shape = 'u32[144,128]{1,0:T(1,128)}', space=vmem, size = 0x12000, scoped, tag = 'internal scratch']
  %s0 = inlined_call_operand.vmem [shape: bf16[16,192], index: 0, kind: input, shape index: {}]
  %s1 = inlined_call_operand.vmem [shape: bf16[192,1024], index: 1, kind: input, shape index: {}]
  %s2 = inlined_call_operand.vmem [shape: f32[1,1024], index: 2, kind: input, shape index: {}]
  %s3 = inlined_call_operand.vmem [shape: bf16[1024,128], index: 3, kind: input, shape index: {}]
  %s4 = inlined_call_operand.vmem [shape: f32[1,128], index: 4, kind: input, shape index: {}]
  %s5 = inlined_call_operand.hbm [shape: bf16[128,128], index: 5, kind: input, shape index: {}]
  %s6 = inlined_call_operand.vmem [shape: f32[1,128], index: 6, kind: input, shape index: {}]
  %s7 = inlined_call_operand.hbm [shape: bf16[128,128], index: 7, kind: input, shape index: {}]
  %s8 = inlined_call_operand.vmem [shape: f32[1,128], index: 8, kind: input, shape index: {}]
  %s9 = inlined_call_operand.vmem [shape: bf16[128,1024], index: 9, kind: input, shape index: {}]
  %s10 = inlined_call_operand.vmem [shape: f32[1,1024], index: 10, kind: input, shape index: {}]
  %s11 = inlined_call_operand.vmem [shape: bf16[1024,192], index: 11, kind: input, shape index: {}]
  %s12 = inlined_call_operand.vmem [shape: f32[1,192], index: 12, kind: input, shape index: {}]
  %s13 = inlined_call_operand.vmem [shape: bf16[16,192], index: 13, kind: output, shape index: {}]
  %s14 = sld [smem:[#allocation0]]
  $region70: #{panitznet_forward.1} parent=0
    _
  %s16 = ssub.s32 1, %s14
  %s17 = scalar_select 0, %s16, %s14
  $region1: #{panitznet_forward.1} parent=0
    #allocation2 [shape = 'u8[32768]{0}', space=vmem, size = 0x8000, scoped, tag = 'input window, operand 5, single buffered']
    #allocation3 [shape = 's32[1]{0}', space=sflag, size = 0x4, scoped, tag = 'scoped memory for panitznet_forward.1']
    #allocation4 [shape = 'u8[32768]{0}', space=vmem, size = 0x8000, scoped, tag = 'input window, operand 7, single buffered']
    #allocation5 [shape = 's32[1]{0}', space=sflag, size = 0x4, scoped, tag = 'scoped memory for panitznet_forward.1']
    %18 = vsyncpa [#allocation3], 0
    %19 = vsyncpa [#allocation5], 0
    // Predicated region
    $region2: #{panitznet_forward.1} parent=1 // pred_check
      _
    $region3: #{panitznet_forward.1} parent=1 // pred_check_branch
      %21 = sbr.rel (0) target = $region5
    $region4: #{panitznet_forward.1} parent=1 // pred_region
      _
    $region5: #{panitznet_forward.1} parent=1 // pred_fallthru
      _
    // Predicated region
    $region6: #{panitznet_forward.1} parent=1 // pred_check
      _
    $region7: #{panitznet_forward.1} parent=1 // pred_check_branch
      %23 = sbr.rel (0) target = $region9
    $region8: #{panitznet_forward.1} parent=1 // pred_region
      _
    $region9: #{panitznet_forward.1} parent=1 // pred_fallthru
      _
    // Predicated region
    $region10: #{panitznet_forward.1} parent=1 // pred_check
      _
    $region11: #{panitznet_forward.1} parent=1 // pred_check_branch
      %25 = sbr.rel (0) target = $region13
    $region12: #{panitznet_forward.1} parent=1 // pred_region
      _
    $region13: #{panitznet_forward.1} parent=1 // pred_fallthru
      _
    // Predicated region
    $region14: #{panitznet_forward.1} parent=1 // pred_check
      _
    $region15: #{panitznet_forward.1} parent=1 // pred_check_branch
      %27 = sbr.rel (0) target = $region17
    $region16: #{panitznet_forward.1} parent=1 // pred_region
      _
    $region17: #{panitznet_forward.1} parent=1 // pred_fallthru
      _
    // Predicated region
    $region18: #{panitznet_forward.1} parent=1 // pred_check
      _
    $region19: #{panitznet_forward.1} parent=1 // pred_check_branch
      %29 = sbr.rel (0) target = $region21
    $region20: #{panitznet_forward.1} parent=1 // pred_region
      _
    $region21: #{panitznet_forward.1} parent=1 // pred_fallthru
      _
    // Predicated region
    $region22: #{panitznet_forward.1} parent=1 // pred_check
      _
    $region23: #{panitznet_forward.1} parent=1 // pred_check_branch
      %31 = sbr.rel (0) target = $region25
    $region24: #{panitznet_forward.1} parent=1 // pred_region
      %s33 = ssub.s32 1024, 1024
      %34 = vsyncadd [#allocation3], %s33
      %s35 = sshll.u32 [#allocation2], 4
      %s36 = int_to_ptr.vmem [resolvable:$true] %s35
      %41 = dma.hbm_to_vmem [thread:$0]  %s5, 1024, %s36, [#allocation3], 64, 64, 4
    $region25: #{panitznet_forward.1} parent=1 // pred_fallthru
      _
    // Predicated region
    $region26: #{panitznet_forward.1} parent=1 // pred_check
      _
    $region27: #{panitznet_forward.1} parent=1 // pred_check_branch
      %43 = sbr.rel (0) target = $region29
    $region28: #{panitznet_forward.1} parent=1 // pred_region
      _
    $region29: #{panitznet_forward.1} parent=1 // pred_fallthru
      _
    // Predicated region
    $region30: #{panitznet_forward.1} parent=1 // pred_check
      _
    $region31: #{panitznet_forward.1} parent=1 // pred_check_branch
      %45 = sbr.rel (0) target = $region33
    $region32: #{panitznet_forward.1} parent=1 // pred_region
      %s47 = ssub.s32 1024, 1024
      %48 = vsyncadd [#allocation5], %s47
      %s49 = sshll.u32 [#allocation4], 4
      %s50 = int_to_ptr.vmem [resolvable:$true] %s49
      %55 = dma.hbm_to_vmem [thread:$0]  %s7, 1024, %s50, [#allocation5], 64, 64, 4
    $region33: #{panitznet_forward.1} parent=1 // pred_fallthru
      _
    // Predicated region
    $region34: #{panitznet_forward.1} parent=1 // pred_check
      _
    $region35: #{panitznet_forward.1} parent=1 // pred_check_branch
      %57 = sbr.rel (0) target = $region37
    $region36: #{panitznet_forward.1} parent=1 // pred_region
      _
    $region37: #{panitznet_forward.1} parent=1 // pred_fallthru
      _
    // Predicated region
    $region38: #{panitznet_forward.1} parent=1 // pred_check
      _
    $region39: #{panitznet_forward.1} parent=1 // pred_check_branch
      %59 = sbr.rel (0) target = $region41
    $region40: #{panitznet_forward.1} parent=1 // pred_region
      _
    $region41: #{panitznet_forward.1} parent=1 // pred_fallthru
      _
    // Predicated region
    $region42: #{panitznet_forward.1} parent=1 // pred_check
      _
    $region43: #{panitznet_forward.1} parent=1 // pred_check_branch
      %61 = sbr.rel (0) target = $region45
    $region44: #{panitznet_forward.1} parent=1 // pred_region
      _
    $region45: #{panitznet_forward.1} parent=1 // pred_fallthru
      _
    // Predicated region
    $region46: #{panitznet_forward.1} parent=1 // pred_check
      _
    $region47: #{panitznet_forward.1} parent=1 // pred_check_branch
      %63 = sbr.rel (0) target = $region49
    $region48: #{panitznet_forward.1} parent=1 // pred_region
      _
    $region49: #{panitznet_forward.1} parent=1 // pred_fallthru
      _
    // Predicated region
    $region50: #{panitznet_forward.1} parent=1 // pred_check
      _
    $region51: #{panitznet_forward.1} parent=1 // pred_check_branch
      %65 = sbr.rel (0) target = $region53
    $region52: #{panitznet_forward.1} parent=1 // pred_region
      _
    $region53: #{panitznet_forward.1} parent=1 // pred_fallthru
      _
    // Predicated region
    $region54: #{panitznet_forward.1} parent=1 // pred_check
      _
    $region55: #{panitznet_forward.1} parent=1 // pred_check_branch
      %67 = sbr.rel (0) target = $region57
    $region56: #{panitznet_forward.1} parent=1 // pred_region
      %68 = dma.done [#allocation3], 1024
    $region57: #{panitznet_forward.1} parent=1 // pred_fallthru
      _
    // Predicated region
    $region58: #{panitznet_forward.1} parent=1 // pred_check
      _
    $region59: #{panitznet_forward.1} parent=1 // pred_check_branch
      %70 = sbr.rel (0) target = $region61
    $region60: #{panitznet_forward.1} parent=1 // pred_region
      %71 = dma.done [#allocation5], 1024
    $region61: #{panitznet_forward.1} parent=1 // pred_fallthru
      _
    %v73 = vld [vmem:[%s0] sm:$0xff]
    %v74 = vld [vmem:[%s0 + $0x8] sm:$0xff]
    %v75 = vld [vmem:[%s1] sm:$0xff]
    %v76 = vld [vmem:[%s1 + $0x8] sm:$0xff]
    %v77 = vld [vmem:[%s1 + $0x10] sm:$0xff]
    %v78 = vld [vmem:[%s1 + $0x18] sm:$0xff]
    %v79 = vld [vmem:[%s1 + $0x20] sm:$0xff]
    %v80 = vld [vmem:[%s1 + $0x28] sm:$0xff]
    %v81 = vld [vmem:[%s1 + $0x30] sm:$0xff]
    %v82 = vld [vmem:[%s1 + $0x38] sm:$0xff]
    %v83 = vld [vmem:[%s1 + $0x40] sm:$0xff]
    %v84 = vld [vmem:[%s1 + $0x48] sm:$0xff]
    %v85 = vld [vmem:[%s1 + $0x50] sm:$0xff]
    %v86 = vld [vmem:[%s1 + $0x58] sm:$0xff]
    %v87 = vld [vmem:[%s1 + $0x60] sm:$0xff]
    %v88 = vld [vmem:[%s1 + $0x68] sm:$0xff]
    %v89 = vld [vmem:[%s1 + $0x70] sm:$0xff]
    %v90 = vld [vmem:[%s1 + $0x78] sm:$0xff]
    %v91 = vld [vmem:[%s1 + $0x80] sm:$0xff]
    %v92 = vld [vmem:[%s1 + $0x88] sm:$0xff]
    %v93 = vld [vmem:[%s1 + $0x90] sm:$0xff]
    %v94 = vld [vmem:[%s1 + $0x98] sm:$0xff]
    %v95 = vld [vmem:[%s1 + $0xa0] sm:$0xff]
    %v96 = vld [vmem:[%s1 + $0xa8] sm:$0xff]
    %v97 = vld [vmem:[%s1 + $0xb0] sm:$0xff]
    %v98 = vld [vmem:[%s1 + $0xb8] sm:$0xff]
    %v99 = vld [vmem:[%s1 + $0xc0] sm:$0xff]
    %v100 = vld [vmem:[%s1 + $0xc8] sm:$0xff]
    %v101 = vld [vmem:[%s1 + $0xd0] sm:$0xff]
    %v102 = vld [vmem:[%s1 + $0xd8] sm:$0xff]
    %v103 = vld [vmem:[%s1 + $0xe0] sm:$0xff]
    %v104 = vld [vmem:[%s1 + $0xe8] sm:$0xff]
    %v105 = vld [vmem:[%s1 + $0xf0] sm:$0xff]
    %v106 = vld [vmem:[%s1 + $0xf8] sm:$0xff]
    %v107 = vld [vmem:[%s1 + $0x100] sm:$0xff]
    %v108 = vld [vmem:[%s1 + $0x108] sm:$0xff]
    %v109 = vld [vmem:[%s1 + $0x110] sm:$0xff]
    %v110 = vld [vmem:[%s1 + $0x118] sm:$0xff]
    %v111 = vld [vmem:[%s1 + $0x120] sm:$0xff]
    %v112 = vld [vmem:[%s1 + $0x128] sm:$0xff]
    %v113 = vld [vmem:[%s1 + $0x130] sm:$0xff]
    %v114 = vld [vmem:[%s1 + $0x138] sm:$0xff]
    %v115 = vld [vmem:[%s1 + $0x140] sm:$0xff]
    %v116 = vld [vmem:[%s1 + $0x148] sm:$0xff]
    %v117 = vld [vmem:[%s1 + $0x150] sm:$0xff]
    %v118 = vld [vmem:[%s1 + $0x158] sm:$0xff]
    %v119 = vld [vmem:[%s1 + $0x160] sm:$0xff]
    %v120 = vld [vmem:[%s1 + $0x168] sm:$0xff]
    %v121 = vld [vmem:[%s1 + $0x170] sm:$0xff]
    %v122 = vld [vmem:[%s1 + $0x178] sm:$0xff]
    %v123 = vld [vmem:[%s1 + $0x180] sm:$0xff]
    %v124 = vld [vmem:[%s1 + $0x188] sm:$0xff]
    %v125 = vld [vmem:[%s1 + $0x190] sm:$0xff]
    %v126 = vld [vmem:[%s1 + $0x198] sm:$0xff]
    %v127 = vld [vmem:[%s1 + $0x1a0] sm:$0xff]
    %v128 = vld [vmem:[%s1 + $0x1a8] sm:$0xff]
    %v129 = vld [vmem:[%s1 + $0x1b0] sm:$0xff]
    %v130 = vld [vmem:[%s1 + $0x1b8] sm:$0xff]
    %v131 = vld [vmem:[%s1 + $0x1c0] sm:$0xff]
    %v132 = vld [vmem:[%s1 + $0x1c8] sm:$0xff]
    %v133 = vld [vmem:[%s1 + $0x1d0] sm:$0xff]
    %v134 = vld [vmem:[%s1 + $0x1d8] sm:$0xff]
    %v135 = vld [vmem:[%s1 + $0x1e0] sm:$0xff]
    %v136 = vld [vmem:[%s1 + $0x1e8] sm:$0xff]
    %v137 = vld [vmem:[%s1 + $0x1f0] sm:$0xff]
    %v138 = vld [vmem:[%s1 + $0x1f8] sm:$0xff]
    %v139 = vld [vmem:[%s1 + $0x200] sm:$0xff]
    %v140 = vld [vmem:[%s1 + $0x208] sm:$0xff]
    %v141 = vld [vmem:[%s1 + $0x210] sm:$0xff]
    %v142 = vld [vmem:[%s1 + $0x218] sm:$0xff]
    %v143 = vld [vmem:[%s1 + $0x220] sm:$0xff]
    %v144 = vld [vmem:[%s1 + $0x228] sm:$0xff]
    %v145 = vld [vmem:[%s1 + $0x230] sm:$0xff]
    %v146 = vld [vmem:[%s1 + $0x238] sm:$0xff]
    %v147 = vld [vmem:[%s1 + $0x240] sm:$0xff]
    %v148 = vld [vmem:[%s1 + $0x248] sm:$0xff]
    %v149 = vld [vmem:[%s1 + $0x250] sm:$0xff]
    %v150 = vld [vmem:[%s1 + $0x258] sm:$0xff]
    %v151 = vld [vmem:[%s1 + $0x260] sm:$0xff]
    %v152 = vld [vmem:[%s1 + $0x268] sm:$0xff]
    %v153 = vld [vmem:[%s1 + $0x270] sm:$0xff]
    %v154 = vld [vmem:[%s1 + $0x278] sm:$0xff]
    %v155 = vld [vmem:[%s1 + $0x280] sm:$0xff]
    %v156 = vld [vmem:[%s1 + $0x288] sm:$0xff]
    %v157 = vld [vmem:[%s1 + $0x290] sm:$0xff]
    %v158 = vld [vmem:[%s1 + $0x298] sm:$0xff]
    %v159 = vld [vmem:[%s1 + $0x2a0] sm:$0xff]
    %v160 = vld [vmem:[%s1 + $0x2a8] sm:$0xff]
    %v161 = vld [vmem:[%s1 + $0x2b0] sm:$0xff]
    %v162 = vld [vmem:[%s1 + $0x2b8] sm:$0xff]
    %v163 = vld [vmem:[%s1 + $0x2c0] sm:$0xff]
    %v164 = vld [vmem:[%s1 + $0x2c8] sm:$0xff]
    %v165 = vld [vmem:[%s1 + $0x2d0] sm:$0xff]
    %v166 = vld [vmem:[%s1 + $0x2d8] sm:$0xff]
    %v167 = vld [vmem:[%s1 + $0x2e0] sm:$0xff]
    %v168 = vld [vmem:[%s1 + $0x2e8] sm:$0xff]
    %v169 = vld [vmem:[%s1 + $0x2f0] sm:$0xff]
    %v170 = vld [vmem:[%s1 + $0x2f8] sm:$0xff]
    %v171 = vld [vmem:[%s2] sm:$0xff]
    %v173 = vlaneseq
    %v174 = vshrl.u32 %v173, 7
    %v175 = vsub.s32 0, %v174
    %v176 = vrot.slane %v171, %v175
    %v177 = vlaneseq
    %v178 = vshrl.u32 %v177, 7
    %v179 = vsub.s32 1, %v178
    %v180 = vrot.slane %v171, %v179
    %v181 = vlaneseq
    %v182 = vshrl.u32 %v181, 7
    %v183 = vsub.s32 2, %v182
    %v184 = vrot.slane %v171, %v183
    %v185 = vlaneseq
    %v186 = vshrl.u32 %v185, 7
    %v187 = vsub.s32 3, %v186
    %v188 = vrot.slane %v171, %v187
    %v189 = vlaneseq
    %v190 = vshrl.u32 %v189, 7
    %v191 = vsub.s32 4, %v190
    %v192 = vrot.slane %v171, %v191
    %v193 = vlaneseq
    %v194 = vshrl.u32 %v193, 7
    %v195 = vsub.s32 5, %v194
    %v196 = vrot.slane %v171, %v195
    %v197 = vlaneseq
    %v198 = vshrl.u32 %v197, 7
    %v199 = vsub.s32 6, %v198
    %v200 = vrot.slane %v171, %v199
    %v201 = vlaneseq
    %v202 = vshrl.u32 %v201, 7
    %v203 = vsub.s32 7, %v202
    %v204 = vrot.slane %v171, %v203
    %v215 = vunpack.c.l.b16 %v73
    %v216 = vunpack.c.h.b16 %v73
    %v217 = vunpack.c.l.b16 %v74
    %v218 = vunpack.c.h.b16 %v74
    %v219 = vpack.c.b16 %v217, %v215
    %v220 = vpack.c.b16 %v218, %v216
    %v318 = vunpack.c.l.b16 %v75
    %v319 = vunpack.c.h.b16 %v75
    %v320 = vunpack.c.l.b16 %v76
    %v321 = vunpack.c.h.b16 %v76
    %v322 = vunpack.c.l.b16 %v77
    %v323 = vunpack.c.h.b16 %v77
    %v324 = vunpack.c.l.b16 %v78
    %v325 = vunpack.c.h.b16 %v78
    %v326 = vunpack.c.l.b16 %v79
    %v327 = vunpack.c.h.b16 %v79
    %v328 = vunpack.c.l.b16 %v80
    %v329 = vunpack.c.h.b16 %v80
    %v330 = vunpack.c.l.b16 %v81
    %v331 = vunpack.c.h.b16 %v81
    %v332 = vunpack.c.l.b16 %v82
    %v333 = vunpack.c.h.b16 %v82
    %v334 = vunpack.c.l.b16 %v83
    %v335 = vunpack.c.h.b16 %v83
    %v336 = vunpack.c.l.b16 %v84
    %v337 = vunpack.c.h.b16 %v84
    %v338 = vunpack.c.l.b16 %v85
    %v339 = vunpack.c.h.b16 %v85
    %v340 = vunpack.c.l.b16 %v86
    %v341 = vunpack.c.h.b16 %v86
    %v342 = vunpack.c.l.b16 %v87
    %v343 = vunpack.c.h.b16 %v87
    %v344 = vunpack.c.l.b16 %v88
    %v345 = vunpack.c.h.b16 %v88
    %v346 = vunpack.c.l.b16 %v89
    %v347 = vunpack.c.h.b16 %v89
    %v348 = vunpack.c.l.b16 %v90
    %v349 = vunpack.c.h.b16 %v90
    %v350 = vunpack.c.l.b16 %v91
    %v351 = vunpack.c.h.b16 %v91
    %v352 = vunpack.c.l.b16 %v92
    %v353 = vunpack.c.h.b16 %v92
    %v354 = vunpack.c.l.b16 %v93
    %v355 = vunpack.c.h.b16 %v93
    %v356 = vunpack.c.l.b16 %v94
    %v357 = vunpack.c.h.b16 %v94
    %v358 = vunpack.c.l.b16 %v95
    %v359 = vunpack.c.h.b16 %v95
    %v360 = vunpack.c.l.b16 %v96
    %v361 = vunpack.c.h.b16 %v96
    %v362 = vunpack.c.l.b16 %v97
    %v363 = vunpack.c.h.b16 %v97
    %v364 = vunpack.c.l.b16 %v98
    %v365 = vunpack.c.h.b16 %v98
    %v366 = vunpack.c.l.b16 %v99
    %v367 = vunpack.c.h.b16 %v99
    %v368 = vunpack.c.l.b16 %v100
    %v369 = vunpack.c.h.b16 %v100
    %v370 = vunpack.c.l.b16 %v101
    %v371 = vunpack.c.h.b16 %v101
    %v372 = vunpack.c.l.b16 %v102
    %v373 = vunpack.c.h.b16 %v102
    %v374 = vunpack.c.l.b16 %v103
    %v375 = vunpack.c.h.b16 %v103
    %v376 = vunpack.c.l.b16 %v104
    %v377 = vunpack.c.h.b16 %v104
    %v378 = vunpack.c.l.b16 %v105
    %v379 = vunpack.c.h.b16 %v105
    %v380 = vunpack.c.l.b16 %v106
    %v381 = vunpack.c.h.b16 %v106
    %v382 = vunpack.c.l.b16 %v107
    %v383 = vunpack.c.h.b16 %v107
    %v384 = vunpack.c.l.b16 %v108
    %v385 = vunpack.c.h.b16 %v108
    %v386 = vunpack.c.l.b16 %v109
    %v387 = vunpack.c.h.b16 %v109
    %v388 = vunpack.c.l.b16 %v110
    %v389 = vunpack.c.h.b16 %v110
    %v390 = vunpack.c.l.b16 %v111
    %v391 = vunpack.c.h.b16 %v111
    %v392 = vunpack.c.l.b16 %v112
    %v393 = vunpack.c.h.b16 %v112
    %v394 = vunpack.c.l.b16 %v113
    %v395 = vunpack.c.h.b16 %v113
    %v396 = vunpack.c.l.b16 %v114
    %v397 = vunpack.c.h.b16 %v114
    %v398 = vunpack.c.l.b16 %v115
    %v399 = vunpack.c.h.b16 %v115
    %v400 = vunpack.c.l.b16 %v116
    %v401 = vunpack.c.h.b16 %v116
    %v402 = vunpack.c.l.b16 %v117
    %v403 = vunpack.c.h.b16 %v117
    %v404 = vunpack.c.l.b16 %v118
    %v405 = vunpack.c.h.b16 %v118
    %v406 = vunpack.c.l.b16 %v119
    %v407 = vunpack.c.h.b16 %v119
    %v408 = vunpack.c.l.b16 %v120
    %v409 = vunpack.c.h.b16 %v120
    %v410 = vunpack.c.l.b16 %v121
    %v411 = vunpack.c.h.b16 %v121
    %v412 = vunpack.c.l.b16 %v122
    %v413 = vunpack.c.h.b16 %v122
    %v414 = vunpack.c.l.b16 %v123
    %v415 = vunpack.c.h.b16 %v123
    %v416 = vunpack.c.l.b16 %v124
    %v417 = vunpack.c.h.b16 %v124
    %v418 = vunpack.c.l.b16 %v125
    %v419 = vunpack.c.h.b16 %v125
    %v420 = vunpack.c.l.b16 %v126
    %v421 = vunpack.c.h.b16 %v126
    %v422 = vunpack.c.l.b16 %v127
    %v423 = vunpack.c.h.b16 %v127
    %v424 = vunpack.c.l.b16 %v128
    %v425 = vunpack.c.h.b16 %v128
    %v426 = vunpack.c.l.b16 %v129
    %v427 = vunpack.c.h.b16 %v129
    %v428 = vunpack.c.l.b16 %v130
    %v429 = vunpack.c.h.b16 %v130
    %v430 = vunpack.c.l.b16 %v131
    %v431 = vunpack.c.h.b16 %v131
    %v432 = vunpack.c.l.b16 %v132
    %v433 = vunpack.c.h.b16 %v132
    %v434 = vunpack.c.l.b16 %v133
    %v435 = vunpack.c.h.b16 %v133
    %v436 = vunpack.c.l.b16 %v134
    %v437 = vunpack.c.h.b16 %v134
    %v438 = vunpack.c.l.b16 %v135
    %v439 = vunpack.c.h.b16 %v135
    %v440 = vunpack.c.l.b16 %v136
    %v441 = vunpack.c.h.b16 %v136
    %v442 = vunpack.c.l.b16 %v137
    %v443 = vunpack.c.h.b16 %v137
    %v444 = vunpack.c.l.b16 %v138
    %v445 = vunpack.c.h.b16 %v138
    %v446 = vunpack.c.l.b16 %v139
    %v447 = vunpack.c.h.b16 %v139
    %v448 = vunpack.c.l.b16 %v140
    %v449 = vunpack.c.h.b16 %v140
    %v450 = vunpack.c.l.b16 %v141
    %v451 = vunpack.c.h.b16 %v141
    %v452 = vunpack.c.l.b16 %v142
    %v453 = vunpack.c.h.b16 %v142
    %v454 = vunpack.c.l.b16 %v143
    %v455 = vunpack.c.h.b16 %v143
    %v456 = vunpack.c.l.b16 %v144
    %v457 = vunpack.c.h.b16 %v144
    %v458 = vunpack.c.l.b16 %v145
    %v459 = vunpack.c.h.b16 %v145
    %v460 = vunpack.c.l.b16 %v146
    %v461 = vunpack.c.h.b16 %v146
    %v462 = vunpack.c.l.b16 %v147
    %v463 = vunpack.c.h.b16 %v147
    %v464 = vunpack.c.l.b16 %v148
    %v465 = vunpack.c.h.b16 %v148
    %v466 = vunpack.c.l.b16 %v149
    %v467 = vunpack.c.h.b16 %v149
    %v468 = vunpack.c.l.b16 %v150
    %v469 = vunpack.c.h.b16 %v150
    %v470 = vunpack.c.l.b16 %v151
    %v471 = vunpack.c.h.b16 %v151
    %v472 = vunpack.c.l.b16 %v152
    %v473 = vunpack.c.h.b16 %v152
    %v474 = vunpack.c.l.b16 %v153
    %v475 = vunpack.c.h.b16 %v153
    %v476 = vunpack.c.l.b16 %v154
    %v477 = vunpack.c.h.b16 %v154
    %v478 = vunpack.c.l.b16 %v155
    %v479 = vunpack.c.h.b16 %v155
    %v480 = vunpack.c.l.b16 %v156
    %v481 = vunpack.c.h.b16 %v156
    %v482 = vunpack.c.l.b16 %v157
    %v483 = vunpack.c.h.b16 %v157
    %v484 = vunpack.c.l.b16 %v158
    %v485 = vunpack.c.h.b16 %v158
    %v486 = vunpack.c.l.b16 %v159
    %v487 = vunpack.c.h.b16 %v159
    %v488 = vunpack.c.l.b16 %v160
    %v489 = vunpack.c.h.b16 %v160
    %v490 = vunpack.c.l.b16 %v161
    %v491 = vunpack.c.h.b16 %v161
    %v492 = vunpack.c.l.b16 %v162
    %v493 = vunpack.c.h.b16 %v162
    %v494 = vunpack.c.l.b16 %v163
    %v495 = vunpack.c.h.b16 %v163
    %v496 = vunpack.c.l.b16 %v164
    %v497 = vunpack.c.h.b16 %v164
    %v498 = vunpack.c.l.b16 %v165
    %v499 = vunpack.c.h.b16 %v165
    %v500 = vunpack.c.l.b16 %v166
    %v501 = vunpack.c.h.b16 %v166
    %v502 = vunpack.c.l.b16 %v167
    %v503 = vunpack.c.h.b16 %v167
    %v504 = vunpack.c.l.b16 %v168
    %v505 = vunpack.c.h.b16 %v168
    %v506 = vunpack.c.l.b16 %v169
    %v507 = vunpack.c.h.b16 %v169
    %v508 = vunpack.c.l.b16 %v170
    %v509 = vunpack.c.h.b16 %v170
    %v510 = vpack.c.b16 %v326, %v318
    %v511 = vpack.c.b16 %v327, %v319
    %v512 = vpack.c.b16 %v328, %v320
    %v513 = vpack.c.b16 %v329, %v321
    %v514 = vpack.c.b16 %v330, %v322
    %v515 = vpack.c.b16 %v331, %v323
    %v516 = vpack.c.b16 %v332, %v324
    %v517 = vpack.c.b16 %v333, %v325
    %v518 = vpack.c.b16 %v342, %v334
    %v519 = vpack.c.b16 %v343, %v335
    %v520 = vpack.c.b16 %v344, %v336
    %v521 = vpack.c.b16 %v345, %v337
    %v522 = vpack.c.b16 %v346, %v338
    %v523 = vpack.c.b16 %v347, %v339
    %v524 = vpack.c.b16 %v348, %v340
    %v525 = vpack.c.b16 %v349, %v341
    %v526 = vpack.c.b16 %v358, %v350
    %v527 = vpack.c.b16 %v359, %v351
    %v528 = vpack.c.b16 %v360, %v352
    %v529 = vpack.c.b16 %v361, %v353
    %v530 = vpack.c.b16 %v362, %v354
    %v531 = vpack.c.b16 %v363, %v355
    %v532 = vpack.c.b16 %v364, %v356
    %v533 = vpack.c.b16 %v365, %v357
    %v534 = vpack.c.b16 %v374, %v366
    %v535 = vpack.c.b16 %v375, %v367
    %v536 = vpack.c.b16 %v376, %v368
    %v537 = vpack.c.b16 %v377, %v369
    %v538 = vpack.c.b16 %v378, %v370
    %v539 = vpack.c.b16 %v379, %v371
    %v540 = vpack.c.b16 %v380, %v372
    %v541 = vpack.c.b16 %v381, %v373
    %v542 = vpack.c.b16 %v390, %v382
    %v543 = vpack.c.b16 %v391, %v383
    %v544 = vpack.c.b16 %v392, %v384
    %v545 = vpack.c.b16 %v393, %v385
    %v546 = vpack.c.b16 %v394, %v386
    %v547 = vpack.c.b16 %v395, %v387
    %v548 = vpack.c.b16 %v396, %v388
    %v549 = vpack.c.b16 %v397, %v389
    %v550 = vpack.c.b16 %v406, %v398
    %v551 = vpack.c.b16 %v407, %v399
    %v552 = vpack.c.b16 %v408, %v400
    %v553 = vpack.c.b16 %v409, %v401
    %v554 = vpack.c.b16 %v410, %v402
    %v555 = vpack.c.b16 %v411, %v403
    %v556 = vpack.c.b16 %v412, %v404
    %v557 = vpack.c.b16 %v413, %v405
    %v558 = vpack.c.b16 %v422, %v414
    %v559 = vpack.c.b16 %v423, %v415
    %v560 = vpack.c.b16 %v424, %v416
    %v561 = vpack.c.b16 %v425, %v417
    %v562 = vpack.c.b16 %v426, %v418
    %v563 = vpack.c.b16 %v427, %v419
    %v564 = vpack.c.b16 %v428, %v420
    %v565 = vpack.c.b16 %v429, %v421
    %v566 = vpack.c.b16 %v438, %v430
    %v567 = vpack.c.b16 %v439, %v431
    %v568 = vpack.c.b16 %v440, %v432
    %v569 = vpack.c.b16 %v441, %v433
    %v570 = vpack.c.b16 %v442, %v434
    %v571 = vpack.c.b16 %v443, %v435
    %v572 = vpack.c.b16 %v444, %v436
    %v573 = vpack.c.b16 %v445, %v437
    %v574 = vpack.c.b16 %v454, %v446
    %v575 = vpack.c.b16 %v455, %v447
    %v576 = vpack.c.b16 %v456, %v448
    %v577 = vpack.c.b16 %v457, %v449
    %v578 = vpack.c.b16 %v458, %v450
    %v579 = vpack.c.b16 %v459, %v451
    %v580 = vpack.c.b16 %v460, %v452
    %v581 = vpack.c.b16 %v461, %v453
    %v582 = vpack.c.b16 %v470, %v462
    %v583 = vpack.c.b16 %v471, %v463
    %v584 = vpack.c.b16 %v472, %v464
    %v585 = vpack.c.b16 %v473, %v465
    %v586 = vpack.c.b16 %v474, %v466
    %v587 = vpack.c.b16 %v475, %v467
    %v588 = vpack.c.b16 %v476, %v468
    %v589 = vpack.c.b16 %v477, %v469
    %v590 = vpack.c.b16 %v486, %v478
    %v591 = vpack.c.b16 %v487, %v479
    %v592 = vpack.c.b16 %v488, %v480
    %v593 = vpack.c.b16 %v489, %v481
    %v594 = vpack.c.b16 %v490, %v482
    %v595 = vpack.c.b16 %v491, %v483
    %v596 = vpack.c.b16 %v492, %v484
    %v597 = vpack.c.b16 %v493, %v485
    %v598 = vpack.c.b16 %v502, %v494
    %v599 = vpack.c.b16 %v503, %v495
    %v600 = vpack.c.b16 %v504, %v496
    %v601 = vpack.c.b16 %v505, %v497
    %v602 = vpack.c.b16 %v506, %v498
    %v603 = vpack.c.b16 %v507, %v499
    %v604 = vpack.c.b16 %v508, %v500
    %v605 = vpack.c.b16 %v509, %v501
    %vm702 = vcmask 523264
    %v704 = vsel %vm702, %v220, 0
    %706 = vmatprep.subr.bf16.mxu0 %v511
    %707 = vmatpush1.bf16.msra.mxu0 %v510
    %708 = vmatprep.subr.bf16.mxu0 %v519
    %709 = vmatpush1.bf16.msra.mxu0 %v518
    %710 = vmatprep.subr.bf16.mxu0 %v527
    %711 = vmatpush1.bf16.msra.mxu0 %v526
    %712 = vmatprep.subr.bf16.mxu0 %v535
    %713 = vmatpush1.bf16.msra.mxu0 %v534
    %714 = vmatprep.subr.bf16.mxu0 %v543
    %715 = vmatpush1.bf16.msra.mxu0 %v542
    %716 = vmatprep.subr.bf16.mxu0 %v551
    %717 = vmatpush1.bf16.msra.mxu0 %v550
    %718 = vmatprep.subr.bf16.mxu0 %v559
    %719 = vmatpush1.bf16.msra.mxu0 %v558
    %720 = vmatprep.subr.bf16.mxu0 %v567
    %721 = vmatpush1.bf16.msra.mxu0 %v566
    %722 = vmatprep.subr.bf16.mxu0 %v575
    %723 = vmatpush1.bf16.msra.mxu0 %v574
    %724 = vmatprep.subr.bf16.mxu0 %v583
    %725 = vmatpush1.bf16.msra.mxu0 %v582
    %726 = vmatprep.subr.bf16.mxu0 %v591
    %727 = vmatpush1.bf16.msra.mxu0 %v590
    %728 = vmatprep.subr.bf16.mxu0 %v599
    %729 = vmatpush1.bf16.msra.mxu0 %v598
    %730 = vmatprep.subr.bf16.mxu0 0
    %731 = vmatpush1.bf16.msra.mxu0 0
    %732 = vmatprep.subr.bf16.mxu0 0
    %733 = vmatpush1.bf16.msra.mxu0 0
    %734 = vmatprep.subr.bf16.mxu0 0
    %735 = vmatpush1.bf16.msra.mxu0 0
    %736 = vmatprep.subr.bf16.mxu0 0
    %737 = vmatpush1.bf16.msra.mxu0 0
    %738 = vmatprep.mubr.bf16.mxu0 %v704
    %739 = vmatmul.mubr.bf16.gmra.mrb[0].mxu0 %v219
    %v740 = vpop.f32.mrb[0].mxu0
    %v741 = vadd.f32 %v176, %v740
    %v742 = vpop.f32.mrb[0].mxu0
    %v743 = vadd.f32 %v180, %v742
    %v744 = vpop.f32.mrb[0].mxu0
    %v745 = vadd.f32 %v176, %v744
    %v746 = vpop.f32.mrb[0].mxu0
    %v747 = vadd.f32 %v180, %v746
    %748 = vdwg.mxu0
    %749 = vmatprep.subr.bf16.mxu0 %v513
    %750 = vmatpush1.bf16.msra.mxu0 %v512
    %751 = vmatprep.subr.bf16.mxu0 %v521
    %752 = vmatpush1.bf16.msra.mxu0 %v520
    %753 = vmatprep.subr.bf16.mxu0 %v529
    %754 = vmatpush1.bf16.msra.mxu0 %v528
    %755 = vmatprep.subr.bf16.mxu0 %v537
    %756 = vmatpush1.bf16.msra.mxu0 %v536
    %757 = vmatprep.subr.bf16.mxu0 %v545
    %758 = vmatpush1.bf16.msra.mxu0 %v544
    %759 = vmatprep.subr.bf16.mxu0 %v553
    %760 = vmatpush1.bf16.msra.mxu0 %v552
    %761 = vmatprep.subr.bf16.mxu0 %v561
    %762 = vmatpush1.bf16.msra.mxu0 %v560
    %763 = vmatprep.subr.bf16.mxu0 %v569
    %764 = vmatpush1.bf16.msra.mxu0 %v568
    %765 = vmatprep.subr.bf16.mxu0 %v577
    %766 = vmatpush1.bf16.msra.mxu0 %v576
    %767 = vmatprep.subr.bf16.mxu0 %v585
    %768 = vmatpush1.bf16.msra.mxu0 %v584
    %769 = vmatprep.subr.bf16.mxu0 %v593
    %770 = vmatpush1.bf16.msra.mxu0 %v592
    %771 = vmatprep.subr.bf16.mxu0 %v601
    %772 = vmatpush1.bf16.msra.mxu0 %v600
    %773 = vmatprep.subr.bf16.mxu0 0
    %774 = vmatpush1.bf16.msra.mxu0 0
    %775 = vmatprep.subr.bf16.mxu0 0
    %776 = vmatpush1.bf16.msra.mxu0 0
    %777 = vmatprep.subr.bf16.mxu0 0
    %778 = vmatpush1.bf16.msra.mxu0 0
    %779 = vmatprep.subr.bf16.mxu0 0
    %780 = vmatpush1.bf16.msra.mxu0 0
    %781 = vmatprep.mubr.bf16.mxu0 %v704
    %782 = vmatmul.mubr.bf16.gmra.mrb[0].mxu0 %v219
    %v783 = vpop.f32.mrb[0].mxu0
    %v784 = vadd.f32 %v184, %v783
    %v785 = vpop.f32.mrb[0].mxu0
    %v786 = vadd.f32 %v188, %v785
    %v787 = vpop.f32.mrb[0].mxu0
    %v788 = vadd.f32 %v184, %v787
    %v789 = vpop.f32.mrb[0].mxu0
    %v790 = vadd.f32 %v188, %v789
    %791 = vdwg.mxu0
    %792 = vmatprep.subr.bf16.mxu0 %v515
    %793 = vmatpush1.bf16.msra.mxu0 %v514
    %794 = vmatprep.subr.bf16.mxu0 %v523
    %795 = vmatpush1.bf16.msra.mxu0 %v522
    %796 = vmatprep.subr.bf16.mxu0 %v531
    %797 = vmatpush1.bf16.msra.mxu0 %v530
    %798 = vmatprep.subr.bf16.mxu0 %v539
    %799 = vmatpush1.bf16.msra.mxu0 %v538
    %800 = vmatprep.subr.bf16.mxu0 %v547
    %801 = vmatpush1.bf16.msra.mxu0 %v546
    %802 = vmatprep.subr.bf16.mxu0 %v555
    %803 = vmatpush1.bf16.msra.mxu0 %v554
    %804 = vmatprep.subr.bf16.mxu0 %v563
    %805 = vmatpush1.bf16.msra.mxu0 %v562
    %806 = vmatprep.subr.bf16.mxu0 %v571
    %807 = vmatpush1.bf16.msra.mxu0 %v570
    %808 = vmatprep.subr.bf16.mxu0 %v579
    %809 = vmatpush1.bf16.msra.mxu0 %v578
    %810 = vmatprep.subr.bf16.mxu0 %v587
    %811 = vmatpush1.bf16.msra.mxu0 %v586
    %812 = vmatprep.subr.bf16.mxu0 %v595
    %813 = vmatpush1.bf16.msra.mxu0 %v594
    %814 = vmatprep.subr.bf16.mxu0 %v603
    %815 = vmatpush1.bf16.msra.mxu0 %v602
    %816 = vmatprep.subr.bf16.mxu0 0
    %817 = vmatpush1.bf16.msra.mxu0 0
    %818 = vmatprep.subr.bf16.mxu0 0
    %819 = vmatpush1.bf16.msra.mxu0 0
    %820 = vmatprep.subr.bf16.mxu0 0
    %821 = vmatpush1.bf16.msra.mxu0 0
    %822 = vmatprep.subr.bf16.mxu0 0
    %823 = vmatpush1.bf16.msra.mxu0 0
    %824 = vmatprep.mubr.bf16.mxu0 %v704
    %825 = vmatmul.mubr.bf16.gmra.mrb[0].mxu0 %v219
    %v826 = vpop.f32.mrb[0].mxu0
    %v827 = vadd.f32 %v192, %v826
    %v828 = vpop.f32.mrb[0].mxu0
    %v829 = vadd.f32 %v196, %v828
    %v830 = vpop.f32.mrb[0].mxu0
    %v831 = vadd.f32 %v192, %v830
    %v832 = vpop.f32.mrb[0].mxu0
    %v833 = vadd.f32 %v196, %v832
    %834 = vdwg.mxu0
    %835 = vmatprep.subr.bf16.mxu0 %v517
    %836 = vmatpush1.bf16.msra.mxu0 %v516
    %837 = vmatprep.subr.bf16.mxu0 %v525
    %838 = vmatpush1.bf16.msra.mxu0 %v524
    %839 = vmatprep.subr.bf16.mxu0 %v533
    %840 = vmatpush1.bf16.msra.mxu0 %v532
    %841 = vmatprep.subr.bf16.mxu0 %v541
    %842 = vmatpush1.bf16.msra.mxu0 %v540
    %843 = vmatprep.subr.bf16.mxu0 %v549
    %844 = vmatpush1.bf16.msra.mxu0 %v548
    %845 = vmatprep.subr.bf16.mxu0 %v557
    %846 = vmatpush1.bf16.msra.mxu0 %v556
    %847 = vmatprep.subr.bf16.mxu0 %v565
    %848 = vmatpush1.bf16.msra.mxu0 %v564
    %849 = vmatprep.subr.bf16.mxu0 %v573
    %850 = vmatpush1.bf16.msra.mxu0 %v572
    %851 = vmatprep.subr.bf16.mxu0 %v581
    %852 = vmatpush1.bf16.msra.mxu0 %v580
    %853 = vmatprep.subr.bf16.mxu0 %v589
    %854 = vmatpush1.bf16.msra.mxu0 %v588
    %855 = vmatprep.subr.bf16.mxu0 %v597
    %856 = vmatpush1.bf16.msra.mxu0 %v596
    %857 = vmatprep.subr.bf16.mxu0 %v605
    %858 = vmatpush1.bf16.msra.mxu0 %v604
    %859 = vmatprep.subr.bf16.mxu0 0
    %860 = vmatpush1.bf16.msra.mxu0 0
    %861 = vmatprep.subr.bf16.mxu0 0
    %862 = vmatpush1.bf16.msra.mxu0 0
    %863 = vmatprep.subr.bf16.mxu0 0
    %864 = vmatpush1.bf16.msra.mxu0 0
    %865 = vmatprep.subr.bf16.mxu0 0
    %866 = vmatpush1.bf16.msra.mxu0 0
    %867 = vmatprep.mubr.bf16.mxu0 %v704
    %868 = vmatmul.mubr.bf16.gmra.mrb[0].mxu0 %v219
    %v869 = vpop.f32.mrb[0].mxu0
    %v870 = vadd.f32 %v200, %v869
    %v871 = vpop.f32.mrb[0].mxu0
    %v872 = vadd.f32 %v204, %v871
    %v873 = vpop.f32.mrb[0].mxu0
    %v874 = vadd.f32 %v200, %v873
    %v875 = vpop.f32.mrb[0].mxu0
    %v876 = vadd.f32 %v204, %v875
    %877 = vdwg.mxu0
    %v878 = vmul.f32 %v741, 0.5
    %v879 = vmul.f32 %v743, 0.5
    %v880 = vmul.f32 %v784, 0.5
    %v881 = vmul.f32 %v786, 0.5
    %v882 = vmul.f32 %v827, 0.5
    %v883 = vmul.f32 %v829, 0.5
    %v884 = vmul.f32 %v870, 0.5
    %v885 = vmul.f32 %v872, 0.5
    %v886 = vmul.f32 %v745, 0.5
    %v887 = vmul.f32 %v747, 0.5
    %v888 = vmul.f32 %v788, 0.5
    %v889 = vmul.f32 %v790, 0.5
    %v890 = vmul.f32 %v831, 0.5
    %v891 = vmul.f32 %v833, 0.5
    %v892 = vmul.f32 %v874, 0.5
    %v893 = vmul.f32 %v876, 0.5
    %v894 = vtanh.pop %v878
    %v895 = vtanh.pop %v879
    %v896 = vtanh.pop %v880
    %v897 = vtanh.pop %v881
    %v898 = vtanh.pop %v882
    %v899 = vtanh.pop %v883
    %v900 = vtanh.pop %v884
    %v901 = vtanh.pop %v885
    %v902 = vtanh.pop %v886
    %v903 = vtanh.pop %v887
    %v904 = vtanh.pop %v888
    %v905 = vtanh.pop %v889
    %v906 = vtanh.pop %v890
    %v907 = vtanh.pop %v891
    %v908 = vtanh.pop %v892
    %v909 = vtanh.pop %v893
    %v910 = vmul.f32 %v894, 0.5
    %v911 = vmul.f32 %v895, 0.5
    %v912 = vmul.f32 %v896, 0.5
    %v913 = vmul.f32 %v897, 0.5
    %v914 = vmul.f32 %v898, 0.5
    %v915 = vmul.f32 %v899, 0.5
    %v916 = vmul.f32 %v900, 0.5
    %v917 = vmul.f32 %v901, 0.5
    %v918 = vmul.f32 %v902, 0.5
    %v919 = vmul.f32 %v903, 0.5
    %v920 = vmul.f32 %v904, 0.5
    %v921 = vmul.f32 %v905, 0.5
    %v922 = vmul.f32 %v906, 0.5
    %v923 = vmul.f32 %v907, 0.5
    %v924 = vmul.f32 %v908, 0.5
    %v925 = vmul.f32 %v909, 0.5
    %v926 = vadd.f32 %v910, 0.5
    %v927 = vadd.f32 %v911, 0.5
    %v928 = vadd.f32 %v912, 0.5
    %v929 = vadd.f32 %v913, 0.5
    %v930 = vadd.f32 %v914, 0.5
    %v931 = vadd.f32 %v915, 0.5
    %v932 = vadd.f32 %v916, 0.5
    %v933 = vadd.f32 %v917, 0.5
    %v934 = vadd.f32 %v918, 0.5
    %v935 = vadd.f32 %v919, 0.5
    %v936 = vadd.f32 %v920, 0.5
    %v937 = vadd.f32 %v921, 0.5
    %v938 = vadd.f32 %v922, 0.5
    %v939 = vadd.f32 %v923, 0.5
    %v940 = vadd.f32 %v924, 0.5
    %v941 = vadd.f32 %v925, 0.5
    %v942 = vpack.c.bf16 %v934, %v926
    %v943 = vpack.c.bf16 %v935, %v927
    %v944 = vpack.c.bf16 %v936, %v928
    %v945 = vpack.c.bf16 %v937, %v929
    %v946 = vpack.c.bf16 %v938, %v930
    %v947 = vpack.c.bf16 %v939, %v931
    %v948 = vpack.c.bf16 %v940, %v932
    %v949 = vpack.c.bf16 %v941, %v933
    %v950 = vld [vmem:[%s3] sm:$0xf]
    %v951 = vld [vmem:[%s3 + $0x4] sm:$0xf]
    %v952 = vld [vmem:[%s3 + $0x8] sm:$0xf]
    %v953 = vld [vmem:[%s3 + $0xc] sm:$0xf]
    %v954 = vld [vmem:[%s3 + $0x10] sm:$0xf]
    %v955 = vld [vmem:[%s3 + $0x14] sm:$0xf]
    %v956 = vld [vmem:[%s3 + $0x18] sm:$0xf]
    %v957 = vld [vmem:[%s3 + $0x1c] sm:$0xf]
    %v958 = vld [vmem:[%s3 + $0x20] sm:$0xf]
    %v959 = vld [vmem:[%s3 + $0x24] sm:$0xf]
    %v960 = vld [vmem:[%s3 + $0x28] sm:$0xf]
    %v961 = vld [vmem:[%s3 + $0x2c] sm:$0xf]
    %v962 = vld [vmem:[%s3 + $0x30] sm:$0xf]
    %v963 = vld [vmem:[%s3 + $0x34] sm:$0xf]
    %v964 = vld [vmem:[%s3 + $0x38] sm:$0xf]
    %v965 = vld [vmem:[%s3 + $0x3c] sm:$0xf]
    %v966 = vld [vmem:[%s3 + $0x40] sm:$0xf]
    %v967 = vld [vmem:[%s3 + $0x44] sm:$0xf]
    %v968 = vld [vmem:[%s3 + $0x48] sm:$0xf]
    %v969 = vld [vmem:[%s3 + $0x4c] sm:$0xf]
    %v970 = vld [vmem:[%s3 + $0x50] sm:$0xf]
    %v971 = vld [vmem:[%s3 + $0x54] sm:$0xf]
    %v972 = vld [vmem:[%s3 + $0x58] sm:$0xf]
    %v973 = vld [vmem:[%s3 + $0x5c] sm:$0xf]
    %v974 = vld [vmem:[%s3 + $0x60] sm:$0xf]
    %v975 = vld [vmem:[%s3 + $0x64] sm:$0xf]
    %v976 = vld [vmem:[%s3 + $0x68] sm:$0xf]
    %v977 = vld [vmem:[%s3 + $0x6c] sm:$0xf]
    %v978 = vld [vmem:[%s3 + $0x70] sm:$0xf]
    %v979 = vld [vmem:[%s3 + $0x74] sm:$0xf]
    %v980 = vld [vmem:[%s3 + $0x78] sm:$0xf]
    %v981 = vld [vmem:[%s3 + $0x7c] sm:$0xf]
    %v982 = vld [vmem:[%s3 + $0x80] sm:$0xf]
    %v983 = vld [vmem:[%s3 + $0x84] sm:$0xf]
    %v984 = vld [vmem:[%s3 + $0x88] sm:$0xf]
    %v985 = vld [vmem:[%s3 + $0x8c] sm:$0xf]
    %v986 = vld [vmem:[%s3 + $0x90] sm:$0xf]
    %v987 = vld [vmem:[%s3 + $0x94] sm:$0xf]
    %v988 = vld [vmem:[%s3 + $0x98] sm:$0xf]
    %v989 = vld [vmem:[%s3 + $0x9c] sm:$0xf]
    %v990 = vld [vmem:[%s3 + $0xa0] sm:$0xf]
    %v991 = vld [vmem:[%s3 + $0xa4] sm:$0xf]
    %v992 = vld [vmem:[%s3 + $0xa8] sm:$0xf]
    %v993 = vld [vmem:[%s3 + $0xac] sm:$0xf]
    %v994 = vld [vmem:[%s3 + $0xb0] sm:$0xf]
    %v995 = vld [vmem:[%s3 + $0xb4] sm:$0xf]
    %v996 = vld [vmem:[%s3 + $0xb8] sm:$0xf]
    %v997 = vld [vmem:[%s3 + $0xbc] sm:$0xf]
    %v998 = vld [vmem:[%s3 + $0xc0] sm:$0xf]
    %v999 = vld [vmem:[%s3 + $0xc4] sm:$0xf]
    %v1000 = vld [vmem:[%s3 + $0xc8] sm:$0xf]
    %v1001 = vld [vmem:[%s3 + $0xcc] sm:$0xf]
    %v1002 = vld [vmem:[%s3 + $0xd0] sm:$0xf]
    %v1003 = vld [vmem:[%s3 + $0xd4] sm:$0xf]
    %v1004 = vld [vmem:[%s3 + $0xd8] sm:$0xf]
    %v1005 = vld [vmem:[%s3 + $0xdc] sm:$0xf]
    %v1006 = vld [vmem:[%s3 + $0xe0] sm:$0xf]
    %v1007 = vld [vmem:[%s3 + $0xe4] sm:$0xf]
    %v1008 = vld [vmem:[%s3 + $0xe8] sm:$0xf]
    %v1009 = vld [vmem:[%s3 + $0xec] sm:$0xf]
    %v1010 = vld [vmem:[%s3 + $0xf0] sm:$0xf]
    %v1011 = vld [vmem:[%s3 + $0xf4] sm:$0xf]
    %v1012 = vld [vmem:[%s3 + $0xf8] sm:$0xf]
    %v1013 = vld [vmem:[%s3 + $0xfc] sm:$0xf]
    %v1014 = vld [vmem:[%s3 + $0x100] sm:$0xf]
    %v1015 = vld [vmem:[%s3 + $0x104] sm:$0xf]
    %v1016 = vld [vmem:[%s3 + $0x108] sm:$0xf]
    %v1017 = vld [vmem:[%s3 + $0x10c] sm:$0xf]
    %v1018 = vld [vmem:[%s3 + $0x110] sm:$0xf]
    %v1019 = vld [vmem:[%s3 + $0x114] sm:$0xf]
    %v1020 = vld [vmem:[%s3 + $0x118] sm:$0xf]
    %v1021 = vld [vmem:[%s3 + $0x11c] sm:$0xf]
    %v1022 = vld [vmem:[%s3 + $0x120] sm:$0xf]
    %v1023 = vld [vmem:[%s3 + $0x124] sm:$0xf]
    %v1024 = vld [vmem:[%s3 + $0x128] sm:$0xf]
    %v1025 = vld [vmem:[%s3 + $0x12c] sm:$0xf]
    %v1026 = vld [vmem:[%s3 + $0x130] sm:$0xf]
    %v1027 = vld [vmem:[%s3 + $0x134] sm:$0xf]
    %v1028 = vld [vmem:[%s3 + $0x138] sm:$0xf]
    %v1029 = vld [vmem:[%s3 + $0x13c] sm:$0xf]
    %v1030 = vld [vmem:[%s3 + $0x140] sm:$0xf]
    %v1031 = vld [vmem:[%s3 + $0x144] sm:$0xf]
    %v1032 = vld [vmem:[%s3 + $0x148] sm:$0xf]
    %v1033 = vld [vmem:[%s3 + $0x14c] sm:$0xf]
    %v1034 = vld [vmem:[%s3 + $0x150] sm:$0xf]
    %v1035 = vld [vmem:[%s3 + $0x154] sm:$0xf]
    %v1036 = vld [vmem:[%s3 + $0x158] sm:$0xf]
    %v1037 = vld [vmem:[%s3 + $0x15c] sm:$0xf]
    %v1038 = vld [vmem:[%s3 + $0x160] sm:$0xf]
    %v1039 = vld [vmem:[%s3 + $0x164] sm:$0xf]
    %v1040 = vld [vmem:[%s3 + $0x168] sm:$0xf]
    %v1041 = vld [vmem:[%s3 + $0x16c] sm:$0xf]
    %v1042 = vld [vmem:[%s3 + $0x170] sm:$0xf]
    %v1043 = vld [vmem:[%s3 + $0x174] sm:$0xf]
    %v1044 = vld [vmem:[%s3 + $0x178] sm:$0xf]
    %v1045 = vld [vmem:[%s3 + $0x17c] sm:$0xf]
    %v1046 = vld [vmem:[%s3 + $0x180] sm:$0xf]
    %v1047 = vld [vmem:[%s3 + $0x184] sm:$0xf]
    %v1048 = vld [vmem:[%s3 + $0x188] sm:$0xf]
    %v1049 = vld [vmem:[%s3 + $0x18c] sm:$0xf]
    %v1050 = vld [vmem:[%s3 + $0x190] sm:$0xf]
    %v1051 = vld [vmem:[%s3 + $0x194] sm:$0xf]
    %v1052 = vld [vmem:[%s3 + $0x198] sm:$0xf]
    %v1053 = vld [vmem:[%s3 + $0x19c] sm:$0xf]
    %v1054 = vld [vmem:[%s3 + $0x1a0] sm:$0xf]
    %v1055 = vld [vmem:[%s3 + $0x1a4] sm:$0xf]
    %v1056 = vld [vmem:[%s3 + $0x1a8] sm:$0xf]
    %v1057 = vld [vmem:[%s3 + $0x1ac] sm:$0xf]
    %v1058 = vld [vmem:[%s3 + $0x1b0] sm:$0xf]
    %v1059 = vld [vmem:[%s3 + $0x1b4] sm:$0xf]
    %v1060 = vld [vmem:[%s3 + $0x1b8] sm:$0xf]
    %v1061 = vld [vmem:[%s3 + $0x1bc] sm:$0xf]
    %v1062 = vld [vmem:[%s3 + $0x1c0] sm:$0xf]
    %v1063 = vld [vmem:[%s3 + $0x1c4] sm:$0xf]
    %v1064 = vld [vmem:[%s3 + $0x1c8] sm:$0xf]
    %v1065 = vld [vmem:[%s3 + $0x1cc] sm:$0xf]
    %v1066 = vld [vmem:[%s3 + $0x1d0] sm:$0xf]
    %v1067 = vld [vmem:[%s3 + $0x1d4] sm:$0xf]
    %v1068 = vld [vmem:[%s3 + $0x1d8] sm:$0xf]
    %v1069 = vld [vmem:[%s3 + $0x1dc] sm:$0xf]
    %v1070 = vld [vmem:[%s3 + $0x1e0] sm:$0xf]
    %v1071 = vld [vmem:[%s3 + $0x1e4] sm:$0xf]
    %v1072 = vld [vmem:[%s3 + $0x1e8] sm:$0xf]
    %v1073 = vld [vmem:[%s3 + $0x1ec] sm:$0xf]
    %v1074 = vld [vmem:[%s3 + $0x1f0] sm:$0xf]
    %v1075 = vld [vmem:[%s3 + $0x1f4] sm:$0xf]
    %v1076 = vld [vmem:[%s3 + $0x1f8] sm:$0xf]
    %v1077 = vld [vmem:[%s3 + $0x1fc] sm:$0xf]
    %v1078 = vld [vmem:[%s4] sm:$0x1]
    %v1080 = vlaneseq
    %v1081 = vshrl.u32 %v1080, 7
    %v1082 = vsub.s32 0, %v1081
    %v1083 = vrot.slane %v1078, %v1082
    %v1213 = vunpack.c.l.b16 %v950
    %v1214 = vunpack.c.l.b16 %v951
    %v1215 = vunpack.c.l.b16 %v952
    %v1216 = vunpack.c.l.b16 %v953
    %v1217 = vunpack.c.l.b16 %v954
    %v1218 = vunpack.c.l.b16 %v955
    %v1219 = vunpack.c.l.b16 %v956
    %v1220 = vunpack.c.l.b16 %v957
    %v1221 = vunpack.c.l.b16 %v958
    %v1222 = vunpack.c.l.b16 %v959
    %v1223 = vunpack.c.l.b16 %v960
    %v1224 = vunpack.c.l.b16 %v961
    %v1225 = vunpack.c.l.b16 %v962
    %v1226 = vunpack.c.l.b16 %v963
    %v1227 = vunpack.c.l.b16 %v964
    %v1228 = vunpack.c.l.b16 %v965
    %v1229 = vunpack.c.l.b16 %v966
    %v1230 = vunpack.c.l.b16 %v967
    %v1231 = vunpack.c.l.b16 %v968
    %v1232 = vunpack.c.l.b16 %v969
    %v1233 = vunpack.c.l.b16 %v970
    %v1234 = vunpack.c.l.b16 %v971
    %v1235 = vunpack.c.l.b16 %v972
    %v1236 = vunpack.c.l.b16 %v973
    %v1237 = vunpack.c.l.b16 %v974
    %v1238 = vunpack.c.l.b16 %v975
    %v1239 = vunpack.c.l.b16 %v976
    %v1240 = vunpack.c.l.b16 %v977
    %v1241 = vunpack.c.l.b16 %v978
    %v1242 = vunpack.c.l.b16 %v979
    %v1243 = vunpack.c.l.b16 %v980
    %v1244 = vunpack.c.l.b16 %v981
    %v1245 = vunpack.c.l.b16 %v982
    %v1246 = vunpack.c.l.b16 %v983
    %v1247 = vunpack.c.l.b16 %v984
    %v1248 = vunpack.c.l.b16 %v985
    %v1249 = vunpack.c.l.b16 %v986
    %v1250 = vunpack.c.l.b16 %v987
    %v1251 = vunpack.c.l.b16 %v988
    %v1252 = vunpack.c.l.b16 %v989
    %v1253 = vunpack.c.l.b16 %v990
    %v1254 = vunpack.c.l.b16 %v991
    %v1255 = vunpack.c.l.b16 %v992
    %v1256 = vunpack.c.l.b16 %v993
    %v1257 = vunpack.c.l.b16 %v994
    %v1258 = vunpack.c.l.b16 %v995
    %v1259 = vunpack.c.l.b16 %v996
    %v1260 = vunpack.c.l.b16 %v997
    %v1261 = vunpack.c.l.b16 %v998
    %v1262 = vunpack.c.l.b16 %v999
    %v1263 = vunpack.c.l.b16 %v1000
    %v1264 = vunpack.c.l.b16 %v1001
    %v1265 = vunpack.c.l.b16 %v1002
    %v1266 = vunpack.c.l.b16 %v1003
    %v1267 = vunpack.c.l.b16 %v1004
    %v1268 = vunpack.c.l.b16 %v1005
    %v1269 = vunpack.c.l.b16 %v1006
    %v1270 = vunpack.c.l.b16 %v1007
    %v1271 = vunpack.c.l.b16 %v1008
    %v1272 = vunpack.c.l.b16 %v1009
    %v1273 = vunpack.c.l.b16 %v1010
    %v1274 = vunpack.c.l.b16 %v1011
    %v1275 = vunpack.c.l.b16 %v1012
    %v1276 = vunpack.c.l.b16 %v1013
    %v1277 = vunpack.c.l.b16 %v1014
    %v1278 = vunpack.c.l.b16 %v1015
    %v1279 = vunpack.c.l.b16 %v1016
    %v1280 = vunpack.c.l.b16 %v1017
    %v1281 = vunpack.c.l.b16 %v1018
    %v1282 = vunpack.c.l.b16 %v1019
    %v1283 = vunpack.c.l.b16 %v1020
    %v1284 = vunpack.c.l.b16 %v1021
    %v1285 = vunpack.c.l.b16 %v1022
    %v1286 = vunpack.c.l.b16 %v1023
    %v1287 = vunpack.c.l.b16 %v1024
    %v1288 = vunpack.c.l.b16 %v1025
    %v1289 = vunpack.c.l.b16 %v1026
    %v1290 = vunpack.c.l.b16 %v1027
    %v1291 = vunpack.c.l.b16 %v1028
    %v1292 = vunpack.c.l.b16 %v1029
    %v1293 = vunpack.c.l.b16 %v1030
    %v1294 = vunpack.c.l.b16 %v1031
    %v1295 = vunpack.c.l.b16 %v1032
    %v1296 = vunpack.c.l.b16 %v1033
    %v1297 = vunpack.c.l.b16 %v1034
    %v1298 = vunpack.c.l.b16 %v1035
    %v1299 = vunpack.c.l.b16 %v1036
    %v1300 = vunpack.c.l.b16 %v1037
    %v1301 = vunpack.c.l.b16 %v1038
    %v1302 = vunpack.c.l.b16 %v1039
    %v1303 = vunpack.c.l.b16 %v1040
    %v1304 = vunpack.c.l.b16 %v1041
    %v1305 = vunpack.c.l.b16 %v1042
    %v1306 = vunpack.c.l.b16 %v1043
    %v1307 = vunpack.c.l.b16 %v1044
    %v1308 = vunpack.c.l.b16 %v1045
    %v1309 = vunpack.c.l.b16 %v1046
    %v1310 = vunpack.c.l.b16 %v1047
    %v1311 = vunpack.c.l.b16 %v1048
    %v1312 = vunpack.c.l.b16 %v1049
    %v1313 = vunpack.c.l.b16 %v1050
    %v1314 = vunpack.c.l.b16 %v1051
    %v1315 = vunpack.c.l.b16 %v1052
    %v1316 = vunpack.c.l.b16 %v1053
    %v1317 = vunpack.c.l.b16 %v1054
    %v1318 = vunpack.c.l.b16 %v1055
    %v1319 = vunpack.c.l.b16 %v1056
    %v1320 = vunpack.c.l.b16 %v1057
    %v1321 = vunpack.c.l.b16 %v1058
    %v1322 = vunpack.c.l.b16 %v1059
    %v1323 = vunpack.c.l.b16 %v1060
    %v1324 = vunpack.c.l.b16 %v1061
    %v1325 = vunpack.c.l.b16 %v1062
    %v1326 = vunpack.c.l.b16 %v1063
    %v1327 = vunpack.c.l.b16 %v1064
    %v1328 = vunpack.c.l.b16 %v1065
    %v1329 = vunpack.c.l.b16 %v1066
    %v1330 = vunpack.c.l.b16 %v1067
    %v1331 = vunpack.c.l.b16 %v1068
    %v1332 = vunpack.c.l.b16 %v1069
    %v1333 = vunpack.c.l.b16 %v1070
    %v1334 = vunpack.c.l.b16 %v1071
    %v1335 = vunpack.c.l.b16 %v1072
    %v1336 = vunpack.c.l.b16 %v1073
    %v1337 = vunpack.c.l.b16 %v1074
    %v1338 = vunpack.c.l.b16 %v1075
    %v1339 = vunpack.c.l.b16 %v1076
    %v1340 = vunpack.c.l.b16 %v1077
    %v1341 = vpack.c.b16 %v1214, %v1213
    %v1342 = vpack.c.b16 %v1216, %v1215
    %v1343 = vpack.c.b16 %v1218, %v1217
    %v1344 = vpack.c.b16 %v1220, %v1219
    %v1345 = vpack.c.b16 %v1222, %v1221
    %v1346 = vpack.c.b16 %v1224, %v1223
    %v1347 = vpack.c.b16 %v1226, %v1225
    %v1348 = vpack.c.b16 %v1228, %v1227
    %v1349 = vpack.c.b16 %v1230, %v1229
    %v1350 = vpack.c.b16 %v1232, %v1231
    %v1351 = vpack.c.b16 %v1234, %v1233
    %v1352 = vpack.c.b16 %v1236, %v1235
    %v1353 = vpack.c.b16 %v1238, %v1237
    %v1354 = vpack.c.b16 %v1240, %v1239
    %v1355 = vpack.c.b16 %v1242, %v1241
    %v1356 = vpack.c.b16 %v1244, %v1243
    %v1357 = vpack.c.b16 %v1246, %v1245
    %v1358 = vpack.c.b16 %v1248, %v1247
    %v1359 = vpack.c.b16 %v1250, %v1249
    %v1360 = vpack.c.b16 %v1252, %v1251
    %v1361 = vpack.c.b16 %v1254, %v1253
    %v1362 = vpack.c.b16 %v1256, %v1255
    %v1363 = vpack.c.b16 %v1258, %v1257
    %v1364 = vpack.c.b16 %v1260, %v1259
    %v1365 = vpack.c.b16 %v1262, %v1261
    %v1366 = vpack.c.b16 %v1264, %v1263
    %v1367 = vpack.c.b16 %v1266, %v1265
    %v1368 = vpack.c.b16 %v1268, %v1267
    %v1369 = vpack.c.b16 %v1270, %v1269
    %v1370 = vpack.c.b16 %v1272, %v1271
    %v1371 = vpack.c.b16 %v1274, %v1273
    %v1372 = vpack.c.b16 %v1276, %v1275
    %v1373 = vpack.c.b16 %v1278, %v1277
    %v1374 = vpack.c.b16 %v1280, %v1279
    %v1375 = vpack.c.b16 %v1282, %v1281
    %v1376 = vpack.c.b16 %v1284, %v1283
    %v1377 = vpack.c.b16 %v1286, %v1285
    %v1378 = vpack.c.b16 %v1288, %v1287
    %v1379 = vpack.c.b16 %v1290, %v1289
    %v1380 = vpack.c.b16 %v1292, %v1291
    %v1381 = vpack.c.b16 %v1294, %v1293
    %v1382 = vpack.c.b16 %v1296, %v1295
    %v1383 = vpack.c.b16 %v1298, %v1297
    %v1384 = vpack.c.b16 %v1300, %v1299
    %v1385 = vpack.c.b16 %v1302, %v1301
    %v1386 = vpack.c.b16 %v1304, %v1303
    %v1387 = vpack.c.b16 %v1306, %v1305
    %v1388 = vpack.c.b16 %v1308, %v1307
    %v1389 = vpack.c.b16 %v1310, %v1309
    %v1390 = vpack.c.b16 %v1312, %v1311
    %v1391 = vpack.c.b16 %v1314, %v1313
    %v1392 = vpack.c.b16 %v1316, %v1315
    %v1393 = vpack.c.b16 %v1318, %v1317
    %v1394 = vpack.c.b16 %v1320, %v1319
    %v1395 = vpack.c.b16 %v1322, %v1321
    %v1396 = vpack.c.b16 %v1324, %v1323
    %v1397 = vpack.c.b16 %v1326, %v1325
    %v1398 = vpack.c.b16 %v1328, %v1327
    %v1399 = vpack.c.b16 %v1330, %v1329
    %v1400 = vpack.c.b16 %v1332, %v1331
    %v1401 = vpack.c.b16 %v1334, %v1333
    %v1402 = vpack.c.b16 %v1336, %v1335
    %v1403 = vpack.c.b16 %v1338, %v1337
    %v1404 = vpack.c.b16 %v1340, %v1339
    %1469 = vmatprep.subr.bf16.mxu0 0
    %1470 = vmatpush1.bf16.msra.mxu0 %v1341
    %1471 = vmatprep.subr.bf16.mxu0 0
    %1472 = vmatpush1.bf16.msra.mxu0 %v1342
    %1473 = vmatprep.subr.bf16.mxu0 0
    %1474 = vmatpush1.bf16.msra.mxu0 %v1343
    %1475 = vmatprep.subr.bf16.mxu0 0
    %1476 = vmatpush1.bf16.msra.mxu0 %v1344
    %1477 = vmatprep.subr.bf16.mxu0 0
    %1478 = vmatpush1.bf16.msra.mxu0 %v1345
    %1479 = vmatprep.subr.bf16.mxu0 0
    %1480 = vmatpush1.bf16.msra.mxu0 %v1346
    %1481 = vmatprep.subr.bf16.mxu0 0
    %1482 = vmatpush1.bf16.msra.mxu0 %v1347
    %1483 = vmatprep.subr.bf16.mxu0 0
    %1484 = vmatpush1.bf16.msra.mxu0 %v1348
    %1485 = vmatprep.subr.bf16.mxu0 0
    %1486 = vmatpush1.bf16.msra.mxu0 %v1349
    %1487 = vmatprep.subr.bf16.mxu0 0
    %1488 = vmatpush1.bf16.msra.mxu0 %v1350
    %1489 = vmatprep.subr.bf16.mxu0 0
    %1490 = vmatpush1.bf16.msra.mxu0 %v1351
    %1491 = vmatprep.subr.bf16.mxu0 0
    %1492 = vmatpush1.bf16.msra.mxu0 %v1352
    %1493 = vmatprep.subr.bf16.mxu0 0
    %1494 = vmatpush1.bf16.msra.mxu0 %v1353
    %1495 = vmatprep.subr.bf16.mxu0 0
    %1496 = vmatpush1.bf16.msra.mxu0 %v1354
    %1497 = vmatprep.subr.bf16.mxu0 0
    %1498 = vmatpush1.bf16.msra.mxu0 %v1355
    %1499 = vmatprep.subr.bf16.mxu0 0
    %1500 = vmatpush1.bf16.msra.mxu0 %v1356
    %1501 = vmatprep.mubr.bf16.mxu0 %v943
    %1502 = vmatmul.mubr.bf16.gmra.mrb[0].mxu0 %v942
    %v1503 = vpop.f32.mrb[0].mxu0
    %v1504 = vadd.f32 %v1083, %v1503
    %v1505 = vpop.f32.mrb[0].mxu0
    %v1506 = vpop.f32.mrb[0].mxu0
    %v1507 = vadd.f32 %v1083, %v1506
    %v1508 = vpop.f32.mrb[0].mxu0
    %1509 = vdwg.mxu0
    %1510 = vmatprep.subr.bf16.mxu0 0
    %1511 = vmatpush1.bf16.msra.mxu0 %v1357
    %1512 = vmatprep.subr.bf16.mxu0 0
    %1513 = vmatpush1.bf16.msra.mxu0 %v1358
    %1514 = vmatprep.subr.bf16.mxu0 0
    %1515 = vmatpush1.bf16.msra.mxu0 %v1359
    %1516 = vmatprep.subr.bf16.mxu0 0
    %1517 = vmatpush1.bf16.msra.mxu0 %v1360
    %1518 = vmatprep.subr.bf16.mxu0 0
    %1519 = vmatpush1.bf16.msra.mxu0 %v1361
    %1520 = vmatprep.subr.bf16.mxu0 0
    %1521 = vmatpush1.bf16.msra.mxu0 %v1362
    %1522 = vmatprep.subr.bf16.mxu0 0
    %1523 = vmatpush1.bf16.msra.mxu0 %v1363
    %1524 = vmatprep.subr.bf16.mxu0 0
    %1525 = vmatpush1.bf16.msra.mxu0 %v1364
    %1526 = vmatprep.subr.bf16.mxu0 0
    %1527 = vmatpush1.bf16.msra.mxu0 %v1365
    %1528 = vmatprep.subr.bf16.mxu0 0
    %1529 = vmatpush1.bf16.msra.mxu0 %v1366
    %1530 = vmatprep.subr.bf16.mxu0 0
    %1531 = vmatpush1.bf16.msra.mxu0 %v1367
    %1532 = vmatprep.subr.bf16.mxu0 0
    %1533 = vmatpush1.bf16.msra.mxu0 %v1368
    %1534 = vmatprep.subr.bf16.mxu0 0
    %1535 = vmatpush1.bf16.msra.mxu0 %v1369
    %1536 = vmatprep.subr.bf16.mxu0 0
    %1537 = vmatpush1.bf16.msra.mxu0 %v1370
    %1538 = vmatprep.subr.bf16.mxu0 0
    %1539 = vmatpush1.bf16.msra.mxu0 %v1371
    %1540 = vmatprep.subr.bf16.mxu0 0
    %1541 = vmatpush1.bf16.msra.mxu0 %v1372
    %1542 = vmatprep.mubr.bf16.mxu0 %v945
    %1543 = vmatmul.mubr.bf16.gmra.mrb[0].mxu0 %v944
    %v1544 = vpop.f32.mrb[0].mxu0
    %v1545 = vadd.f32 %v1504, %v1544
    %v1546 = vpop.f32.mrb[0].mxu0
    %v1547 = vpop.f32.mrb[0].mxu0
    %v1548 = vadd.f32 %v1507, %v1547
    %v1549 = vpop.f32.mrb[0].mxu0
    %1550 = vdwg.mxu0
    %1551 = vmatprep.subr.bf16.mxu0 0
    %1552 = vmatpush1.bf16.msra.mxu0 %v1373
    %1553 = vmatprep.subr.bf16.mxu0 0
    %1554 = vmatpush1.bf16.msra.mxu0 %v1374
    %1555 = vmatprep.subr.bf16.mxu0 0
    %1556 = vmatpush1.bf16.msra.mxu0 %v1375
    %1557 = vmatprep.subr.bf16.mxu0 0
    %1558 = vmatpush1.bf16.msra.mxu0 %v1376
    %1559 = vmatprep.subr.bf16.mxu0 0
    %1560 = vmatpush1.bf16.msra.mxu0 %v1377
    %1561 = vmatprep.subr.bf16.mxu0 0
    %1562 = vmatpush1.bf16.msra.mxu0 %v1378
    %1563 = vmatprep.subr.bf16.mxu0 0
    %1564 = vmatpush1.bf16.msra.mxu0 %v1379
    %1565 = vmatprep.subr.bf16.mxu0 0
    %1566 = vmatpush1.bf16.msra.mxu0 %v1380
    %1567 = vmatprep.subr.bf16.mxu0 0
    %1568 = vmatpush1.bf16.msra.mxu0 %v1381
    %1569 = vmatprep.subr.bf16.mxu0 0
    %1570 = vmatpush1.bf16.msra.mxu0 %v1382
    %1571 = vmatprep.subr.bf16.mxu0 0
    %1572 = vmatpush1.bf16.msra.mxu0 %v1383
    %1573 = vmatprep.subr.bf16.mxu0 0
    %1574 = vmatpush1.bf16.msra.mxu0 %v1384
    %1575 = vmatprep.subr.bf16.mxu0 0
    %1576 = vmatpush1.bf16.msra.mxu0 %v1385
    %1577 = vmatprep.subr.bf16.mxu0 0
    %1578 = vmatpush1.bf16.msra.mxu0 %v1386
    %1579 = vmatprep.subr.bf16.mxu0 0
    %1580 = vmatpush1.bf16.msra.mxu0 %v1387
    %1581 = vmatprep.subr.bf16.mxu0 0
    %1582 = vmatpush1.bf16.msra.mxu0 %v1388
    %1583 = vmatprep.mubr.bf16.mxu0 %v947
    %1584 = vmatmul.mubr.bf16.gmra.mrb[0].mxu0 %v946
    %v1585 = vpop.f32.mrb[0].mxu0
    %v1586 = vadd.f32 %v1545, %v1585
    %v1587 = vpop.f32.mrb[0].mxu0
    %v1588 = vpop.f32.mrb[0].mxu0
    %v1589 = vadd.f32 %v1548, %v1588
    %v1590 = vpop.f32.mrb[0].mxu0
    %1591 = vdwg.mxu0
    %1592 = vmatprep.subr.bf16.mxu0 0
    %1593 = vmatpush1.bf16.msra.mxu0 %v1389
    %1594 = vmatprep.subr.bf16.mxu0 0
    %1595 = vmatpush1.bf16.msra.mxu0 %v1390
    %1596 = vmatprep.subr.bf16.mxu0 0
    %1597 = vmatpush1.bf16.msra.mxu0 %v1391
    %1598 = vmatprep.subr.bf16.mxu0 0
    %1599 = vmatpush1.bf16.msra.mxu0 %v1392
    %1600 = vmatprep.subr.bf16.mxu0 0
    %1601 = vmatpush1.bf16.msra.mxu0 %v1393
    %1602 = vmatprep.subr.bf16.mxu0 0
    %1603 = vmatpush1.bf16.msra.mxu0 %v1394
    %1604 = vmatprep.subr.bf16.mxu0 0
    %1605 = vmatpush1.bf16.msra.mxu0 %v1395
    %1606 = vmatprep.subr.bf16.mxu0 0
    %1607 = vmatpush1.bf16.msra.mxu0 %v1396
    %1608 = vmatprep.subr.bf16.mxu0 0
    %1609 = vmatpush1.bf16.msra.mxu0 %v1397
    %1610 = vmatprep.subr.bf16.mxu0 0
    %1611 = vmatpush1.bf16.msra.mxu0 %v1398
    %1612 = vmatprep.subr.bf16.mxu0 0
    %1613 = vmatpush1.bf16.msra.mxu0 %v1399
    %1614 = vmatprep.subr.bf16.mxu0 0
    %1615 = vmatpush1.bf16.msra.mxu0 %v1400
    %1616 = vmatprep.subr.bf16.mxu0 0
    %1617 = vmatpush1.bf16.msra.mxu0 %v1401
    %1618 = vmatprep.subr.bf16.mxu0 0
    %1619 = vmatpush1.bf16.msra.mxu0 %v1402
    %1620 = vmatprep.subr.bf16.mxu0 0
    %1621 = vmatpush1.bf16.msra.mxu0 %v1403
    %1622 = vmatprep.subr.bf16.mxu0 0
    %1623 = vmatpush1.bf16.msra.mxu0 %v1404
    %1624 = vmatprep.mubr.bf16.mxu0 %v949
    %1625 = vmatmul.mubr.bf16.gmra.mrb[0].mxu0 %v948
    %v1626 = vpop.f32.mrb[0].mxu0
    %v1627 = vadd.f32 %v1586, %v1626
    %v1628 = vpop.f32.mrb[0].mxu0
    %v1629 = vpop.f32.mrb[0].mxu0
    %v1630 = vadd.f32 %v1589, %v1629
    %v1631 = vpop.f32.mrb[0].mxu0
    %1632 = vdwg.mxu0
    %v1633 = vmul.f32 %v1627, 0.5
    %v1634 = vmul.f32 %v1630, 0.5
    %v1635 = vtanh.pop %v1633
    %v1636 = vtanh.pop %v1634
    %v1637 = vmul.f32 %v1635, 0.5
    %v1638 = vmul.f32 %v1636, 0.5
    %v1639 = vadd.f32 %v1637, 0.5
    %v1640 = vadd.f32 %v1638, 0.5
    %v1641 = vpack.c.bf16 %v1640, %v1639
    %v1642 = vld [vmem:[#allocation2] sm:$0xf]
    %v1643 = vld [vmem:[#allocation2 + $0x4] sm:$0xf]
    %v1644 = vld [vmem:[#allocation2 + $0x8] sm:$0xf]
    %v1645 = vld [vmem:[#allocation2 + $0xc] sm:$0xf]
    %v1646 = vld [vmem:[#allocation2 + $0x10] sm:$0xf]
    %v1647 = vld [vmem:[#allocation2 + $0x14] sm:$0xf]
    %v1648 = vld [vmem:[#allocation2 + $0x18] sm:$0xf]
    %v1649 = vld [vmem:[#allocation2 + $0x1c] sm:$0xf]
    %v1650 = vld [vmem:[#allocation2 + $0x20] sm:$0xf]
    %v1651 = vld [vmem:[#allocation2 + $0x24] sm:$0xf]
    %v1652 = vld [vmem:[#allocation2 + $0x28] sm:$0xf]
    %v1653 = vld [vmem:[#allocation2 + $0x2c] sm:$0xf]
    %v1654 = vld [vmem:[#allocation2 + $0x30] sm:$0xf]
    %v1655 = vld [vmem:[#allocation2 + $0x34] sm:$0xf]
    %v1656 = vld [vmem:[#allocation2 + $0x38] sm:$0xf]
    %v1657 = vld [vmem:[#allocation2 + $0x3c] sm:$0xf]
    %v1658 = vld [vmem:[%s6] sm:$0x1]
    %v1660 = vlaneseq
    %v1661 = vshrl.u32 %v1660, 7
    %v1662 = vsub.s32 0, %v1661
    %v1663 = vrot.slane %v1658, %v1662
    %v1681 = vunpack.c.l.b16 %v1642
    %v1682 = vunpack.c.l.b16 %v1643
    %v1683 = vunpack.c.l.b16 %v1644
    %v1684 = vunpack.c.l.b16 %v1645
    %v1685 = vunpack.c.l.b16 %v1646
    %v1686 = vunpack.c.l.b16 %v1647
    %v1687 = vunpack.c.l.b16 %v1648
    %v1688 = vunpack.c.l.b16 %v1649
    %v1689 = vunpack.c.l.b16 %v1650
    %v1690 = vunpack.c.l.b16 %v1651
    %v1691 = vunpack.c.l.b16 %v1652
    %v1692 = vunpack.c.l.b16 %v1653
    %v1693 = vunpack.c.l.b16 %v1654
    %v1694 = vunpack.c.l.b16 %v1655
    %v1695 = vunpack.c.l.b16 %v1656
    %v1696 = vunpack.c.l.b16 %v1657
    %v1697 = vpack.c.b16 %v1682, %v1681
    %v1698 = vpack.c.b16 %v1684, %v1683
    %v1699 = vpack.c.b16 %v1686, %v1685
    %v1700 = vpack.c.b16 %v1688, %v1687
    %v1701 = vpack.c.b16 %v1690, %v1689
    %v1702 = vpack.c.b16 %v1692, %v1691
    %v1703 = vpack.c.b16 %v1694, %v1693
    %v1704 = vpack.c.b16 %v1696, %v1695
    %1713 = vmatprep.subr.bf16.mxu0 0
    %1714 = vmatpush1.bf16.msra.mxu0 %v1697
    %1715 = vmatprep.subr.bf16.mxu0 0
    %1716 = vmatpush1.bf16.msra.mxu0 %v1698
    %1717 = vmatprep.subr.bf16.mxu0 0
    %1718 = vmatpush1.bf16.msra.mxu0 %v1699
    %1719 = vmatprep.subr.bf16.mxu0 0
    %1720 = vmatpush1.bf16.msra.mxu0 %v1700
    %1721 = vmatprep.subr.bf16.mxu0 0
    %1722 = vmatpush1.bf16.msra.mxu0 %v1701
    %1723 = vmatprep.subr.bf16.mxu0 0
    %1724 = vmatpush1.bf16.msra.mxu0 %v1702
    %1725 = vmatprep.subr.bf16.mxu0 0
    %1726 = vmatpush1.bf16.msra.mxu0 %v1703
    %1727 = vmatprep.subr.bf16.mxu0 0
    %1728 = vmatpush1.bf16.msra.mxu0 %v1704
    %1729 = vmatprep.subr.bf16.mxu0 0
    %1730 = vmatpush1.bf16.msra.mxu0 0
    %1731 = vmatprep.subr.bf16.mxu0 0
    %1732 = vmatpush1.bf16.msra.mxu0 0
    %1733 = vmatprep.subr.bf16.mxu0 0
    %1734 = vmatpush1.bf16.msra.mxu0 0
    %1735 = vmatprep.subr.bf16.mxu0 0
    %1736 = vmatpush1.bf16.msra.mxu0 0
    %1737 = vmatprep.subr.bf16.mxu0 0
    %1738 = vmatpush1.bf16.msra.mxu0 0
    %1739 = vmatprep.subr.bf16.mxu0 0
    %1740 = vmatpush1.bf16.msra.mxu0 0
    %1741 = vmatprep.subr.bf16.mxu0 0
    %1742 = vmatpush1.bf16.msra.mxu0 0
    %1743 = vmatprep.subr.bf16.mxu0 0
    %1744 = vmatpush1.bf16.msra.mxu0 0
    %1745 = vmatprep.mubr.bf16.mxu0 0
    %1746 = vmatmul.mubr.bf16.gmra.mrb[0].mxu0 %v1641
    %v1747 = vpop.f32.mrb[0].mxu0
    %v1748 = vadd.f32 %v1663, %v1747
    %v1749 = vpop.f32.mrb[0].mxu0
    %v1750 = vpop.f32.mrb[0].mxu0
    %v1751 = vadd.f32 %v1663, %v1750
    %v1752 = vpop.f32.mrb[0].mxu0
    %1753 = vdwg.mxu0
    %v1754 = vmul.f32 %v1748, 0.5
    %v1755 = vmul.f32 %v1751, 0.5
    %v1756 = vtanh.pop %v1754
    %v1757 = vtanh.pop %v1755
    %v1758 = vmul.f32 %v1756, 0.5
    %v1759 = vmul.f32 %v1757, 0.5
    %v1760 = vadd.f32 %v1758, 0.5
    %v1761 = vadd.f32 %v1759, 0.5
    %v1762 = vpack.c.bf16 %v1761, %v1760
    %v1763 = vld [vmem:[#allocation4] sm:$0xf]
    %v1764 = vld [vmem:[#allocation4 + $0x4] sm:$0xf]
    %v1765 = vld [vmem:[#allocation4 + $0x8] sm:$0xf]
    %v1766 = vld [vmem:[#allocation4 + $0xc] sm:$0xf]
    %v1767 = vld [vmem:[#allocation4 + $0x10] sm:$0xf]
    %v1768 = vld [vmem:[#allocation4 + $0x14] sm:$0xf]
    %v1769 = vld [vmem:[#allocation4 + $0x18] sm:$0xf]
    %v1770 = vld [vmem:[#allocation4 + $0x1c] sm:$0xf]
    %v1771 = vld [vmem:[#allocation4 + $0x20] sm:$0xf]
    %v1772 = vld [vmem:[#allocation4 + $0x24] sm:$0xf]
    %v1773 = vld [vmem:[#allocation4 + $0x28] sm:$0xf]
    %v1774 = vld [vmem:[#allocation4 + $0x2c] sm:$0xf]
    %v1775 = vld [vmem:[#allocation4 + $0x30] sm:$0xf]
    %v1776 = vld [vmem:[#allocation4 + $0x34] sm:$0xf]
    %v1777 = vld [vmem:[#allocation4 + $0x38] sm:$0xf]
    %v1778 = vld [vmem:[#allocation4 + $0x3c] sm:$0xf]
    %v1779 = vld [vmem:[%s8] sm:$0x1]
    %v1781 = vlaneseq
    %v1782 = vshrl.u32 %v1781, 7
    %v1783 = vsub.s32 0, %v1782
    %v1784 = vrot.slane %v1779, %v1783
    %v1802 = vunpack.c.l.b16 %v1763
    %v1803 = vunpack.c.l.b16 %v1764
    %v1804 = vunpack.c.l.b16 %v1765
    %v1805 = vunpack.c.l.b16 %v1766
    %v1806 = vunpack.c.l.b16 %v1767
    %v1807 = vunpack.c.l.b16 %v1768
    %v1808 = vunpack.c.l.b16 %v1769
    %v1809 = vunpack.c.l.b16 %v1770
    %v1810 = vunpack.c.l.b16 %v1771
    %v1811 = vunpack.c.l.b16 %v1772
    %v1812 = vunpack.c.l.b16 %v1773
    %v1813 = vunpack.c.l.b16 %v1774
    %v1814 = vunpack.c.l.b16 %v1775
    %v1815 = vunpack.c.l.b16 %v1776
    %v1816 = vunpack.c.l.b16 %v1777
    %v1817 = vunpack.c.l.b16 %v1778
    %v1818 = vpack.c.b16 %v1803, %v1802
    %v1819 = vpack.c.b16 %v1805, %v1804
    %v1820 = vpack.c.b16 %v1807, %v1806
    %v1821 = vpack.c.b16 %v1809, %v1808
    %v1822 = vpack.c.b16 %v1811, %v1810
    %v1823 = vpack.c.b16 %v1813, %v1812
    %v1824 = vpack.c.b16 %v1815, %v1814
    %v1825 = vpack.c.b16 %v1817, %v1816
    %1834 = vmatprep.subr.bf16.mxu0 0
    %1835 = vmatpush1.bf16.msra.mxu0 %v1818
    %1836 = vmatprep.subr.bf16.mxu0 0
    %1837 = vmatpush1.bf16.msra.mxu0 %v1819
    %1838 = vmatprep.subr.bf16.mxu0 0
    %1839 = vmatpush1.bf16.msra.mxu0 %v1820
    %1840 = vmatprep.subr.bf16.mxu0 0
    %1841 = vmatpush1.bf16.msra.mxu0 %v1821
    %1842 = vmatprep.subr.bf16.mxu0 0
    %1843 = vmatpush1.bf16.msra.mxu0 %v1822
    %1844 = vmatprep.subr.bf16.mxu0 0
    %1845 = vmatpush1.bf16.msra.mxu0 %v1823
    %1846 = vmatprep.subr.bf16.mxu0 0
    %1847 = vmatpush1.bf16.msra.mxu0 %v1824
    %1848 = vmatprep.subr.bf16.mxu0 0
    %1849 = vmatpush1.bf16.msra.mxu0 %v1825
    %1850 = vmatprep.subr.bf16.mxu0 0
    %1851 = vmatpush1.bf16.msra.mxu0 0
    %1852 = vmatprep.subr.bf16.mxu0 0
    %1853 = vmatpush1.bf16.msra.mxu0 0
    %1854 = vmatprep.subr.bf16.mxu0 0
    %1855 = vmatpush1.bf16.msra.mxu0 0
    %1856 = vmatprep.subr.bf16.mxu0 0
    %1857 = vmatpush1.bf16.msra.mxu0 0
    %1858 = vmatprep.subr.bf16.mxu0 0
    %1859 = vmatpush1.bf16.msra.mxu0 0
    %1860 = vmatprep.subr.bf16.mxu0 0
    %1861 = vmatpush1.bf16.msra.mxu0 0
    %1862 = vmatprep.subr.bf16.mxu0 0
    %1863 = vmatpush1.bf16.msra.mxu0 0
    %1864 = vmatprep.subr.bf16.mxu0 0
    %1865 = vmatpush1.bf16.msra.mxu0 0
    %1866 = vmatprep.mubr.bf16.mxu0 0
    %1867 = vmatmul.mubr.bf16.gmra.mrb[0].mxu0 %v1762
    %v1868 = vpop.f32.mrb[0].mxu0
    %v1869 = vadd.f32 %v1784, %v1868
    %v1870 = vpop.f32.mrb[0].mxu0
    %v1871 = vpop.f32.mrb[0].mxu0
    %v1872 = vadd.f32 %v1784, %v1871
    %v1873 = vpop.f32.mrb[0].mxu0
    %1874 = vdwg.mxu0
    %v1875 = vmul.f32 %v1869, 0.5
    %v1876 = vmul.f32 %v1872, 0.5
    %v1877 = vtanh.pop %v1875
    %v1878 = vtanh.pop %v1876
    %v1879 = vmul.f32 %v1877, 0.5
    %v1880 = vmul.f32 %v1878, 0.5
    %v1881 = vadd.f32 %v1879, 0.5
    %v1882 = vadd.f32 %v1880, 0.5
    %v1883 = vpack.c.bf16 %v1882, %v1881
    %v1884 = vld [vmem:[%s9] sm:$0xff]
    %v1885 = vld [vmem:[%s9 + $0x8] sm:$0xff]
    %v1886 = vld [vmem:[%s9 + $0x10] sm:$0xff]
    %v1887 = vld [vmem:[%s9 + $0x18] sm:$0xff]
    %v1888 = vld [vmem:[%s9 + $0x20] sm:$0xff]
    %v1889 = vld [vmem:[%s9 + $0x28] sm:$0xff]
    %v1890 = vld [vmem:[%s9 + $0x30] sm:$0xff]
    %v1891 = vld [vmem:[%s9 + $0x38] sm:$0xff]
    %v1892 = vld [vmem:[%s9 + $0x40] sm:$0xff]
    %v1893 = vld [vmem:[%s9 + $0x48] sm:$0xff]
    %v1894 = vld [vmem:[%s9 + $0x50] sm:$0xff]
    %v1895 = vld [vmem:[%s9 + $0x58] sm:$0xff]
    %v1896 = vld [vmem:[%s9 + $0x60] sm:$0xff]
    %v1897 = vld [vmem:[%s9 + $0x68] sm:$0xff]
    %v1898 = vld [vmem:[%s9 + $0x70] sm:$0xff]
    %v1899 = vld [vmem:[%s9 + $0x78] sm:$0xff]
    %v1900 = vld [vmem:[%s9 + $0x80] sm:$0xff]
    %v1901 = vld [vmem:[%s9 + $0x88] sm:$0xff]
    %v1902 = vld [vmem:[%s9 + $0x90] sm:$0xff]
    %v1903 = vld [vmem:[%s9 + $0x98] sm:$0xff]
    %v1904 = vld [vmem:[%s9 + $0xa0] sm:$0xff]
    %v1905 = vld [vmem:[%s9 + $0xa8] sm:$0xff]
    %v1906 = vld [vmem:[%s9 + $0xb0] sm:$0xff]
    %v1907 = vld [vmem:[%s9 + $0xb8] sm:$0xff]
    %v1908 = vld [vmem:[%s9 + $0xc0] sm:$0xff]
    %v1909 = vld [vmem:[%s9 + $0xc8] sm:$0xff]
    %v1910 = vld [vmem:[%s9 + $0xd0] sm:$0xff]
    %v1911 = vld [vmem:[%s9 + $0xd8] sm:$0xff]
    %v1912 = vld [vmem:[%s9 + $0xe0] sm:$0xff]
    %v1913 = vld [vmem:[%s9 + $0xe8] sm:$0xff]
    %v1914 = vld [vmem:[%s9 + $0xf0] sm:$0xff]
    %v1915 = vld [vmem:[%s9 + $0xf8] sm:$0xff]
    %v1916 = vld [vmem:[%s9 + $0x100] sm:$0xff]
    %v1917 = vld [vmem:[%s9 + $0x108] sm:$0xff]
    %v1918 = vld [vmem:[%s9 + $0x110] sm:$0xff]
    %v1919 = vld [vmem:[%s9 + $0x118] sm:$0xff]
    %v1920 = vld [vmem:[%s9 + $0x120] sm:$0xff]
    %v1921 = vld [vmem:[%s9 + $0x128] sm:$0xff]
    %v1922 = vld [vmem:[%s9 + $0x130] sm:$0xff]
    %v1923 = vld [vmem:[%s9 + $0x138] sm:$0xff]
    %v1924 = vld [vmem:[%s9 + $0x140] sm:$0xff]
    %v1925 = vld [vmem:[%s9 + $0x148] sm:$0xff]
    %v1926 = vld [vmem:[%s9 + $0x150] sm:$0xff]
    %v1927 = vld [vmem:[%s9 + $0x158] sm:$0xff]
    %v1928 = vld [vmem:[%s9 + $0x160] sm:$0xff]
    %v1929 = vld [vmem:[%s9 + $0x168] sm:$0xff]
    %v1930 = vld [vmem:[%s9 + $0x170] sm:$0xff]
    %v1931 = vld [vmem:[%s9 + $0x178] sm:$0xff]
    %v1932 = vld [vmem:[%s9 + $0x180] sm:$0xff]
    %v1933 = vld [vmem:[%s9 + $0x188] sm:$0xff]
    %v1934 = vld [vmem:[%s9 + $0x190] sm:$0xff]
    %v1935 = vld [vmem:[%s9 + $0x198] sm:$0xff]
    %v1936 = vld [vmem:[%s9 + $0x1a0] sm:$0xff]
    %v1937 = vld [vmem:[%s9 + $0x1a8] sm:$0xff]
    %v1938 = vld [vmem:[%s9 + $0x1b0] sm:$0xff]
    %v1939 = vld [vmem:[%s9 + $0x1b8] sm:$0xff]
    %v1940 = vld [vmem:[%s9 + $0x1c0] sm:$0xff]
    %v1941 = vld [vmem:[%s9 + $0x1c8] sm:$0xff]
    %v1942 = vld [vmem:[%s9 + $0x1d0] sm:$0xff]
    %v1943 = vld [vmem:[%s9 + $0x1d8] sm:$0xff]
    %v1944 = vld [vmem:[%s9 + $0x1e0] sm:$0xff]
    %v1945 = vld [vmem:[%s9 + $0x1e8] sm:$0xff]
    %v1946 = vld [vmem:[%s9 + $0x1f0] sm:$0xff]
    %v1947 = vld [vmem:[%s9 + $0x1f8] sm:$0xff]
    %v1948 = vld [vmem:[%s10] sm:$0xff]
    %v1950 = vlaneseq
    %v1951 = vshrl.u32 %v1950, 7
    %v1952 = vsub.s32 0, %v1951
    %v1953 = vrot.slane %v1948, %v1952
    %v1954 = vlaneseq
    %v1955 = vshrl.u32 %v1954, 7
    %v1956 = vsub.s32 1, %v1955
    %v1957 = vrot.slane %v1948, %v1956
    %v1958 = vlaneseq
    %v1959 = vshrl.u32 %v1958, 7
    %v1960 = vsub.s32 2, %v1959
    %v1961 = vrot.slane %v1948, %v1960
    %v1962 = vlaneseq
    %v1963 = vshrl.u32 %v1962, 7
    %v1964 = vsub.s32 3, %v1963
    %v1965 = vrot.slane %v1948, %v1964
    %v1966 = vlaneseq
    %v1967 = vshrl.u32 %v1966, 7
    %v1968 = vsub.s32 4, %v1967
    %v1969 = vrot.slane %v1948, %v1968
    %v1970 = vlaneseq
    %v1971 = vshrl.u32 %v1970, 7
    %v1972 = vsub.s32 5, %v1971
    %v1973 = vrot.slane %v1948, %v1972
    %v1974 = vlaneseq
    %v1975 = vshrl.u32 %v1974, 7
    %v1976 = vsub.s32 6, %v1975
    %v1977 = vrot.slane %v1948, %v1976
    %v1978 = vlaneseq
    %v1979 = vshrl.u32 %v1978, 7
    %v1980 = vsub.s32 7, %v1979
    %v1981 = vrot.slane %v1948, %v1980
    %v2054 = vunpack.c.l.b16 %v1884
    %v2055 = vunpack.c.h.b16 %v1884
    %v2056 = vunpack.c.l.b16 %v1885
    %v2057 = vunpack.c.h.b16 %v1885
    %v2058 = vunpack.c.l.b16 %v1886
    %v2059 = vunpack.c.h.b16 %v1886
    %v2060 = vunpack.c.l.b16 %v1887
    %v2061 = vunpack.c.h.b16 %v1887
    %v2062 = vunpack.c.l.b16 %v1888
    %v2063 = vunpack.c.h.b16 %v1888
    %v2064 = vunpack.c.l.b16 %v1889
    %v2065 = vunpack.c.h.b16 %v1889
    %v2066 = vunpack.c.l.b16 %v1890
    %v2067 = vunpack.c.h.b16 %v1890
    %v2068 = vunpack.c.l.b16 %v1891
    %v2069 = vunpack.c.h.b16 %v1891
    %v2070 = vunpack.c.l.b16 %v1892
    %v2071 = vunpack.c.h.b16 %v1892
    %v2072 = vunpack.c.l.b16 %v1893
    %v2073 = vunpack.c.h.b16 %v1893
    %v2074 = vunpack.c.l.b16 %v1894
    %v2075 = vunpack.c.h.b16 %v1894
    %v2076 = vunpack.c.l.b16 %v1895
    %v2077 = vunpack.c.h.b16 %v1895
    %v2078 = vunpack.c.l.b16 %v1896
    %v2079 = vunpack.c.h.b16 %v1896
    %v2080 = vunpack.c.l.b16 %v1897
    %v2081 = vunpack.c.h.b16 %v1897
    %v2082 = vunpack.c.l.b16 %v1898
    %v2083 = vunpack.c.h.b16 %v1898
    %v2084 = vunpack.c.l.b16 %v1899
    %v2085 = vunpack.c.h.b16 %v1899
    %v2086 = vunpack.c.l.b16 %v1900
    %v2087 = vunpack.c.h.b16 %v1900
    %v2088 = vunpack.c.l.b16 %v1901
    %v2089 = vunpack.c.h.b16 %v1901
    %v2090 = vunpack.c.l.b16 %v1902
    %v2091 = vunpack.c.h.b16 %v1902
    %v2092 = vunpack.c.l.b16 %v1903
    %v2093 = vunpack.c.h.b16 %v1903
    %v2094 = vunpack.c.l.b16 %v1904
    %v2095 = vunpack.c.h.b16 %v1904
    %v2096 = vunpack.c.l.b16 %v1905
    %v2097 = vunpack.c.h.b16 %v1905
    %v2098 = vunpack.c.l.b16 %v1906
    %v2099 = vunpack.c.h.b16 %v1906
    %v2100 = vunpack.c.l.b16 %v1907
    %v2101 = vunpack.c.h.b16 %v1907
    %v2102 = vunpack.c.l.b16 %v1908
    %v2103 = vunpack.c.h.b16 %v1908
    %v2104 = vunpack.c.l.b16 %v1909
    %v2105 = vunpack.c.h.b16 %v1909
    %v2106 = vunpack.c.l.b16 %v1910
    %v2107 = vunpack.c.h.b16 %v1910
    %v2108 = vunpack.c.l.b16 %v1911
    %v2109 = vunpack.c.h.b16 %v1911
    %v2110 = vunpack.c.l.b16 %v1912
    %v2111 = vunpack.c.h.b16 %v1912
    %v2112 = vunpack.c.l.b16 %v1913
    %v2113 = vunpack.c.h.b16 %v1913
    %v2114 = vunpack.c.l.b16 %v1914
    %v2115 = vunpack.c.h.b16 %v1914
    %v2116 = vunpack.c.l.b16 %v1915
    %v2117 = vunpack.c.h.b16 %v1915
    %v2118 = vunpack.c.l.b16 %v1916
    %v2119 = vunpack.c.h.b16 %v1916
    %v2120 = vunpack.c.l.b16 %v1917
    %v2121 = vunpack.c.h.b16 %v1917
    %v2122 = vunpack.c.l.b16 %v1918
    %v2123 = vunpack.c.h.b16 %v1918
    %v2124 = vunpack.c.l.b16 %v1919
    %v2125 = vunpack.c.h.b16 %v1919
    %v2126 = vunpack.c.l.b16 %v1920
    %v2127 = vunpack.c.h.b16 %v1920
    %v2128 = vunpack.c.l.b16 %v1921
    %v2129 = vunpack.c.h.b16 %v1921
    %v2130 = vunpack.c.l.b16 %v1922
    %v2131 = vunpack.c.h.b16 %v1922
    %v2132 = vunpack.c.l.b16 %v1923
    %v2133 = vunpack.c.h.b16 %v1923
    %v2134 = vunpack.c.l.b16 %v1924
    %v2135 = vunpack.c.h.b16 %v1924
    %v2136 = vunpack.c.l.b16 %v1925
    %v2137 = vunpack.c.h.b16 %v1925
    %v2138 = vunpack.c.l.b16 %v1926
    %v2139 = vunpack.c.h.b16 %v1926
    %v2140 = vunpack.c.l.b16 %v1927
    %v2141 = vunpack.c.h.b16 %v1927
    %v2142 = vunpack.c.l.b16 %v1928
    %v2143 = vunpack.c.h.b16 %v1928
    %v2144 = vunpack.c.l.b16 %v1929
    %v2145 = vunpack.c.h.b16 %v1929
    %v2146 = vunpack.c.l.b16 %v1930
    %v2147 = vunpack.c.h.b16 %v1930
    %v2148 = vunpack.c.l.b16 %v1931
    %v2149 = vunpack.c.h.b16 %v1931
    %v2150 = vunpack.c.l.b16 %v1932
    %v2151 = vunpack.c.h.b16 %v1932
    %v2152 = vunpack.c.l.b16 %v1933
    %v2153 = vunpack.c.h.b16 %v1933
    %v2154 = vunpack.c.l.b16 %v1934
    %v2155 = vunpack.c.h.b16 %v1934
    %v2156 = vunpack.c.l.b16 %v1935
    %v2157 = vunpack.c.h.b16 %v1935
    %v2158 = vunpack.c.l.b16 %v1936
    %v2159 = vunpack.c.h.b16 %v1936
    %v2160 = vunpack.c.l.b16 %v1937
    %v2161 = vunpack.c.h.b16 %v1937
    %v2162 = vunpack.c.l.b16 %v1938
    %v2163 = vunpack.c.h.b16 %v1938
    %v2164 = vunpack.c.l.b16 %v1939
    %v2165 = vunpack.c.h.b16 %v1939
    %v2166 = vunpack.c.l.b16 %v1940
    %v2167 = vunpack.c.h.b16 %v1940
    %v2168 = vunpack.c.l.b16 %v1941
    %v2169 = vunpack.c.h.b16 %v1941
    %v2170 = vunpack.c.l.b16 %v1942
    %v2171 = vunpack.c.h.b16 %v1942
    %v2172 = vunpack.c.l.b16 %v1943
    %v2173 = vunpack.c.h.b16 %v1943
    %v2174 = vunpack.c.l.b16 %v1944
    %v2175 = vunpack.c.h.b16 %v1944
    %v2176 = vunpack.c.l.b16 %v1945
    %v2177 = vunpack.c.h.b16 %v1945
    %v2178 = vunpack.c.l.b16 %v1946
    %v2179 = vunpack.c.h.b16 %v1946
    %v2180 = vunpack.c.l.b16 %v1947
    %v2181 = vunpack.c.h.b16 %v1947
    %v2182 = vpack.c.b16 %v2062, %v2054
    %v2183 = vpack.c.b16 %v2063, %v2055
    %v2184 = vpack.c.b16 %v2064, %v2056
    %v2185 = vpack.c.b16 %v2065, %v2057
    %v2186 = vpack.c.b16 %v2066, %v2058
    %v2187 = vpack.c.b16 %v2067, %v2059
    %v2188 = vpack.c.b16 %v2068, %v2060
    %v2189 = vpack.c.b16 %v2069, %v2061
    %v2190 = vpack.c.b16 %v2078, %v2070
    %v2191 = vpack.c.b16 %v2079, %v2071
    %v2192 = vpack.c.b16 %v2080, %v2072
    %v2193 = vpack.c.b16 %v2081, %v2073
    %v2194 = vpack.c.b16 %v2082, %v2074
    %v2195 = vpack.c.b16 %v2083, %v2075
    %v2196 = vpack.c.b16 %v2084, %v2076
    %v2197 = vpack.c.b16 %v2085, %v2077
    %v2198 = vpack.c.b16 %v2094, %v2086
    %v2199 = vpack.c.b16 %v2095, %v2087
    %v2200 = vpack.c.b16 %v2096, %v2088
    %v2201 = vpack.c.b16 %v2097, %v2089
    %v2202 = vpack.c.b16 %v2098, %v2090
    %v2203 = vpack.c.b16 %v2099, %v2091
    %v2204 = vpack.c.b16 %v2100, %v2092
    %v2205 = vpack.c.b16 %v2101, %v2093
    %v2206 = vpack.c.b16 %v2110, %v2102
    %v2207 = vpack.c.b16 %v2111, %v2103
    %v2208 = vpack.c.b16 %v2112, %v2104
    %v2209 = vpack.c.b16 %v2113, %v2105
    %v2210 = vpack.c.b16 %v2114, %v2106
    %v2211 = vpack.c.b16 %v2115, %v2107
    %v2212 = vpack.c.b16 %v2116, %v2108
    %v2213 = vpack.c.b16 %v2117, %v2109
    %v2214 = vpack.c.b16 %v2126, %v2118
    %v2215 = vpack.c.b16 %v2127, %v2119
    %v2216 = vpack.c.b16 %v2128, %v2120
    %v2217 = vpack.c.b16 %v2129, %v2121
    %v2218 = vpack.c.b16 %v2130, %v2122
    %v2219 = vpack.c.b16 %v2131, %v2123
    %v2220 = vpack.c.b16 %v2132, %v2124
    %v2221 = vpack.c.b16 %v2133, %v2125
    %v2222 = vpack.c.b16 %v2142, %v2134
    %v2223 = vpack.c.b16 %v2143, %v2135
    %v2224 = vpack.c.b16 %v2144, %v2136
    %v2225 = vpack.c.b16 %v2145, %v2137
    %v2226 = vpack.c.b16 %v2146, %v2138
    %v2227 = vpack.c.b16 %v2147, %v2139
    %v2228 = vpack.c.b16 %v2148, %v2140
    %v2229 = vpack.c.b16 %v2149, %v2141
    %v2230 = vpack.c.b16 %v2158, %v2150
    %v2231 = vpack.c.b16 %v2159, %v2151
    %v2232 = vpack.c.b16 %v2160, %v2152
    %v2233 = vpack.c.b16 %v2161, %v2153
    %v2234 = vpack.c.b16 %v2162, %v2154
    %v2235 = vpack.c.b16 %v2163, %v2155
    %v2236 = vpack.c.b16 %v2164, %v2156
    %v2237 = vpack.c.b16 %v2165, %v2157
    %v2238 = vpack.c.b16 %v2174, %v2166
    %v2239 = vpack.c.b16 %v2175, %v2167
    %v2240 = vpack.c.b16 %v2176, %v2168
    %v2241 = vpack.c.b16 %v2177, %v2169
    %v2242 = vpack.c.b16 %v2178, %v2170
    %v2243 = vpack.c.b16 %v2179, %v2171
    %v2244 = vpack.c.b16 %v2180, %v2172
    %v2245 = vpack.c.b16 %v2181, %v2173
    %2310 = vmatprep.subr.bf16.mxu0 %v2183
    %2311 = vmatpush1.bf16.msra.mxu0 %v2182
    %2312 = vmatprep.subr.bf16.mxu0 %v2191
    %2313 = vmatpush1.bf16.msra.mxu0 %v2190
    %2314 = vmatprep.subr.bf16.mxu0 %v2199
    %2315 = vmatpush1.bf16.msra.mxu0 %v2198
    %2316 = vmatprep.subr.bf16.mxu0 %v2207
    %2317 = vmatpush1.bf16.msra.mxu0 %v2206
    %2318 = vmatprep.subr.bf16.mxu0 %v2215
    %2319 = vmatpush1.bf16.msra.mxu0 %v2214
    %2320 = vmatprep.subr.bf16.mxu0 %v2223
    %2321 = vmatpush1.bf16.msra.mxu0 %v2222
    %2322 = vmatprep.subr.bf16.mxu0 %v2231
    %2323 = vmatpush1.bf16.msra.mxu0 %v2230
    %2324 = vmatprep.subr.bf16.mxu0 %v2239
    %2325 = vmatpush1.bf16.msra.mxu0 %v2238
    %2326 = vmatprep.subr.bf16.mxu0 0
    %2327 = vmatpush1.bf16.msra.mxu0 0
    %2328 = vmatprep.subr.bf16.mxu0 0
    %2329 = vmatpush1.bf16.msra.mxu0 0
    %2330 = vmatprep.subr.bf16.mxu0 0
    %2331 = vmatpush1.bf16.msra.mxu0 0
    %2332 = vmatprep.subr.bf16.mxu0 0
    %2333 = vmatpush1.bf16.msra.mxu0 0
    %2334 = vmatprep.subr.bf16.mxu0 0
    %2335 = vmatpush1.bf16.msra.mxu0 0
    %2336 = vmatprep.subr.bf16.mxu0 0
    %2337 = vmatpush1.bf16.msra.mxu0 0
    %2338 = vmatprep.subr.bf16.mxu0 0
    %2339 = vmatpush1.bf16.msra.mxu0 0
    %2340 = vmatprep.subr.bf16.mxu0 0
    %2341 = vmatpush1.bf16.msra.mxu0 0
    %2342 = vmatprep.mubr.bf16.mxu0 0
    %2343 = vmatmul.mubr.bf16.gmra.mrb[0].mxu0 %v1883
    %v2344 = vpop.f32.mrb[0].mxu0
    %v2345 = vadd.f32 %v1953, %v2344
    %v2346 = vpop.f32.mrb[0].mxu0
    %v2347 = vadd.f32 %v1957, %v2346
    %v2348 = vpop.f32.mrb[0].mxu0
    %v2349 = vadd.f32 %v1953, %v2348
    %v2350 = vpop.f32.mrb[0].mxu0
    %v2351 = vadd.f32 %v1957, %v2350
    %2352 = vdwg.mxu0
    %2353 = vmatprep.subr.bf16.mxu0 %v2185
    %2354 = vmatpush1.bf16.msra.mxu0 %v2184
    %2355 = vmatprep.subr.bf16.mxu0 %v2193
    %2356 = vmatpush1.bf16.msra.mxu0 %v2192
    %2357 = vmatprep.subr.bf16.mxu0 %v2201
    %2358 = vmatpush1.bf16.msra.mxu0 %v2200
    %2359 = vmatprep.subr.bf16.mxu0 %v2209
    %2360 = vmatpush1.bf16.msra.mxu0 %v2208
    %2361 = vmatprep.subr.bf16.mxu0 %v2217
    %2362 = vmatpush1.bf16.msra.mxu0 %v2216
    %2363 = vmatprep.subr.bf16.mxu0 %v2225
    %2364 = vmatpush1.bf16.msra.mxu0 %v2224
    %2365 = vmatprep.subr.bf16.mxu0 %v2233
    %2366 = vmatpush1.bf16.msra.mxu0 %v2232
    %2367 = vmatprep.subr.bf16.mxu0 %v2241
    %2368 = vmatpush1.bf16.msra.mxu0 %v2240
    %2369 = vmatprep.subr.bf16.mxu0 0
    %2370 = vmatpush1.bf16.msra.mxu0 0
    %2371 = vmatprep.subr.bf16.mxu0 0
    %2372 = vmatpush1.bf16.msra.mxu0 0
    %2373 = vmatprep.subr.bf16.mxu0 0
    %2374 = vmatpush1.bf16.msra.mxu0 0
    %2375 = vmatprep.subr.bf16.mxu0 0
    %2376 = vmatpush1.bf16.msra.mxu0 0
    %2377 = vmatprep.subr.bf16.mxu0 0
    %2378 = vmatpush1.bf16.msra.mxu0 0
    %2379 = vmatprep.subr.bf16.mxu0 0
    %2380 = vmatpush1.bf16.msra.mxu0 0
    %2381 = vmatprep.subr.bf16.mxu0 0
    %2382 = vmatpush1.bf16.msra.mxu0 0
    %2383 = vmatprep.subr.bf16.mxu0 0
    %2384 = vmatpush1.bf16.msra.mxu0 0
    %2385 = vmatprep.mubr.bf16.mxu0 0
    %2386 = vmatmul.mubr.bf16.gmra.mrb[0].mxu0 %v1883
    %v2387 = vpop.f32.mrb[0].mxu0
    %v2388 = vadd.f32 %v1961, %v2387
    %v2389 = vpop.f32.mrb[0].mxu0
    %v2390 = vadd.f32 %v1965, %v2389
    %v2391 = vpop.f32.mrb[0].mxu0
    %v2392 = vadd.f32 %v1961, %v2391
    %v2393 = vpop.f32.mrb[0].mxu0
    %v2394 = vadd.f32 %v1965, %v2393
    %2395 = vdwg.mxu0
    %2396 = vmatprep.subr.bf16.mxu0 %v2187
    %2397 = vmatpush1.bf16.msra.mxu0 %v2186
    %2398 = vmatprep.subr.bf16.mxu0 %v2195
    %2399 = vmatpush1.bf16.msra.mxu0 %v2194
    %2400 = vmatprep.subr.bf16.mxu0 %v2203
    %2401 = vmatpush1.bf16.msra.mxu0 %v2202
    %2402 = vmatprep.subr.bf16.mxu0 %v2211
    %2403 = vmatpush1.bf16.msra.mxu0 %v2210
    %2404 = vmatprep.subr.bf16.mxu0 %v2219
    %2405 = vmatpush1.bf16.msra.mxu0 %v2218
    %2406 = vmatprep.subr.bf16.mxu0 %v2227
    %2407 = vmatpush1.bf16.msra.mxu0 %v2226
    %2408 = vmatprep.subr.bf16.mxu0 %v2235
    %2409 = vmatpush1.bf16.msra.mxu0 %v2234
    %2410 = vmatprep.subr.bf16.mxu0 %v2243
    %2411 = vmatpush1.bf16.msra.mxu0 %v2242
    %2412 = vmatprep.subr.bf16.mxu0 0
    %2413 = vmatpush1.bf16.msra.mxu0 0
    %2414 = vmatprep.subr.bf16.mxu0 0
    %2415 = vmatpush1.bf16.msra.mxu0 0
    %2416 = vmatprep.subr.bf16.mxu0 0
    %2417 = vmatpush1.bf16.msra.mxu0 0
    %2418 = vmatprep.subr.bf16.mxu0 0
    %2419 = vmatpush1.bf16.msra.mxu0 0
    %2420 = vmatprep.subr.bf16.mxu0 0
    %2421 = vmatpush1.bf16.msra.mxu0 0
    %2422 = vmatprep.subr.bf16.mxu0 0
    %2423 = vmatpush1.bf16.msra.mxu0 0
    %2424 = vmatprep.subr.bf16.mxu0 0
    %2425 = vmatpush1.bf16.msra.mxu0 0
    %2426 = vmatprep.subr.bf16.mxu0 0
    %2427 = vmatpush1.bf16.msra.mxu0 0
    %2428 = vmatprep.mubr.bf16.mxu0 0
    %2429 = vmatmul.mubr.bf16.gmra.mrb[0].mxu0 %v1883
    %v2430 = vpop.f32.mrb[0].mxu0
    %v2431 = vadd.f32 %v1969, %v2430
    %v2432 = vpop.f32.mrb[0].mxu0
    %v2433 = vadd.f32 %v1973, %v2432
    %v2434 = vpop.f32.mrb[0].mxu0
    %v2435 = vadd.f32 %v1969, %v2434
    %v2436 = vpop.f32.mrb[0].mxu0
    %v2437 = vadd.f32 %v1973, %v2436
    %2438 = vdwg.mxu0
    %2439 = vmatprep.subr.bf16.mxu0 %v2189
    %2440 = vmatpush1.bf16.msra.mxu0 %v2188
    %2441 = vmatprep.subr.bf16.mxu0 %v2197
    %2442 = vmatpush1.bf16.msra.mxu0 %v2196
    %2443 = vmatprep.subr.bf16.mxu0 %v2205
    %2444 = vmatpush1.bf16.msra.mxu0 %v2204
    %2445 = vmatprep.subr.bf16.mxu0 %v2213
    %2446 = vmatpush1.bf16.msra.mxu0 %v2212
    %2447 = vmatprep.subr.bf16.mxu0 %v2221
    %2448 = vmatpush1.bf16.msra.mxu0 %v2220
    %2449 = vmatprep.subr.bf16.mxu0 %v2229
    %2450 = vmatpush1.bf16.msra.mxu0 %v2228
    %2451 = vmatprep.subr.bf16.mxu0 %v2237
    %2452 = vmatpush1.bf16.msra.mxu0 %v2236
    %2453 = vmatprep.subr.bf16.mxu0 %v2245
    %2454 = vmatpush1.bf16.msra.mxu0 %v2244
    %2455 = vmatprep.subr.bf16.mxu0 0
    %2456 = vmatpush1.bf16.msra.mxu0 0
    %2457 = vmatprep.subr.bf16.mxu0 0
    %2458 = vmatpush1.bf16.msra.mxu0 0
    %2459 = vmatprep.subr.bf16.mxu0 0
    %2460 = vmatpush1.bf16.msra.mxu0 0
    %2461 = vmatprep.subr.bf16.mxu0 0
    %2462 = vmatpush1.bf16.msra.mxu0 0
    %2463 = vmatprep.subr.bf16.mxu0 0
    %2464 = vmatpush1.bf16.msra.mxu0 0
    %2465 = vmatprep.subr.bf16.mxu0 0
    %2466 = vmatpush1.bf16.msra.mxu0 0
    %2467 = vmatprep.subr.bf16.mxu0 0
    %2468 = vmatpush1.bf16.msra.mxu0 0
    %2469 = vmatprep.subr.bf16.mxu0 0
    %2470 = vmatpush1.bf16.msra.mxu0 0
    %2471 = vmatprep.mubr.bf16.mxu0 0
    %2472 = vmatmul.mubr.bf16.gmra.mrb[0].mxu0 %v1883
    %v2473 = vpop.f32.mrb[0].mxu0
    %v2474 = vadd.f32 %v1977, %v2473
    %v2475 = vpop.f32.mrb[0].mxu0
    %v2476 = vadd.f32 %v1981, %v2475
    %v2477 = vpop.f32.mrb[0].mxu0
    %v2478 = vadd.f32 %v1977, %v2477
    %v2479 = vpop.f32.mrb[0].mxu0
    %v2480 = vadd.f32 %v1981, %v2479
    %2481 = vdwg.mxu0
    %v2482 = vmul.f32 %v2345, 0.5
    %v2483 = vmul.f32 %v2347, 0.5
    %v2484 = vmul.f32 %v2388, 0.5
    %v2485 = vmul.f32 %v2390, 0.5
    %v2486 = vmul.f32 %v2431, 0.5
    %v2487 = vmul.f32 %v2433, 0.5
    %v2488 = vmul.f32 %v2474, 0.5
    %v2489 = vmul.f32 %v2476, 0.5
    %v2490 = vmul.f32 %v2349, 0.5
    %v2491 = vmul.f32 %v2351, 0.5
    %v2492 = vmul.f32 %v2392, 0.5
    %v2493 = vmul.f32 %v2394, 0.5
    %v2494 = vmul.f32 %v2435, 0.5
    %v2495 = vmul.f32 %v2437, 0.5
    %v2496 = vmul.f32 %v2478, 0.5
    %v2497 = vmul.f32 %v2480, 0.5
    %v2498 = vtanh.pop %v2482
    %v2499 = vtanh.pop %v2483
    %v2500 = vtanh.pop %v2484
    %v2501 = vtanh.pop %v2485
    %v2502 = vtanh.pop %v2486
    %v2503 = vtanh.pop %v2487
    %v2504 = vtanh.pop %v2488
    %v2505 = vtanh.pop %v2489
    %v2506 = vtanh.pop %v2490
    %v2507 = vtanh.pop %v2491
    %v2508 = vtanh.pop %v2492
    %v2509 = vtanh.pop %v2493
    %v2510 = vtanh.pop %v2494
    %v2511 = vtanh.pop %v2495
    %v2512 = vtanh.pop %v2496
    %v2513 = vtanh.pop %v2497
    %v2514 = vmul.f32 %v2498, 0.5
    %v2515 = vmul.f32 %v2499, 0.5
    %v2516 = vmul.f32 %v2500, 0.5
    %v2517 = vmul.f32 %v2501, 0.5
    %v2518 = vmul.f32 %v2502, 0.5
    %v2519 = vmul.f32 %v2503, 0.5
    %v2520 = vmul.f32 %v2504, 0.5
    %v2521 = vmul.f32 %v2505, 0.5
    %v2522 = vmul.f32 %v2506, 0.5
    %v2523 = vmul.f32 %v2507, 0.5
    %v2524 = vmul.f32 %v2508, 0.5
    %v2525 = vmul.f32 %v2509, 0.5
    %v2526 = vmul.f32 %v2510, 0.5
    %v2527 = vmul.f32 %v2511, 0.5
    %v2528 = vmul.f32 %v2512, 0.5
    %v2529 = vmul.f32 %v2513, 0.5
    %v2530 = vadd.f32 %v2514, 0.5
    %v2531 = vadd.f32 %v2515, 0.5
    %v2532 = vadd.f32 %v2516, 0.5
    %v2533 = vadd.f32 %v2517, 0.5
    %v2534 = vadd.f32 %v2518, 0.5
    %v2535 = vadd.f32 %v2519, 0.5
    %v2536 = vadd.f32 %v2520, 0.5
    %v2537 = vadd.f32 %v2521, 0.5
    %v2538 = vadd.f32 %v2522, 0.5
    %v2539 = vadd.f32 %v2523, 0.5
    %v2540 = vadd.f32 %v2524, 0.5
    %v2541 = vadd.f32 %v2525, 0.5
    %v2542 = vadd.f32 %v2526, 0.5
    %v2543 = vadd.f32 %v2527, 0.5
    %v2544 = vadd.f32 %v2528, 0.5
    %v2545 = vadd.f32 %v2529, 0.5
    %v2546 = vpack.c.bf16 %v2538, %v2530
    %v2547 = vpack.c.bf16 %v2539, %v2531
    %v2548 = vpack.c.bf16 %v2540, %v2532
    %v2549 = vpack.c.bf16 %v2541, %v2533
    %v2550 = vpack.c.bf16 %v2542, %v2534
    %v2551 = vpack.c.bf16 %v2543, %v2535
    %v2552 = vpack.c.bf16 %v2544, %v2536
    %v2553 = vpack.c.bf16 %v2545, %v2537
    %v2554 = vld [vmem:[%s11] sm:$0xff]
    %v2555 = vld [vmem:[%s11 + $0x8] sm:$0xff]
    %v2556 = vld [vmem:[%s11 + $0x10] sm:$0xff]
    %v2557 = vld [vmem:[%s11 + $0x18] sm:$0xff]
    %v2558 = vld [vmem:[%s11 + $0x20] sm:$0xff]
    %v2559 = vld [vmem:[%s11 + $0x28] sm:$0xff]
    %v2560 = vld [vmem:[%s11 + $0x30] sm:$0xff]
    %v2561 = vld [vmem:[%s11 + $0x38] sm:$0xff]
    %v2562 = vld [vmem:[%s11 + $0x40] sm:$0xff]
    %v2563 = vld [vmem:[%s11 + $0x48] sm:$0xff]
    %v2564 = vld [vmem:[%s11 + $0x50] sm:$0xff]
    %v2565 = vld [vmem:[%s11 + $0x58] sm:$0xff]
    %v2566 = vld [vmem:[%s11 + $0x60] sm:$0xff]
    %v2567 = vld [vmem:[%s11 + $0x68] sm:$0xff]
    %v2568 = vld [vmem:[%s11 + $0x70] sm:$0xff]
    %v2569 = vld [vmem:[%s11 + $0x78] sm:$0xff]
    %v2570 = vld [vmem:[%s11 + $0x80] sm:$0xff]
    %v2571 = vld [vmem:[%s11 + $0x88] sm:$0xff]
    %v2572 = vld [vmem:[%s11 + $0x90] sm:$0xff]
    %v2573 = vld [vmem:[%s11 + $0x98] sm:$0xff]
    %v2574 = vld [vmem:[%s11 + $0xa0] sm:$0xff]
    %v2575 = vld [vmem:[%s11 + $0xa8] sm:$0xff]
    %v2576 = vld [vmem:[%s11 + $0xb0] sm:$0xff]
    %v2577 = vld [vmem:[%s11 + $0xb8] sm:$0xff]
    %v2578 = vld [vmem:[%s11 + $0xc0] sm:$0xff]
    %v2579 = vld [vmem:[%s11 + $0xc8] sm:$0xff]
    %v2580 = vld [vmem:[%s11 + $0xd0] sm:$0xff]
    %v2581 = vld [vmem:[%s11 + $0xd8] sm:$0xff]
    %v2582 = vld [vmem:[%s11 + $0xe0] sm:$0xff]
    %v2583 = vld [vmem:[%s11 + $0xe8] sm:$0xff]
    %v2584 = vld [vmem:[%s11 + $0xf0] sm:$0xff]
    %v2585 = vld [vmem:[%s11 + $0xf8] sm:$0xff]
    %v2586 = vld [vmem:[%s11 + $0x100] sm:$0xff]
    %v2587 = vld [vmem:[%s11 + $0x108] sm:$0xff]
    %v2588 = vld [vmem:[%s11 + $0x110] sm:$0xff]
    %v2589 = vld [vmem:[%s11 + $0x118] sm:$0xff]
    %v2590 = vld [vmem:[%s11 + $0x120] sm:$0xff]
    %v2591 = vld [vmem:[%s11 + $0x128] sm:$0xff]
    %v2592 = vld [vmem:[%s11 + $0x130] sm:$0xff]
    %v2593 = vld [vmem:[%s11 + $0x138] sm:$0xff]
    %v2594 = vld [vmem:[%s11 + $0x140] sm:$0xff]
    %v2595 = vld [vmem:[%s11 + $0x148] sm:$0xff]
    %v2596 = vld [vmem:[%s11 + $0x150] sm:$0xff]
    %v2597 = vld [vmem:[%s11 + $0x158] sm:$0xff]
    %v2598 = vld [vmem:[%s11 + $0x160] sm:$0xff]
    %v2599 = vld [vmem:[%s11 + $0x168] sm:$0xff]
    %v2600 = vld [vmem:[%s11 + $0x170] sm:$0xff]
    %v2601 = vld [vmem:[%s11 + $0x178] sm:$0xff]
    %v2602 = vld [vmem:[%s11 + $0x180] sm:$0xff]
    %v2603 = vld [vmem:[%s11 + $0x188] sm:$0xff]
    %v2604 = vld [vmem:[%s11 + $0x190] sm:$0xff]
    %v2605 = vld [vmem:[%s11 + $0x198] sm:$0xff]
    %v2606 = vld [vmem:[%s11 + $0x1a0] sm:$0xff]
    %v2607 = vld [vmem:[%s11 + $0x1a8] sm:$0xff]
    %v2608 = vld [vmem:[%s11 + $0x1b0] sm:$0xff]
    %v2609 = vld [vmem:[%s11 + $0x1b8] sm:$0xff]
    %v2610 = vld [vmem:[%s11 + $0x1c0] sm:$0xff]
    %v2611 = vld [vmem:[%s11 + $0x1c8] sm:$0xff]
    %v2612 = vld [vmem:[%s11 + $0x1d0] sm:$0xff]
    %v2613 = vld [vmem:[%s11 + $0x1d8] sm:$0xff]
    %v2614 = vld [vmem:[%s11 + $0x1e0] sm:$0xff]
    %v2615 = vld [vmem:[%s11 + $0x1e8] sm:$0xff]
    %v2616 = vld [vmem:[%s11 + $0x1f0] sm:$0xff]
    %v2617 = vld [vmem:[%s11 + $0x1f8] sm:$0xff]
    %v2618 = vld [vmem:[%s11 + $0x200] sm:$0xff]
    %v2619 = vld [vmem:[%s11 + $0x208] sm:$0xff]
    %v2620 = vld [vmem:[%s11 + $0x210] sm:$0xff]
    %v2621 = vld [vmem:[%s11 + $0x218] sm:$0xff]
    %v2622 = vld [vmem:[%s11 + $0x220] sm:$0xff]
    %v2623 = vld [vmem:[%s11 + $0x228] sm:$0xff]
    %v2624 = vld [vmem:[%s11 + $0x230] sm:$0xff]
    %v2625 = vld [vmem:[%s11 + $0x238] sm:$0xff]
    %v2626 = vld [vmem:[%s11 + $0x240] sm:$0xff]
    %v2627 = vld [vmem:[%s11 + $0x248] sm:$0xff]
    %v2628 = vld [vmem:[%s11 + $0x250] sm:$0xff]
    %v2629 = vld [vmem:[%s11 + $0x258] sm:$0xff]
    %v2630 = vld [vmem:[%s11 + $0x260] sm:$0xff]
    %v2631 = vld [vmem:[%s11 + $0x268] sm:$0xff]
    %v2632 = vld [vmem:[%s11 + $0x270] sm:$0xff]
    %v2633 = vld [vmem:[%s11 + $0x278] sm:$0xff]
    %v2634 = vld [vmem:[%s11 + $0x280] sm:$0xff]
    %v2635 = vld [vmem:[%s11 + $0x288] sm:$0xff]
    %v2636 = vld [vmem:[%s11 + $0x290] sm:$0xff]
    %v2637 = vld [vmem:[%s11 + $0x298] sm:$0xff]
    %v2638 = vld [vmem:[%s11 + $0x2a0] sm:$0xff]
    %v2639 = vld [vmem:[%s11 + $0x2a8] sm:$0xff]
    %v2640 = vld [vmem:[%s11 + $0x2b0] sm:$0xff]
    %v2641 = vld [vmem:[%s11 + $0x2b8] sm:$0xff]
    %v2642 = vld [vmem:[%s11 + $0x2c0] sm:$0xff]
    %v2643 = vld [vmem:[%s11 + $0x2c8] sm:$0xff]
    %v2644 = vld [vmem:[%s11 + $0x2d0] sm:$0xff]
    %v2645 = vld [vmem:[%s11 + $0x2d8] sm:$0xff]
    %v2646 = vld [vmem:[%s11 + $0x2e0] sm:$0xff]
    %v2647 = vld [vmem:[%s11 + $0x2e8] sm:$0xff]
    %v2648 = vld [vmem:[%s11 + $0x2f0] sm:$0xff]
    %v2649 = vld [vmem:[%s11 + $0x2f8] sm:$0xff]
    %v2650 = vld [vmem:[%s11 + $0x300] sm:$0xff]
    %v2651 = vld [vmem:[%s11 + $0x308] sm:$0xff]
    %v2652 = vld [vmem:[%s11 + $0x310] sm:$0xff]
    %v2653 = vld [vmem:[%s11 + $0x318] sm:$0xff]
    %v2654 = vld [vmem:[%s11 + $0x320] sm:$0xff]
    %v2655 = vld [vmem:[%s11 + $0x328] sm:$0xff]
    %v2656 = vld [vmem:[%s11 + $0x330] sm:$0xff]
    %v2657 = vld [vmem:[%s11 + $0x338] sm:$0xff]
    %v2658 = vld [vmem:[%s11 + $0x340] sm:$0xff]
    %v2659 = vld [vmem:[%s11 + $0x348] sm:$0xff]
    %v2660 = vld [vmem:[%s11 + $0x350] sm:$0xff]
    %v2661 = vld [vmem:[%s11 + $0x358] sm:$0xff]
    %v2662 = vld [vmem:[%s11 + $0x360] sm:$0xff]
    %v2663 = vld [vmem:[%s11 + $0x368] sm:$0xff]
    %v2664 = vld [vmem:[%s11 + $0x370] sm:$0xff]
    %v2665 = vld [vmem:[%s11 + $0x378] sm:$0xff]
    %v2666 = vld [vmem:[%s11 + $0x380] sm:$0xff]
    %v2667 = vld [vmem:[%s11 + $0x388] sm:$0xff]
    %v2668 = vld [vmem:[%s11 + $0x390] sm:$0xff]
    %v2669 = vld [vmem:[%s11 + $0x398] sm:$0xff]
    %v2670 = vld [vmem:[%s11 + $0x3a0] sm:$0xff]
    %v2671 = vld [vmem:[%s11 + $0x3a8] sm:$0xff]
    %v2672 = vld [vmem:[%s11 + $0x3b0] sm:$0xff]
    %v2673 = vld [vmem:[%s11 + $0x3b8] sm:$0xff]
    %v2674 = vld [vmem:[%s11 + $0x3c0] sm:$0xff]
    %v2675 = vld [vmem:[%s11 + $0x3c8] sm:$0xff]
    %v2676 = vld [vmem:[%s11 + $0x3d0] sm:$0xff]
    %v2677 = vld [vmem:[%s11 + $0x3d8] sm:$0xff]
    %v2678 = vld [vmem:[%s11 + $0x3e0] sm:$0xff]
    %v2679 = vld [vmem:[%s11 + $0x3e8] sm:$0xff]
    %v2680 = vld [vmem:[%s11 + $0x3f0] sm:$0xff]
    %v2681 = vld [vmem:[%s11 + $0x3f8] sm:$0xff]
    %v2682 = vld [vmem:[%s12] sm:$0x3]
    %v2684 = vlaneseq
    %v2685 = vshrl.u32 %v2684, 7
    %v2686 = vsub.s32 0, %v2685
    %v2687 = vrot.slane %v2682, %v2686
    %v2688 = vlaneseq
    %v2689 = vshrl.u32 %v2688, 7
    %v2690 = vsub.s32 1, %v2689
    %v2691 = vrot.slane %v2682, %v2690
    %v2822 = vunpack.c.l.b16 %v2554
    %v2823 = vunpack.c.h.b16 %v2554
    %v2824 = vunpack.c.l.b16 %v2555
    %v2825 = vunpack.c.h.b16 %v2555
    %v2826 = vunpack.c.l.b16 %v2556
    %v2827 = vunpack.c.h.b16 %v2556
    %v2828 = vunpack.c.l.b16 %v2557
    %v2829 = vunpack.c.h.b16 %v2557
    %v2830 = vunpack.c.l.b16 %v2558
    %v2831 = vunpack.c.h.b16 %v2558
    %v2832 = vunpack.c.l.b16 %v2559
    %v2833 = vunpack.c.h.b16 %v2559
    %v2834 = vunpack.c.l.b16 %v2560
    %v2835 = vunpack.c.h.b16 %v2560
    %v2836 = vunpack.c.l.b16 %v2561
    %v2837 = vunpack.c.h.b16 %v2561
    %v2838 = vunpack.c.l.b16 %v2562
    %v2839 = vunpack.c.h.b16 %v2562
    %v2840 = vunpack.c.l.b16 %v2563
    %v2841 = vunpack.c.h.b16 %v2563
    %v2842 = vunpack.c.l.b16 %v2564
    %v2843 = vunpack.c.h.b16 %v2564
    %v2844 = vunpack.c.l.b16 %v2565
    %v2845 = vunpack.c.h.b16 %v2565
    %v2846 = vunpack.c.l.b16 %v2566
    %v2847 = vunpack.c.h.b16 %v2566
    %v2848 = vunpack.c.l.b16 %v2567
    %v2849 = vunpack.c.h.b16 %v2567
    %v2850 = vunpack.c.l.b16 %v2568
    %v2851 = vunpack.c.h.b16 %v2568
    %v2852 = vunpack.c.l.b16 %v2569
    %v2853 = vunpack.c.h.b16 %v2569
    %v2854 = vunpack.c.l.b16 %v2570
    %v2855 = vunpack.c.h.b16 %v2570
    %v2856 = vunpack.c.l.b16 %v2571
    %v2857 = vunpack.c.h.b16 %v2571
    %v2858 = vunpack.c.l.b16 %v2572
    %v2859 = vunpack.c.h.b16 %v2572
    %v2860 = vunpack.c.l.b16 %v2573
    %v2861 = vunpack.c.h.b16 %v2573
    %v2862 = vunpack.c.l.b16 %v2574
    %v2863 = vunpack.c.h.b16 %v2574
    %v2864 = vunpack.c.l.b16 %v2575
    %v2865 = vunpack.c.h.b16 %v2575
    %v2866 = vunpack.c.l.b16 %v2576
    %v2867 = vunpack.c.h.b16 %v2576
    %v2868 = vunpack.c.l.b16 %v2577
    %v2869 = vunpack.c.h.b16 %v2577
    %v2870 = vunpack.c.l.b16 %v2578
    %v2871 = vunpack.c.h.b16 %v2578
    %v2872 = vunpack.c.l.b16 %v2579
    %v2873 = vunpack.c.h.b16 %v2579
    %v2874 = vunpack.c.l.b16 %v2580
    %v2875 = vunpack.c.h.b16 %v2580
    %v2876 = vunpack.c.l.b16 %v2581
    %v2877 = vunpack.c.h.b16 %v2581
    %v2878 = vunpack.c.l.b16 %v2582
    %v2879 = vunpack.c.h.b16 %v2582
    %v2880 = vunpack.c.l.b16 %v2583
    %v2881 = vunpack.c.h.b16 %v2583
    %v2882 = vunpack.c.l.b16 %v2584
    %v2883 = vunpack.c.h.b16 %v2584
    %v2884 = vunpack.c.l.b16 %v2585
    %v2885 = vunpack.c.h.b16 %v2585
    %v2886 = vunpack.c.l.b16 %v2586
    %v2887 = vunpack.c.h.b16 %v2586
    %v2888 = vunpack.c.l.b16 %v2587
    %v2889 = vunpack.c.h.b16 %v2587
    %v2890 = vunpack.c.l.b16 %v2588
    %v2891 = vunpack.c.h.b16 %v2588
    %v2892 = vunpack.c.l.b16 %v2589
    %v2893 = vunpack.c.h.b16 %v2589
    %v2894 = vunpack.c.l.b16 %v2590
    %v2895 = vunpack.c.h.b16 %v2590
    %v2896 = vunpack.c.l.b16 %v2591
    %v2897 = vunpack.c.h.b16 %v2591
    %v2898 = vunpack.c.l.b16 %v2592
    %v2899 = vunpack.c.h.b16 %v2592
    %v2900 = vunpack.c.l.b16 %v2593
    %v2901 = vunpack.c.h.b16 %v2593
    %v2902 = vunpack.c.l.b16 %v2594
    %v2903 = vunpack.c.h.b16 %v2594
    %v2904 = vunpack.c.l.b16 %v2595
    %v2905 = vunpack.c.h.b16 %v2595
    %v2906 = vunpack.c.l.b16 %v2596
    %v2907 = vunpack.c.h.b16 %v2596
    %v2908 = vunpack.c.l.b16 %v2597
    %v2909 = vunpack.c.h.b16 %v2597
    %v2910 = vunpack.c.l.b16 %v2598
    %v2911 = vunpack.c.h.b16 %v2598
    %v2912 = vunpack.c.l.b16 %v2599
    %v2913 = vunpack.c.h.b16 %v2599
    %v2914 = vunpack.c.l.b16 %v2600
    %v2915 = vunpack.c.h.b16 %v2600
    %v2916 = vunpack.c.l.b16 %v2601
    %v2917 = vunpack.c.h.b16 %v2601
    %v2918 = vunpack.c.l.b16 %v2602
    %v2919 = vunpack.c.h.b16 %v2602
    %v2920 = vunpack.c.l.b16 %v2603
    %v2921 = vunpack.c.h.b16 %v2603
    %v2922 = vunpack.c.l.b16 %v2604
    %v2923 = vunpack.c.h.b16 %v2604
    %v2924 = vunpack.c.l.b16 %v2605
    %v2925 = vunpack.c.h.b16 %v2605
    %v2926 = vunpack.c.l.b16 %v2606
    %v2927 = vunpack.c.h.b16 %v2606
    %v2928 = vunpack.c.l.b16 %v2607
    %v2929 = vunpack.c.h.b16 %v2607
    %v2930 = vunpack.c.l.b16 %v2608
    %v2931 = vunpack.c.h.b16 %v2608
    %v2932 = vunpack.c.l.b16 %v2609
    %v2933 = vunpack.c.h.b16 %v2609
    %v2934 = vunpack.c.l.b16 %v2610
    %v2935 = vunpack.c.h.b16 %v2610
    %v2936 = vunpack.c.l.b16 %v2611
    %v2937 = vunpack.c.h.b16 %v2611
    %v2938 = vunpack.c.l.b16 %v2612
    %v2939 = vunpack.c.h.b16 %v2612
    %v2940 = vunpack.c.l.b16 %v2613
    %v2941 = vunpack.c.h.b16 %v2613
    %v2942 = vunpack.c.l.b16 %v2614
    %v2943 = vunpack.c.h.b16 %v2614
    %v2944 = vunpack.c.l.b16 %v2615
    %v2945 = vunpack.c.h.b16 %v2615
    %v2946 = vunpack.c.l.b16 %v2616
    %v2947 = vunpack.c.h.b16 %v2616
    %v2948 = vunpack.c.l.b16 %v2617
    %v2949 = vunpack.c.h.b16 %v2617
    %v2950 = vunpack.c.l.b16 %v2618
    %v2951 = vunpack.c.h.b16 %v2618
    %v2952 = vunpack.c.l.b16 %v2619
    %v2953 = vunpack.c.h.b16 %v2619
    %v2954 = vunpack.c.l.b16 %v2620
    %v2955 = vunpack.c.h.b16 %v2620
    %v2956 = vunpack.c.l.b16 %v2621
    %v2957 = vunpack.c.h.b16 %v2621
    %v2958 = vunpack.c.l.b16 %v2622
    %v2959 = vunpack.c.h.b16 %v2622
    %v2960 = vunpack.c.l.b16 %v2623
    %v2961 = vunpack.c.h.b16 %v2623
    %v2962 = vunpack.c.l.b16 %v2624
    %v2963 = vunpack.c.h.b16 %v2624
    %v2964 = vunpack.c.l.b16 %v2625
    %v2965 = vunpack.c.h.b16 %v2625
    %v2966 = vunpack.c.l.b16 %v2626
    %v2967 = vunpack.c.h.b16 %v2626
    %v2968 = vunpack.c.l.b16 %v2627
    %v2969 = vunpack.c.h.b16 %v2627
    %v2970 = vunpack.c.l.b16 %v2628
    %v2971 = vunpack.c.h.b16 %v2628
    %v2972 = vunpack.c.l.b16 %v2629
    %v2973 = vunpack.c.h.b16 %v2629
    %v2974 = vunpack.c.l.b16 %v2630
    %v2975 = vunpack.c.h.b16 %v2630
    %v2976 = vunpack.c.l.b16 %v2631
    %v2977 = vunpack.c.h.b16 %v2631
    %v2978 = vunpack.c.l.b16 %v2632
    %v2979 = vunpack.c.h.b16 %v2632
    %v2980 = vunpack.c.l.b16 %v2633
    %v2981 = vunpack.c.h.b16 %v2633
    %v2982 = vunpack.c.l.b16 %v2634
    %v2983 = vunpack.c.h.b16 %v2634
    %v2984 = vunpack.c.l.b16 %v2635
    %v2985 = vunpack.c.h.b16 %v2635
    %v2986 = vunpack.c.l.b16 %v2636
    %v2987 = vunpack.c.h.b16 %v2636
    %v2988 = vunpack.c.l.b16 %v2637
    %v2989 = vunpack.c.h.b16 %v2637
    %v2990 = vunpack.c.l.b16 %v2638
    %v2991 = vunpack.c.h.b16 %v2638
    %v2992 = vunpack.c.l.b16 %v2639
    %v2993 = vunpack.c.h.b16 %v2639
    %v2994 = vunpack.c.l.b16 %v2640
    %v2995 = vunpack.c.h.b16 %v2640
    %v2996 = vunpack.c.l.b16 %v2641
    %v2997 = vunpack.c.h.b16 %v2641
    %v2998 = vunpack.c.l.b16 %v2642
    %v2999 = vunpack.c.h.b16 %v2642
    %v3000 = vunpack.c.l.b16 %v2643
    %v3001 = vunpack.c.h.b16 %v2643
    %v3002 = vunpack.c.l.b16 %v2644
    %v3003 = vunpack.c.h.b16 %v2644
    %v3004 = vunpack.c.l.b16 %v2645
    %v3005 = vunpack.c.h.b16 %v2645
    %v3006 = vunpack.c.l.b16 %v2646
    %v3007 = vunpack.c.h.b16 %v2646
    %v3008 = vunpack.c.l.b16 %v2647
    %v3009 = vunpack.c.h.b16 %v2647
    %v3010 = vunpack.c.l.b16 %v2648
    %v3011 = vunpack.c.h.b16 %v2648
    %v3012 = vunpack.c.l.b16 %v2649
    %v3013 = vunpack.c.h.b16 %v2649
    %v3014 = vunpack.c.l.b16 %v2650
    %v3015 = vunpack.c.h.b16 %v2650
    %v3016 = vunpack.c.l.b16 %v2651
    %v3017 = vunpack.c.h.b16 %v2651
    %v3018 = vunpack.c.l.b16 %v2652
    %v3019 = vunpack.c.h.b16 %v2652
    %v3020 = vunpack.c.l.b16 %v2653
    %v3021 = vunpack.c.h.b16 %v2653
    %v3022 = vunpack.c.l.b16 %v2654
    %v3023 = vunpack.c.h.b16 %v2654
    %v3024 = vunpack.c.l.b16 %v2655
    %v3025 = vunpack.c.h.b16 %v2655
    %v3026 = vunpack.c.l.b16 %v2656
    %v3027 = vunpack.c.h.b16 %v2656
    %v3028 = vunpack.c.l.b16 %v2657
    %v3029 = vunpack.c.h.b16 %v2657
    %v3030 = vunpack.c.l.b16 %v2658
    %v3031 = vunpack.c.h.b16 %v2658
    %v3032 = vunpack.c.l.b16 %v2659
    %v3033 = vunpack.c.h.b16 %v2659
    %v3034 = vunpack.c.l.b16 %v2660
    %v3035 = vunpack.c.h.b16 %v2660
    %v3036 = vunpack.c.l.b16 %v2661
    %v3037 = vunpack.c.h.b16 %v2661
    %v3038 = vunpack.c.l.b16 %v2662
    %v3039 = vunpack.c.h.b16 %v2662
    %v3040 = vunpack.c.l.b16 %v2663
    %v3041 = vunpack.c.h.b16 %v2663
    %v3042 = vunpack.c.l.b16 %v2664
    %v3043 = vunpack.c.h.b16 %v2664
    %v3044 = vunpack.c.l.b16 %v2665
    %v3045 = vunpack.c.h.b16 %v2665
    %v3046 = vunpack.c.l.b16 %v2666
    %v3047 = vunpack.c.h.b16 %v2666
    %v3048 = vunpack.c.l.b16 %v2667
    %v3049 = vunpack.c.h.b16 %v2667
    %v3050 = vunpack.c.l.b16 %v2668
    %v3051 = vunpack.c.h.b16 %v2668
    %v3052 = vunpack.c.l.b16 %v2669
    %v3053 = vunpack.c.h.b16 %v2669
    %v3054 = vunpack.c.l.b16 %v2670
    %v3055 = vunpack.c.h.b16 %v2670
    %v3056 = vunpack.c.l.b16 %v2671
    %v3057 = vunpack.c.h.b16 %v2671
    %v3058 = vunpack.c.l.b16 %v2672
    %v3059 = vunpack.c.h.b16 %v2672
    %v3060 = vunpack.c.l.b16 %v2673
    %v3061 = vunpack.c.h.b16 %v2673
    %v3062 = vunpack.c.l.b16 %v2674
    %v3063 = vunpack.c.h.b16 %v2674
    %v3064 = vunpack.c.l.b16 %v2675
    %v3065 = vunpack.c.h.b16 %v2675
    %v3066 = vunpack.c.l.b16 %v2676
    %v3067 = vunpack.c.h.b16 %v2676
    %v3068 = vunpack.c.l.b16 %v2677
    %v3069 = vunpack.c.h.b16 %v2677
    %v3070 = vunpack.c.l.b16 %v2678
    %v3071 = vunpack.c.h.b16 %v2678
    %v3072 = vunpack.c.l.b16 %v2679
    %v3073 = vunpack.c.h.b16 %v2679
    %v3074 = vunpack.c.l.b16 %v2680
    %v3075 = vunpack.c.h.b16 %v2680
    %v3076 = vunpack.c.l.b16 %v2681
    %v3077 = vunpack.c.h.b16 %v2681
    %v3078 = vpack.c.b16 %v2824, %v2822
    %v3079 = vpack.c.b16 %v2825, %v2823
    %v3080 = vpack.c.b16 %v2828, %v2826
    %v3081 = vpack.c.b16 %v2829, %v2827
    %v3082 = vpack.c.b16 %v2832, %v2830
    %v3083 = vpack.c.b16 %v2833, %v2831
    %v3084 = vpack.c.b16 %v2836, %v2834
    %v3085 = vpack.c.b16 %v2837, %v2835
    %v3086 = vpack.c.b16 %v2840, %v2838
    %v3087 = vpack.c.b16 %v2841, %v2839
    %v3088 = vpack.c.b16 %v2844, %v2842
    %v3089 = vpack.c.b16 %v2845, %v2843
    %v3090 = vpack.c.b16 %v2848, %v2846
    %v3091 = vpack.c.b16 %v2849, %v2847
    %v3092 = vpack.c.b16 %v2852, %v2850
    %v3093 = vpack.c.b16 %v2853, %v2851
    %v3094 = vpack.c.b16 %v2856, %v2854
    %v3095 = vpack.c.b16 %v2857, %v2855
    %v3096 = vpack.c.b16 %v2860, %v2858
    %v3097 = vpack.c.b16 %v2861, %v2859
    %v3098 = vpack.c.b16 %v2864, %v2862
    %v3099 = vpack.c.b16 %v2865, %v2863
    %v3100 = vpack.c.b16 %v2868, %v2866
    %v3101 = vpack.c.b16 %v2869, %v2867
    %v3102 = vpack.c.b16 %v2872, %v2870
    %v3103 = vpack.c.b16 %v2873, %v2871
    %v3104 = vpack.c.b16 %v2876, %v2874
    %v3105 = vpack.c.b16 %v2877, %v2875
    %v3106 = vpack.c.b16 %v2880, %v2878
    %v3107 = vpack.c.b16 %v2881, %v2879
    %v3108 = vpack.c.b16 %v2884, %v2882
    %v3109 = vpack.c.b16 %v2885, %v2883
    %v3110 = vpack.c.b16 %v2888, %v2886
    %v3111 = vpack.c.b16 %v2889, %v2887
    %v3112 = vpack.c.b16 %v2892, %v2890
    %v3113 = vpack.c.b16 %v2893, %v2891
    %v3114 = vpack.c.b16 %v2896, %v2894
    %v3115 = vpack.c.b16 %v2897, %v2895
    %v3116 = vpack.c.b16 %v2900, %v2898
    %v3117 = vpack.c.b16 %v2901, %v2899
    %v3118 = vpack.c.b16 %v2904, %v2902
    %v3119 = vpack.c.b16 %v2905, %v2903
    %v3120 = vpack.c.b16 %v2908, %v2906
    %v3121 = vpack.c.b16 %v2909, %v2907
    %v3122 = vpack.c.b16 %v2912, %v2910
    %v3123 = vpack.c.b16 %v2913, %v2911
    %v3124 = vpack.c.b16 %v2916, %v2914
    %v3125 = vpack.c.b16 %v2917, %v2915
    %v3126 = vpack.c.b16 %v2920, %v2918
    %v3127 = vpack.c.b16 %v2921, %v2919
    %v3128 = vpack.c.b16 %v2924, %v2922
    %v3129 = vpack.c.b16 %v2925, %v2923
    %v3130 = vpack.c.b16 %v2928, %v2926
    %v3131 = vpack.c.b16 %v2929, %v2927
    %v3132 = vpack.c.b16 %v2932, %v2930
    %v3133 = vpack.c.b16 %v2933, %v2931
    %v3134 = vpack.c.b16 %v2936, %v2934
    %v3135 = vpack.c.b16 %v2937, %v2935
    %v3136 = vpack.c.b16 %v2940, %v2938
    %v3137 = vpack.c.b16 %v2941, %v2939
    %v3138 = vpack.c.b16 %v2944, %v2942
    %v3139 = vpack.c.b16 %v2945, %v2943
    %v3140 = vpack.c.b16 %v2948, %v2946
    %v3141 = vpack.c.b16 %v2949, %v2947
    %v3142 = vpack.c.b16 %v2952, %v2950
    %v3143 = vpack.c.b16 %v2953, %v2951
    %v3144 = vpack.c.b16 %v2956, %v2954
    %v3145 = vpack.c.b16 %v2957, %v2955
    %v3146 = vpack.c.b16 %v2960, %v2958
    %v3147 = vpack.c.b16 %v2961, %v2959
    %v3148 = vpack.c.b16 %v2964, %v2962
    %v3149 = vpack.c.b16 %v2965, %v2963
    %v3150 = vpack.c.b16 %v2968, %v2966
    %v3151 = vpack.c.b16 %v2969, %v2967
    %v3152 = vpack.c.b16 %v2972, %v2970
    %v3153 = vpack.c.b16 %v2973, %v2971
    %v3154 = vpack.c.b16 %v2976, %v2974
    %v3155 = vpack.c.b16 %v2977, %v2975
    %v3156 = vpack.c.b16 %v2980, %v2978
    %v3157 = vpack.c.b16 %v2981, %v2979
    %v3158 = vpack.c.b16 %v2984, %v2982
    %v3159 = vpack.c.b16 %v2985, %v2983
    %v3160 = vpack.c.b16 %v2988, %v2986
    %v3161 = vpack.c.b16 %v2989, %v2987
    %v3162 = vpack.c.b16 %v2992, %v2990
    %v3163 = vpack.c.b16 %v2993, %v2991
    %v3164 = vpack.c.b16 %v2996, %v2994
    %v3165 = vpack.c.b16 %v2997, %v2995
    %v3166 = vpack.c.b16 %v3000, %v2998
    %v3167 = vpack.c.b16 %v3001, %v2999
    %v3168 = vpack.c.b16 %v3004, %v3002
    %v3169 = vpack.c.b16 %v3005, %v3003
    %v3170 = vpack.c.b16 %v3008, %v3006
    %v3171 = vpack.c.b16 %v3009, %v3007
    %v3172 = vpack.c.b16 %v3012, %v3010
    %v3173 = vpack.c.b16 %v3013, %v3011
    %v3174 = vpack.c.b16 %v3016, %v3014
    %v3175 = vpack.c.b16 %v3017, %v3015
    %v3176 = vpack.c.b16 %v3020, %v3018
    %v3177 = vpack.c.b16 %v3021, %v3019
    %v3178 = vpack.c.b16 %v3024, %v3022
    %v3179 = vpack.c.b16 %v3025, %v3023
    %v3180 = vpack.c.b16 %v3028, %v3026
    %v3181 = vpack.c.b16 %v3029, %v3027
    %v3182 = vpack.c.b16 %v3032, %v3030
    %v3183 = vpack.c.b16 %v3033, %v3031
    %v3184 = vpack.c.b16 %v3036, %v3034
    %v3185 = vpack.c.b16 %v3037, %v3035
    %v3186 = vpack.c.b16 %v3040, %v3038
    %v3187 = vpack.c.b16 %v3041, %v3039
    %v3188 = vpack.c.b16 %v3044, %v3042
    %v3189 = vpack.c.b16 %v3045, %v3043
    %v3190 = vpack.c.b16 %v3048, %v3046
    %v3191 = vpack.c.b16 %v3049, %v3047
    %v3192 = vpack.c.b16 %v3052, %v3050
    %v3193 = vpack.c.b16 %v3053, %v3051
    %v3194 = vpack.c.b16 %v3056, %v3054
    %v3195 = vpack.c.b16 %v3057, %v3055
    %v3196 = vpack.c.b16 %v3060, %v3058
    %v3197 = vpack.c.b16 %v3061, %v3059
    %v3198 = vpack.c.b16 %v3064, %v3062
    %v3199 = vpack.c.b16 %v3065, %v3063
    %v3200 = vpack.c.b16 %v3068, %v3066
    %v3201 = vpack.c.b16 %v3069, %v3067
    %v3202 = vpack.c.b16 %v3072, %v3070
    %v3203 = vpack.c.b16 %v3073, %v3071
    %v3204 = vpack.c.b16 %v3076, %v3074
    %v3205 = vpack.c.b16 %v3077, %v3075
    %3334 = vmatprep.subr.bf16.mxu0 %v3079
    %3335 = vmatpush1.bf16.msra.mxu0 %v3078
    %3336 = vmatprep.subr.bf16.mxu0 %v3081
    %3337 = vmatpush1.bf16.msra.mxu0 %v3080
    %3338 = vmatprep.subr.bf16.mxu0 %v3083
    %3339 = vmatpush1.bf16.msra.mxu0 %v3082
    %3340 = vmatprep.subr.bf16.mxu0 %v3085
    %3341 = vmatpush1.bf16.msra.mxu0 %v3084
    %3342 = vmatprep.subr.bf16.mxu0 %v3087
    %3343 = vmatpush1.bf16.msra.mxu0 %v3086
    %3344 = vmatprep.subr.bf16.mxu0 %v3089
    %3345 = vmatpush1.bf16.msra.mxu0 %v3088
    %3346 = vmatprep.subr.bf16.mxu0 %v3091
    %3347 = vmatpush1.bf16.msra.mxu0 %v3090
    %3348 = vmatprep.subr.bf16.mxu0 %v3093
    %3349 = vmatpush1.bf16.msra.mxu0 %v3092
    %3350 = vmatprep.subr.bf16.mxu0 %v3095
    %3351 = vmatpush1.bf16.msra.mxu0 %v3094
    %3352 = vmatprep.subr.bf16.mxu0 %v3097
    %3353 = vmatpush1.bf16.msra.mxu0 %v3096
    %3354 = vmatprep.subr.bf16.mxu0 %v3099
    %3355 = vmatpush1.bf16.msra.mxu0 %v3098
    %3356 = vmatprep.subr.bf16.mxu0 %v3101
    %3357 = vmatpush1.bf16.msra.mxu0 %v3100
    %3358 = vmatprep.subr.bf16.mxu0 %v3103
    %3359 = vmatpush1.bf16.msra.mxu0 %v3102
    %3360 = vmatprep.subr.bf16.mxu0 %v3105
    %3361 = vmatpush1.bf16.msra.mxu0 %v3104
    %3362 = vmatprep.subr.bf16.mxu0 %v3107
    %3363 = vmatpush1.bf16.msra.mxu0 %v3106
    %3364 = vmatprep.subr.bf16.mxu0 %v3109
    %3365 = vmatpush1.bf16.msra.mxu0 %v3108
    %3366 = vmatprep.mubr.bf16.mxu0 %v2547
    %3367 = vmatmul.mubr.bf16.gmra.mrb[0].mxu0 %v2546
    %v3368 = vpop.f32.mrb[0].mxu0
    %v3369 = vadd.f32 %v2687, %v3368
    %v3370 = vpop.f32.mrb[0].mxu0
    %v3371 = vadd.f32 %v2691, %v3370
    %v3372 = vpop.f32.mrb[0].mxu0
    %v3373 = vadd.f32 %v2687, %v3372
    %v3374 = vpop.f32.mrb[0].mxu0
    %v3375 = vadd.f32 %v2691, %v3374
    %3376 = vdwg.mxu0
    %3377 = vmatprep.subr.bf16.mxu0 %v3111
    %3378 = vmatpush1.bf16.msra.mxu0 %v3110
    %3379 = vmatprep.subr.bf16.mxu0 %v3113
    %3380 = vmatpush1.bf16.msra.mxu0 %v3112
    %3381 = vmatprep.subr.bf16.mxu0 %v3115
    %3382 = vmatpush1.bf16.msra.mxu0 %v3114
    %3383 = vmatprep.subr.bf16.mxu0 %v3117
    %3384 = vmatpush1.bf16.msra.mxu0 %v3116
    %3385 = vmatprep.subr.bf16.mxu0 %v3119
    %3386 = vmatpush1.bf16.msra.mxu0 %v3118
    %3387 = vmatprep.subr.bf16.mxu0 %v3121
    %3388 = vmatpush1.bf16.msra.mxu0 %v3120
    %3389 = vmatprep.subr.bf16.mxu0 %v3123
    %3390 = vmatpush1.bf16.msra.mxu0 %v3122
    %3391 = vmatprep.subr.bf16.mxu0 %v3125
    %3392 = vmatpush1.bf16.msra.mxu0 %v3124
    %3393 = vmatprep.subr.bf16.mxu0 %v3127
    %3394 = vmatpush1.bf16.msra.mxu0 %v3126
    %3395 = vmatprep.subr.bf16.mxu0 %v3129
    %3396 = vmatpush1.bf16.msra.mxu0 %v3128
    %3397 = vmatprep.subr.bf16.mxu0 %v3131
    %3398 = vmatpush1.bf16.msra.mxu0 %v3130
    %3399 = vmatprep.subr.bf16.mxu0 %v3133
    %3400 = vmatpush1.bf16.msra.mxu0 %v3132
    %3401 = vmatprep.subr.bf16.mxu0 %v3135
    %3402 = vmatpush1.bf16.msra.mxu0 %v3134
    %3403 = vmatprep.subr.bf16.mxu0 %v3137
    %3404 = vmatpush1.bf16.msra.mxu0 %v3136
    %3405 = vmatprep.subr.bf16.mxu0 %v3139
    %3406 = vmatpush1.bf16.msra.mxu0 %v3138
    %3407 = vmatprep.subr.bf16.mxu0 %v3141
    %3408 = vmatpush1.bf16.msra.mxu0 %v3140
    %3409 = vmatprep.mubr.bf16.mxu0 %v2549
    %3410 = vmatmul.mubr.bf16.gmra.mrb[0].mxu0 %v2548
    %v3411 = vpop.f32.mrb[0].mxu0
    %v3412 = vadd.f32 %v3369, %v3411
    %v3413 = vpop.f32.mrb[0].mxu0
    %v3414 = vadd.f32 %v3371, %v3413
    %v3415 = vpop.f32.mrb[0].mxu0
    %v3416 = vadd.f32 %v3373, %v3415
    %v3417 = vpop.f32.mrb[0].mxu0
    %v3418 = vadd.f32 %v3375, %v3417
    %3419 = vdwg.mxu0
    %3420 = vmatprep.subr.bf16.mxu0 %v3143
    %3421 = vmatpush1.bf16.msra.mxu0 %v3142
    %3422 = vmatprep.subr.bf16.mxu0 %v3145
    %3423 = vmatpush1.bf16.msra.mxu0 %v3144
    %3424 = vmatprep.subr.bf16.mxu0 %v3147
    %3425 = vmatpush1.bf16.msra.mxu0 %v3146
    %3426 = vmatprep.subr.bf16.mxu0 %v3149
    %3427 = vmatpush1.bf16.msra.mxu0 %v3148
    %3428 = vmatprep.subr.bf16.mxu0 %v3151
    %3429 = vmatpush1.bf16.msra.mxu0 %v3150
    %3430 = vmatprep.subr.bf16.mxu0 %v3153
    %3431 = vmatpush1.bf16.msra.mxu0 %v3152
    %3432 = vmatprep.subr.bf16.mxu0 %v3155
    %3433 = vmatpush1.bf16.msra.mxu0 %v3154
    %3434 = vmatprep.subr.bf16.mxu0 %v3157
    %3435 = vmatpush1.bf16.msra.mxu0 %v3156
    %3436 = vmatprep.subr.bf16.mxu0 %v3159
    %3437 = vmatpush1.bf16.msra.mxu0 %v3158
    %3438 = vmatprep.subr.bf16.mxu0 %v3161
    %3439 = vmatpush1.bf16.msra.mxu0 %v3160
    %3440 = vmatprep.subr.bf16.mxu0 %v3163
    %3441 = vmatpush1.bf16.msra.mxu0 %v3162
    %3442 = vmatprep.subr.bf16.mxu0 %v3165
    %3443 = vmatpush1.bf16.msra.mxu0 %v3164
    %3444 = vmatprep.subr.bf16.mxu0 %v3167
    %3445 = vmatpush1.bf16.msra.mxu0 %v3166
    %3446 = vmatprep.subr.bf16.mxu0 %v3169
    %3447 = vmatpush1.bf16.msra.mxu0 %v3168
    %3448 = vmatprep.subr.bf16.mxu0 %v3171
    %3449 = vmatpush1.bf16.msra.mxu0 %v3170
    %3450 = vmatprep.subr.bf16.mxu0 %v3173
    %3451 = vmatpush1.bf16.msra.mxu0 %v3172
    %3452 = vmatprep.mubr.bf16.mxu0 %v2551
    %3453 = vmatmul.mubr.bf16.gmra.mrb[0].mxu0 %v2550
    %v3454 = vpop.f32.mrb[0].mxu0
    %v3455 = vadd.f32 %v3412, %v3454
    %v3456 = vpop.f32.mrb[0].mxu0
    %v3457 = vadd.f32 %v3414, %v3456
    %v3458 = vpop.f32.mrb[0].mxu0
    %v3459 = vadd.f32 %v3416, %v3458
    %v3460 = vpop.f32.mrb[0].mxu0
    %v3461 = vadd.f32 %v3418, %v3460
    %3462 = vdwg.mxu0
    %3463 = vmatprep.subr.bf16.mxu0 %v3175
    %3464 = vmatpush1.bf16.msra.mxu0 %v3174
    %3465 = vmatprep.subr.bf16.mxu0 %v3177
    %3466 = vmatpush1.bf16.msra.mxu0 %v3176
    %3467 = vmatprep.subr.bf16.mxu0 %v3179
    %3468 = vmatpush1.bf16.msra.mxu0 %v3178
    %3469 = vmatprep.subr.bf16.mxu0 %v3181
    %3470 = vmatpush1.bf16.msra.mxu0 %v3180
    %3471 = vmatprep.subr.bf16.mxu0 %v3183
    %3472 = vmatpush1.bf16.msra.mxu0 %v3182
    %3473 = vmatprep.subr.bf16.mxu0 %v3185
    %3474 = vmatpush1.bf16.msra.mxu0 %v3184
    %3475 = vmatprep.subr.bf16.mxu0 %v3187
    %3476 = vmatpush1.bf16.msra.mxu0 %v3186
    %3477 = vmatprep.subr.bf16.mxu0 %v3189
    %3478 = vmatpush1.bf16.msra.mxu0 %v3188
    %3479 = vmatprep.subr.bf16.mxu0 %v3191
    %3480 = vmatpush1.bf16.msra.mxu0 %v3190
    %3481 = vmatprep.subr.bf16.mxu0 %v3193
    %3482 = vmatpush1.bf16.msra.mxu0 %v3192
    %3483 = vmatprep.subr.bf16.mxu0 %v3195
    %3484 = vmatpush1.bf16.msra.mxu0 %v3194
    %3485 = vmatprep.subr.bf16.mxu0 %v3197
    %3486 = vmatpush1.bf16.msra.mxu0 %v3196
    %3487 = vmatprep.subr.bf16.mxu0 %v3199
    %3488 = vmatpush1.bf16.msra.mxu0 %v3198
    %3489 = vmatprep.subr.bf16.mxu0 %v3201
    %3490 = vmatpush1.bf16.msra.mxu0 %v3200
    %3491 = vmatprep.subr.bf16.mxu0 %v3203
    %3492 = vmatpush1.bf16.msra.mxu0 %v3202
    %3493 = vmatprep.subr.bf16.mxu0 %v3205
    %3494 = vmatpush1.bf16.msra.mxu0 %v3204
    %3495 = vmatprep.mubr.bf16.mxu0 %v2553
    %3496 = vmatmul.mubr.bf16.gmra.mrb[0].mxu0 %v2552
    %v3497 = vpop.f32.mrb[0].mxu0
    %v3498 = vadd.f32 %v3455, %v3497
    %v3499 = vpop.f32.mrb[0].mxu0
    %v3500 = vadd.f32 %v3457, %v3499
    %v3501 = vpop.f32.mrb[0].mxu0
    %v3502 = vadd.f32 %v3459, %v3501
    %v3503 = vpop.f32.mrb[0].mxu0
    %v3504 = vadd.f32 %v3461, %v3503
    %3505 = vdwg.mxu0
    %v3506 = vmul.f32 %v3498, 0.5
    %v3507 = vmul.f32 %v3500, 0.5
    %v3508 = vmul.f32 %v3502, 0.5
    %v3509 = vmul.f32 %v3504, 0.5
    %v3510 = vtanh.pop %v3506
    %v3511 = vtanh.pop %v3507
    %v3512 = vtanh.pop %v3508
    %v3513 = vtanh.pop %v3509
    %v3514 = vmul.f32 %v3510, 0.5
    %v3515 = vmul.f32 %v3511, 0.5
    %v3516 = vmul.f32 %v3512, 0.5
    %v3517 = vmul.f32 %v3513, 0.5
    %v3518 = vadd.f32 %v3514, 0.5
    %v3519 = vadd.f32 %v3515, 0.5
    %v3520 = vadd.f32 %v3516, 0.5
    %v3521 = vadd.f32 %v3517, 0.5
    %v3522 = vpack.c.bf16 %v3520, %v3518
    %v3523 = vpack.c.bf16 %v3521, %v3519
    %v3526 = vunpack.c.l.b16 %v3522
    %v3527 = vunpack.c.l.b16 %v3523
    %v3528 = vunpack.c.h.b16 %v3522
    %v3529 = vunpack.c.h.b16 %v3523
    %v3530 = vpack.c.b16 %v3527, %v3526
    %v3531 = vpack.c.b16 %v3529, %v3528
    %vm3534 = vcmask 1043456
    %vm3535 = vcmask 523268
    %vm3536 = vmor %vm3535, %vm3534
    %3537 = vst.msk [vmem:[%s13] sm:$0xff] %vm3536, %v3530
    %3538 = vst.msk [vmem:[%s13 + $0x8] sm:$0xff] %vm3536, %v3531
    // Predicated region
    $region62: #{panitznet_forward.1} parent=1 // pred_check
      _
    $region63: #{panitznet_forward.1} parent=1 // pred_check_branch
      %3540 = sbr.rel (0) target = $region65
    $region64: #{panitznet_forward.1} parent=1 // pred_region
      _
    $region65: #{panitznet_forward.1} parent=1 // pred_fallthru
      _
    // Predicated region
    $region66: #{panitznet_forward.1} parent=1 // pred_check
      _
    $region67: #{panitznet_forward.1} parent=1 // pred_check_branch
      %3542 = sbr.rel (0) target = $region69
    $region68: #{panitznet_forward.1} parent=1 // pred_region
      _
    $region69: #{panitznet_forward.1} parent=1 // pred_fallthru
      _
    %3543 = vsyncpa [#allocation3], 1
    %3544 = vsyncpa [#allocation5], 1

</llo_original>
